<compile_context>
chip_gen: v7x
topology: tpu7x:2x2x1
jax: 0.10.0
libtpu: 0.0.40
codegen_flags: <defaults>
</compile_context>

<pallas_src>
import functools
import math

import jax
import jax.numpy as jnp
import numpy as np
from jax.experimental import pallas as pl
from jax.experimental.pallas import tpu as pltpu


# padded (lane-friendly) widths used inside the kernel
DP = 128    # padded d_model (33 -> 128)
HP = 32     # padded per-head dim (11 -> 32)
FFP = 128   # padded d_ff (64 -> 128)

_PACKED_ORDER = ("wqkv", "bqkv", "wo", "bo", "g1", "be1",
                 "w1", "b1", "w2", "b2", "g2", "be2")


# ----------------------------------------------------------------------------
# Fused Pallas kernel: embed + PE + n_layers post-norm TransformerEncoderLayers
# ----------------------------------------------------------------------------
def fused_encoder_kernel(feat_ref, bias_ref, pe_ref,
                         wqkv_ref, bqkv_ref, wo_ref, bo_ref,
                         g1_ref, be1_ref, w1_ref, b1_ref, w2_ref, b2_ref,
                         g2_ref, be2_ref,
                         out_ref, *, scale, d_model, n_heads, hp, n_layers):
    """Whole BehaviourEncoder forward for one batch element (padded to 128 lanes)."""
    dp = feat_ref.shape[2]

    # embed: cat(obs, act) * sqrt(d_model) + positional encoding (pad cols stay 0)
    x = feat_ref[0] * scale + pe_ref[...]                     # (S, DP) f32
    bias = bias_ref[0]                                        # (1, S) additive key bias

    inv_d = 1.0 / d_model

    for l in range(n_layers):                                 # static unroll (2 layers)
        # ---- fused Q/K/V projection: one (S,DP) @ (DP,3*DP) matmul -----------
        # (1/sqrt(hd) already folded into the Q columns of wqkv/bqkv)
        qkv = jnp.dot(x, wqkv_ref[l],
                      preferred_element_type=jnp.float32) + bqkv_ref[l]   # (S, 3*DP)

        heads = []
        for h in range(n_heads):                              # static unroll over heads
            qh = qkv[:, 0 * dp + h * hp: 0 * dp + (h + 1) * hp]   # (S, HP), pad cols = 0
            kh = qkv[:, 1 * dp + h * hp: 1 * dp + (h + 1) * hp]
            vh = qkv[:, 2 * dp + h * hp: 2 * dp + (h + 1) * hp]
            # scores without materialising k.T: contract over the head dim
            sc = jax.lax.dot_general(
                qh, kh, (((1,), (1,)), ((), ())),
                preferred_element_type=jnp.float32)                        # (S, S)
            sc = sc + bias                                    # key-padding mask
            sc = sc - jnp.max(sc, axis=-1, keepdims=True)
            e = jnp.exp(sc)
            p = e * pl.reciprocal(jnp.sum(e, axis=-1, keepdims=True), approx=True)
            heads.append(jnp.dot(p, vh, preferred_element_type=jnp.float32))  # (S, HP)

        # ---- single out-projection matmul on concatenated head outputs -------
        oh = jnp.concatenate(heads, axis=-1)                  # (S, n_heads*HP)
        attn = jnp.dot(oh, wo_ref[l],
                       preferred_element_type=jnp.float32) + bo_ref[l]     # (S, DP)

        # ---- residual + LayerNorm 1 ------------------------------------------
        # Padded columns of h1 are exactly 0, so sums over all 128 lanes equal
        # sums over the real d_model columns; pad columns stay 0 because the
        # packed gamma/beta are zero there.
        h1 = x + attn
        mu = jnp.sum(h1, axis=-1, keepdims=True) * inv_d
        ms = jnp.sum(h1 * h1, axis=-1, keepdims=True) * inv_d
        var = ms - mu * mu
        h1 = (h1 - mu) * jax.lax.rsqrt(var + 1e-5) * g1_ref[l] + be1_ref[l]

        # ---- feed-forward (ReLU) ---------------------------------------------
        f = jnp.dot(h1, w1_ref[l], preferred_element_type=jnp.float32) + b1_ref[l]
        f = jnp.maximum(f, 0.0)
        f = jnp.dot(f, w2_ref[l], preferred_element_type=jnp.float32) + b2_ref[l]

        # ---- residual + LayerNorm 2 -------------------------------------------
        h2 = h1 + f
        mu2 = jnp.sum(h2, axis=-1, keepdims=True) * inv_d
        ms2 = jnp.sum(h2 * h2, axis=-1, keepdims=True) * inv_d
        var2 = ms2 - mu2 * mu2
        x = (h2 - mu2) * jax.lax.rsqrt(var2 + 1e-5) * g2_ref[l] + be2_ref[l]

    out_ref[0] = x                                            # lane-dense (S, 128) store


# ----------------------------------------------------------------------------
# Wrapper (single pallas_call; tiny concat/pad/mask glue left to XLA)
# ----------------------------------------------------------------------------
@functools.partial(jax.jit, static_argnames=("d_model", "n_heads"))
def behaviour_encoder(obs, act, pe_pad, packed, *, d_model, n_heads):
    b, s, _ = obs.shape
    dp = pe_pad.shape[-1]
    n_layers = packed[0].shape[0]

    feat = jnp.concatenate([obs, act], axis=-1)
    feat = jnp.pad(feat, ((0, 0), (0, 0), (0, dp - d_model)))            # (B, S, DP)
    # key-padding mask: True (padded) -> -1e9 additive bias on keys
    bias = jnp.where(jnp.mean(obs, axis=2) == 0.0, -1e9, 0.0)[:, None, :]
    bias = bias.astype(jnp.float32)                                      # (B, 1, S)

    def full_spec(arr):
        shp = arr.shape
        nd = len(shp)
        return pl.BlockSpec(shp, lambda *_: (0,) * nd)

    kernel = functools.partial(
        fused_encoder_kernel, scale=math.sqrt(d_model), d_model=d_model,
        n_heads=n_heads, hp=HP, n_layers=n_layers)

    out_pad = pl.pallas_call(
        kernel,
        out_shape=jax.ShapeDtypeStruct((b, s, dp), jnp.float32),
        grid=(b,),
        in_specs=([pl.BlockSpec((1, s, dp), lambda i: (i, 0, 0)),
                   pl.BlockSpec((1, 1, s), lambda i: (i, 0, 0)),
                   pl.BlockSpec((s, dp), lambda i: (0, 0))]
                  + [full_spec(w) for w in packed]),
        out_specs=pl.BlockSpec((1, s, dp), lambda i: (i, 0, 0)),
        compiler_params=pltpu.CompilerParams(
            dimension_semantics=("parallel",)),
    )(feat, bias, pe_pad, *packed)

    return out_pad[..., :d_model]


# ----------------------------------------------------------------------------
# Host-side parameter packing (zero-pad to lane-friendly widths, stack layers,
# fold 1/sqrt(head_dim) into the Q projection)
# ----------------------------------------------------------------------------
def pack_params(layers, d_model, n_heads, d_ff):
    hd = d_model // n_heads
    inv_sqrt_hd = 1.0 / math.sqrt(hd)
    stacked = {k: [] for k in _PACKED_ORDER}

    def padvec(v, n):
        out = np.zeros((1, n), np.float32)
        out[0, :v.shape[0]] = np.asarray(v)
        return out

    for p in layers:
        wqkv = np.zeros((DP, 3 * DP), np.float32)
        bqkv = np.zeros((1, 3 * DP), np.float32)
        for j, (wn, bn) in enumerate((("wq", "bq"), ("wk", "bk"), ("wv", "bv"))):
            w = np.asarray(p[wn], np.float32)
            bv = np.asarray(p[bn], np.float32)
            if j == 0:                       # fold attention scale into Q proj
                w = w * inv_sqrt_hd
                bv = bv * inv_sqrt_hd
            for h in range(n_heads):
                c0 = j * DP + h * HP
                wqkv[:d_model, c0:c0 + hd] = w[:, h * hd:(h + 1) * hd]
                bqkv[0, c0:c0 + hd] = bv[h * hd:(h + 1) * hd]
        wo = np.zeros((n_heads * HP, DP), np.float32)
        wof = np.asarray(p["wo"], np.float32)
        for h in range(n_heads):
            wo[h * HP:h * HP + hd, :d_model] = wof[h * hd:(h + 1) * hd, :]
        w1 = np.zeros((DP, FFP), np.float32); w1[:d_model, :d_ff] = np.asarray(p["w1"])
        w2 = np.zeros((FFP, DP), np.float32); w2[:d_ff, :d_model] = np.asarray(p["w2"])

        stacked["wqkv"].append(wqkv); stacked["bqkv"].append(bqkv)
        stacked["wo"].append(wo); stacked["bo"].append(padvec(p["bo"], DP))
        stacked["g1"].append(padvec(p["ln1_g"], DP)); stacked["be1"].append(padvec(p["ln1_b"], DP))
        stacked["w1"].append(w1); stacked["b1"].append(padvec(p["b1"], FFP))
        stacked["w2"].append(w2); stacked["b2"].append(padvec(p["b2"], DP))
        stacked["g2"].append(padvec(p["ln2_g"], DP)); stacked["be2"].append(padvec(p["ln2_b"], DP))

    return tuple(jnp.asarray(np.stack(stacked[k])) for k in _PACKED_ORDER)


# ----------------------------------------------------------------------------
# PE / parameter construction (deterministic, synthetic)
# ----------------------------------------------------------------------------
def build_positional_encoding(d_model, max_len=5000):
    position = np.arange(max_len, dtype=np.float32)[:, None]
    div_term = np.exp(np.arange(0, d_model, 2, dtype=np.float32)
                      * (-math.log(10000.0) / d_model))
    pe = np.zeros((1, max_len, d_model), np.float32)
    pe[0, :, 0::2] = np.sin(position * div_term)
    pe[0, :, 1::2] = np.cos(position * div_term[:-1])    # requires odd d_model
    return jnp.asarray(pe)


def init_params(key, n_layers, d_model, d_ff):
    layers = []
    for l in range(n_layers):
        ks = jax.random.split(jax.random.fold_in(key, l), 12)
        nrm = lambda k, shp: 0.1 * jax.random.normal(k, shp, jnp.float32)
        layers.append(dict(
            wq=nrm(ks[0], (d_model, d_model)), bq=nrm(ks[1], (d_model,)),
            wk=nrm(ks[2], (d_model, d_model)), bk=nrm(ks[3], (d_model,)),
            wv=nrm(ks[4], (d_model, d_model)), bv=nrm(ks[5], (d_model,)),
            wo=nrm(ks[6], (d_model, d_model)), bo=nrm(ks[7], (d_model,)),
            ln1_g=jnp.ones((d_model,), jnp.float32), ln1_b=jnp.zeros((d_model,), jnp.float32),
            w1=nrm(ks[8], (d_model, d_ff)), b1=nrm(ks[9], (d_ff,)),
            w2=nrm(ks[10], (d_ff, d_model)), b2=nrm(ks[11], (d_model,)),
            ln2_g=jnp.ones((d_model,), jnp.float32), ln2_b=jnp.zeros((d_model,), jnp.float32),
        ))
    return layers


# ----------------------------------------------------------------------------
# Pure-JAX reference (mirrors PyTorch's full-matrix multihead formulation)
# ----------------------------------------------------------------------------
def _layer_norm(x, g, b, eps=1e-5):
    mu = jnp.mean(x, axis=-1, keepdims=True)
    var = jnp.mean((x - mu) ** 2, axis=-1, keepdims=True)
    return (x - mu) * jax.lax.rsqrt(var + eps) * g + b


def reference_forward(obs, act, pe, layers, d_model, n_heads):
    b, s, _ = obs.shape
    hd = d_model // n_heads
    x = jnp.concatenate([obs, act], axis=-1) * math.sqrt(d_model) + pe[:, :s, :]
    bias = jnp.where(jnp.mean(obs, axis=2) == 0.0, -1e9, 0.0)              # (B, S)
    for p in layers:
        q = x @ p["wq"] + p["bq"]
        k = x @ p["wk"] + p["bk"]
        v = x @ p["wv"] + p["bv"]
        qh = q.reshape(b, s, n_heads, hd).transpose(0, 2, 1, 3)
        kh = k.reshape(b, s, n_heads, hd).transpose(0, 2, 1, 3)
        vh = v.reshape(b, s, n_heads, hd).transpose(0, 2, 1, 3)
        scr = jnp.einsum("bhqd,bhkd->bhqk", qh, kh) / math.sqrt(hd) + bias[:, None, None, :]
        a = jax.nn.softmax(scr, axis=-1)
        o = jnp.einsum("bhqk,bhkd->bhqd", a, vh).transpose(0, 2, 1, 3).reshape(b, s, d_model)
        o = o @ p["wo"] + p["bo"]
        x = _layer_norm(x + o, p["ln1_g"], p["ln1_b"])
        f = jax.nn.relu(x @ p["w1"] + p["b1"]) @ p["w2"] + p["b2"]
        x = _layer_norm(x + f, p["ln2_g"], p["ln2_b"])
    return x


# ----------------------------------------------------------------------------
if __name__ == "__main__":
    # CFG (small; d_model must be odd for the original PositionalEncoding code)
    B, S = 2, 8
    D_OBS, D_ACT = 25, 8
    D_MODEL = D_OBS + D_ACT          # 33
    N_HEADS, D_FF, N_LAYERS = 3, 64, 2

    key = jax.random.PRNGKey(0)
    k_obs, k_act, k_par = jax.random.split(key, 3)
    obs = jax.random.normal(k_obs, (B, S, D_OBS), jnp.float32)
    act = jax.random.normal(k_act, (B, S, D_ACT), jnp.float32)
    # make the last two timesteps of batch element 1 "padded" (zero observations)
    obs = obs.at[1, 6:, :].set(0.0)

    pe = build_positional_encoding(D_MODEL, max_len=5000)
    params = init_params(k_par, N_LAYERS, D_MODEL, D_FF)

    # host-side, one-time packing of weights into lane-dense padded slabs
    packed = pack_params(params, D_MODEL, N_HEADS, D_FF)
    pe_pad = jnp.pad(pe[0, :S, :], ((0, 0), (0, DP - D_MODEL)))          # (S, 128)

    out = behaviour_encoder(obs, act, pe_pad, packed,
                            d_model=D_MODEL, n_heads=N_HEADS)
    out = jax.block_until_ready(out)

    ref = reference_forward(obs, act, pe, params, D_MODEL, N_HEADS)
    assert out.shape == (B, S, D_MODEL)
    assert bool(jnp.all(jnp.isfinite(out)))
    max_err = float(jnp.max(jnp.abs(out - ref)))
    assert max_err < 5e-2, f"mismatch vs reference: {max_err}"

    # TODO(synk): dropout (p=CFG.dropout) is identity here (eval/inference mode).
    print("KERNEL_OK")
</pallas_src>

<mosaic_0001>
module attributes {stable_mosaic.version = 11 : i64} {
  func.func @fused_encoder_kernel(%arg0: i32, %arg1: memref<1x8x128xf32, #tpu.memory_space<vmem>>, %arg2: memref<1x1x8xf32, #tpu.memory_space<vmem>>, %arg3: memref<8x128xf32, #tpu.memory_space<vmem>>, %arg4: memref<2x128x384xf32, #tpu.memory_space<vmem>>, %arg5: memref<2x1x384xf32, #tpu.memory_space<vmem>>, %arg6: memref<2x96x128xf32, #tpu.memory_space<vmem>>, %arg7: memref<2x1x128xf32, #tpu.memory_space<vmem>>, %arg8: memref<2x1x128xf32, #tpu.memory_space<vmem>>, %arg9: memref<2x1x128xf32, #tpu.memory_space<vmem>>, %arg10: memref<2x128x128xf32, #tpu.memory_space<vmem>>, %arg11: memref<2x1x128xf32, #tpu.memory_space<vmem>>, %arg12: memref<2x128x128xf32, #tpu.memory_space<vmem>>, %arg13: memref<2x1x128xf32, #tpu.memory_space<vmem>>, %arg14: memref<2x1x128xf32, #tpu.memory_space<vmem>>, %arg15: memref<2x1x128xf32, #tpu.memory_space<vmem>>, %arg16: memref<1x8x128xf32, #tpu.memory_space<vmem>>) attributes {dimension_semantics = [#tpu.dimension_semantics<parallel>], iteration_bounds = array<i64: 2>, scalar_prefetch = 0 : i64, scratch_operands = 0 : i64, tpu.core_type = #tpu.core_type<tc>, window_params = [{transform_indices = @transform_0, window_bounds = array<i64: 1, 8, 128>}, {transform_indices = @transform_1, window_bounds = array<i64: 1, 1, 8>}, {pipeline_mode = #tpu.pipeline_mode<synchronous>, transform_indices = @transform_2, window_bounds = array<i64: 8, 128>}, {pipeline_mode = #tpu.pipeline_mode<synchronous>, transform_indices = @transform_3, window_bounds = array<i64: 2, 128, 384>}, {pipeline_mode = #tpu.pipeline_mode<synchronous>, transform_indices = @transform_4, window_bounds = array<i64: 2, 1, 384>}, {pipeline_mode = #tpu.pipeline_mode<synchronous>, transform_indices = @transform_5, window_bounds = array<i64: 2, 96, 128>}, {pipeline_mode = #tpu.pipeline_mode<synchronous>, transform_indices = @transform_6, window_bounds = array<i64: 2, 1, 128>}, {pipeline_mode = #tpu.pipeline_mode<synchronous>, transform_indices = @transform_7, window_bounds = array<i64: 2, 1, 128>}, {pipeline_mode = #tpu.pipeline_mode<synchronous>, transform_indices = @transform_8, window_bounds = array<i64: 2, 1, 128>}, {pipeline_mode = #tpu.pipeline_mode<synchronous>, transform_indices = @transform_9, window_bounds = array<i64: 2, 128, 128>}, {pipeline_mode = #tpu.pipeline_mode<synchronous>, transform_indices = @transform_10, window_bounds = array<i64: 2, 1, 128>}, {pipeline_mode = #tpu.pipeline_mode<synchronous>, transform_indices = @transform_11, window_bounds = array<i64: 2, 128, 128>}, {pipeline_mode = #tpu.pipeline_mode<synchronous>, transform_indices = @transform_12, window_bounds = array<i64: 2, 1, 128>}, {pipeline_mode = #tpu.pipeline_mode<synchronous>, transform_indices = @transform_13, window_bounds = array<i64: 2, 1, 128>}, {pipeline_mode = #tpu.pipeline_mode<synchronous>, transform_indices = @transform_14, window_bounds = array<i64: 2, 1, 128>}, {transform_indices = @transform_15, window_bounds = array<i64: 1, 8, 128>}]} {
    %c0 = arith.constant 0 : index
    %c0_0 = arith.constant 0 : index
    %c0_1 = arith.constant 0 : index
    %0 = vector.load %arg1[%c0, %c0_0, %c0_1] : memref<1x8x128xf32, #tpu.memory_space<vmem>>, vector<1x8x128xf32>
    %1 = vector.shape_cast %0 : vector<1x8x128xf32> to vector<8x128xf32>
    %cst = arith.constant 5.74456263 : f32
    %2 = vector.broadcast %cst : f32 to vector<8x128xf32>
    %3 = arith.mulf %1, %2 : vector<8x128xf32>
    %c0_2 = arith.constant 0 : index
    %c0_3 = arith.constant 0 : index
    %4 = vector.load %arg3[%c0_2, %c0_3] : memref<8x128xf32, #tpu.memory_space<vmem>>, vector<8x128xf32>
    %5 = arith.addf %3, %4 : vector<8x128xf32>
    %c0_4 = arith.constant 0 : index
    %c0_5 = arith.constant 0 : index
    %c0_6 = arith.constant 0 : index
    %6 = vector.load %arg2[%c0_4, %c0_5, %c0_6] : memref<1x1x8xf32, #tpu.memory_space<vmem>>, vector<1x1x8xf32>
    %7 = vector.shape_cast %6 : vector<1x1x8xf32> to vector<1x8xf32>
    %c0_7 = arith.constant 0 : index
    %c0_8 = arith.constant 0 : index
    %c0_9 = arith.constant 0 : index
    %8 = vector.load %arg4[%c0_7, %c0_8, %c0_9] : memref<2x128x384xf32, #tpu.memory_space<vmem>>, vector<1x128x384xf32>
    %9 = vector.shape_cast %8 : vector<1x128x384xf32> to vector<128x384xf32>
    %cst_10 = arith.constant dense<0.000000e+00> : vector<8x384xf32>
    %10 = tpu.matmul %5, %9, %cst_10 {dimension_numbers = #tpu.dot_dimension_numbers<[1], [0], [0], [1], [0, 0, 1, 1], [], []>} : vector<8x128xf32>, vector<128x384xf32>, vector<8x384xf32> -> vector<8x384xf32>
    %c0_11 = arith.constant 0 : index
    %c0_12 = arith.constant 0 : index
    %c0_13 = arith.constant 0 : index
    %11 = vector.load %arg5[%c0_11, %c0_12, %c0_13] : memref<2x1x384xf32, #tpu.memory_space<vmem>>, vector<1x1x384xf32>
    %12 = vector.shape_cast %11 : vector<1x1x384xf32> to vector<1x384xf32>
    %13 = vector.broadcast %12 : vector<1x384xf32> to vector<8x384xf32>
    %14 = arith.addf %10, %13 : vector<8x384xf32>
    %15 = vector.extract_strided_slice %14 {offsets = [0, 0], sizes = [8, 32], strides = [1, 1]} : vector<8x384xf32> to vector<8x32xf32>
    %16 = vector.extract_strided_slice %14 {offsets = [0, 128], sizes = [8, 32], strides = [1, 1]} : vector<8x384xf32> to vector<8x32xf32>
    %17 = vector.extract_strided_slice %14 {offsets = [0, 256], sizes = [8, 32], strides = [1, 1]} : vector<8x384xf32> to vector<8x32xf32>
    %cst_14 = arith.constant dense<0.000000e+00> : vector<8x8xf32>
    %18 = tpu.matmul %15, %16, %cst_14 {dimension_numbers = #tpu.dot_dimension_numbers<[1], [1], [0], [0], [0, 0, 1, 0], [], []>} : vector<8x32xf32>, vector<8x32xf32>, vector<8x8xf32> -> vector<8x8xf32>
    %19 = vector.broadcast %7 : vector<1x8xf32> to vector<8x8xf32>
    %20 = arith.addf %18, %19 : vector<8x8xf32>
    %cst_15 = arith.constant dense<0xFF800000> : vector<8xf32>
    %21 = vector.multi_reduction <maximumf>, %20, %cst_15 [1] : vector<8x8xf32> to vector<8xf32>
    %22 = vector.shape_cast %21 : vector<8xf32> to vector<8x1xf32>
    %23 = vector.broadcast %22 : vector<8x1xf32> to vector<8x8xf32>
    %24 = arith.subf %20, %23 : vector<8x8xf32>
    %25 = math.exp %24 : vector<8x8xf32>
    %cst_16 = arith.constant dense<0.000000e+00> : vector<8xf32>
    %26 = vector.multi_reduction <add>, %25, %cst_16 [1] : vector<8x8xf32> to vector<8xf32>
    %27 = vector.shape_cast %26 : vector<8xf32> to vector<8x1xf32>
    %28 = tpu.reciprocal %27 {approx = true} : vector<8x1xf32> -> vector<8x1xf32>
    %29 = vector.broadcast %28 : vector<8x1xf32> to vector<8x8xf32>
    %30 = arith.mulf %25, %29 : vector<8x8xf32>
    %cst_17 = arith.constant dense<0.000000e+00> : vector<8x32xf32>
    %31 = tpu.matmul %30, %17, %cst_17 {dimension_numbers = #tpu.dot_dimension_numbers<[1], [0], [0], [1], [0, 0, 1, 1], [], []>} : vector<8x8xf32>, vector<8x32xf32>, vector<8x32xf32> -> vector<8x32xf32>
    %32 = vector.extract_strided_slice %14 {offsets = [0, 32], sizes = [8, 32], strides = [1, 1]} : vector<8x384xf32> to vector<8x32xf32>
    %33 = vector.extract_strided_slice %14 {offsets = [0, 160], sizes = [8, 32], strides = [1, 1]} : vector<8x384xf32> to vector<8x32xf32>
    %34 = vector.extract_strided_slice %14 {offsets = [0, 288], sizes = [8, 32], strides = [1, 1]} : vector<8x384xf32> to vector<8x32xf32>
    %cst_18 = arith.constant dense<0.000000e+00> : vector<8x8xf32>
    %35 = tpu.matmul %32, %33, %cst_18 {dimension_numbers = #tpu.dot_dimension_numbers<[1], [1], [0], [0], [0, 0, 1, 0], [], []>} : vector<8x32xf32>, vector<8x32xf32>, vector<8x8xf32> -> vector<8x8xf32>
    %36 = vector.broadcast %7 : vector<1x8xf32> to vector<8x8xf32>
    %37 = arith.addf %35, %36 : vector<8x8xf32>
    %cst_19 = arith.constant dense<0xFF800000> : vector<8xf32>
    %38 = vector.multi_reduction <maximumf>, %37, %cst_19 [1] : vector<8x8xf32> to vector<8xf32>
    %39 = vector.shape_cast %38 : vector<8xf32> to vector<8x1xf32>
    %40 = vector.broadcast %39 : vector<8x1xf32> to vector<8x8xf32>
    %41 = arith.subf %37, %40 : vector<8x8xf32>
    %42 = math.exp %41 : vector<8x8xf32>
    %cst_20 = arith.constant dense<0.000000e+00> : vector<8xf32>
    %43 = vector.multi_reduction <add>, %42, %cst_20 [1] : vector<8x8xf32> to vector<8xf32>
    %44 = vector.shape_cast %43 : vector<8xf32> to vector<8x1xf32>
    %45 = tpu.reciprocal %44 {approx = true} : vector<8x1xf32> -> vector<8x1xf32>
    %46 = vector.broadcast %45 : vector<8x1xf32> to vector<8x8xf32>
    %47 = arith.mulf %42, %46 : vector<8x8xf32>
    %cst_21 = arith.constant dense<0.000000e+00> : vector<8x32xf32>
    %48 = tpu.matmul %47, %34, %cst_21 {dimension_numbers = #tpu.dot_dimension_numbers<[1], [0], [0], [1], [0, 0, 1, 1], [], []>} : vector<8x8xf32>, vector<8x32xf32>, vector<8x32xf32> -> vector<8x32xf32>
    %49 = vector.extract_strided_slice %14 {offsets = [0, 64], sizes = [8, 32], strides = [1, 1]} : vector<8x384xf32> to vector<8x32xf32>
    %50 = vector.extract_strided_slice %14 {offsets = [0, 192], sizes = [8, 32], strides = [1, 1]} : vector<8x384xf32> to vector<8x32xf32>
    %51 = vector.extract_strided_slice %14 {offsets = [0, 320], sizes = [8, 32], strides = [1, 1]} : vector<8x384xf32> to vector<8x32xf32>
    %cst_22 = arith.constant dense<0.000000e+00> : vector<8x8xf32>
    %52 = tpu.matmul %49, %50, %cst_22 {dimension_numbers = #tpu.dot_dimension_numbers<[1], [1], [0], [0], [0, 0, 1, 0], [], []>} : vector<8x32xf32>, vector<8x32xf32>, vector<8x8xf32> -> vector<8x8xf32>
    %53 = vector.broadcast %7 : vector<1x8xf32> to vector<8x8xf32>
    %54 = arith.addf %52, %53 : vector<8x8xf32>
    %cst_23 = arith.constant dense<0xFF800000> : vector<8xf32>
    %55 = vector.multi_reduction <maximumf>, %54, %cst_23 [1] : vector<8x8xf32> to vector<8xf32>
    %56 = vector.shape_cast %55 : vector<8xf32> to vector<8x1xf32>
    %57 = vector.broadcast %56 : vector<8x1xf32> to vector<8x8xf32>
    %58 = arith.subf %54, %57 : vector<8x8xf32>
    %59 = math.exp %58 : vector<8x8xf32>
    %cst_24 = arith.constant dense<0.000000e+00> : vector<8xf32>
    %60 = vector.multi_reduction <add>, %59, %cst_24 [1] : vector<8x8xf32> to vector<8xf32>
    %61 = vector.shape_cast %60 : vector<8xf32> to vector<8x1xf32>
    %62 = tpu.reciprocal %61 {approx = true} : vector<8x1xf32> -> vector<8x1xf32>
    %63 = vector.broadcast %62 : vector<8x1xf32> to vector<8x8xf32>
    %64 = arith.mulf %59, %63 : vector<8x8xf32>
    %cst_25 = arith.constant dense<0.000000e+00> : vector<8x32xf32>
    %65 = tpu.matmul %64, %51, %cst_25 {dimension_numbers = #tpu.dot_dimension_numbers<[1], [0], [0], [1], [0, 0, 1, 1], [], []>} : vector<8x8xf32>, vector<8x32xf32>, vector<8x32xf32> -> vector<8x32xf32>
    %66 = tpu.concatenate %31, %48, %65 in 1 : vector<8x32xf32>, vector<8x32xf32>, vector<8x32xf32> -> vector<8x96xf32>
    %c0_26 = arith.constant 0 : index
    %c0_27 = arith.constant 0 : index
    %c0_28 = arith.constant 0 : index
    %67 = vector.load %arg6[%c0_26, %c0_27, %c0_28] : memref<2x96x128xf32, #tpu.memory_space<vmem>>, vector<1x96x128xf32>
    %68 = vector.shape_cast %67 : vector<1x96x128xf32> to vector<96x128xf32>
    %cst_29 = arith.constant dense<0.000000e+00> : vector<8x128xf32>
    %69 = tpu.matmul %66, %68, %cst_29 {dimension_numbers = #tpu.dot_dimension_numbers<[1], [0], [0], [1], [0, 0, 1, 1], [], []>} : vector<8x96xf32>, vector<96x128xf32>, vector<8x128xf32> -> vector<8x128xf32>
    %c0_30 = arith.constant 0 : index
    %c0_31 = arith.constant 0 : index
    %c0_32 = arith.constant 0 : index
    %70 = vector.load %arg7[%c0_30, %c0_31, %c0_32] : memref<2x1x128xf32, #tpu.memory_space<vmem>>, vector<1x1x128xf32>
    %71 = vector.shape_cast %70 : vector<1x1x128xf32> to vector<1x128xf32>
    %72 = vector.broadcast %71 : vector<1x128xf32> to vector<8x128xf32>
    %73 = arith.addf %69, %72 : vector<8x128xf32>
    %74 = arith.addf %5, %73 : vector<8x128xf32>
    %cst_33 = arith.constant dense<0.000000e+00> : vector<8xf32>
    %75 = vector.multi_reduction <add>, %74, %cst_33 [1] : vector<8x128xf32> to vector<8xf32>
    %76 = vector.shape_cast %75 : vector<8xf32> to vector<8x1xf32>
    %cst_34 = arith.constant 0.0303030312 : f32
    %77 = vector.broadcast %cst_34 : f32 to vector<8x1xf32>
    %78 = arith.mulf %76, %77 : vector<8x1xf32>
    %79 = arith.mulf %74, %74 : vector<8x128xf32>
    %cst_35 = arith.constant dense<0.000000e+00> : vector<8xf32>
    %80 = vector.multi_reduction <add>, %79, %cst_35 [1] : vector<8x128xf32> to vector<8xf32>
    %81 = vector.shape_cast %80 : vector<8xf32> to vector<8x1xf32>
    %cst_36 = arith.constant 0.0303030312 : f32
    %82 = vector.broadcast %cst_36 : f32 to vector<8x1xf32>
    %83 = arith.mulf %81, %82 : vector<8x1xf32>
    %84 = arith.mulf %78, %78 : vector<8x1xf32>
    %85 = arith.subf %83, %84 : vector<8x1xf32>
    %86 = vector.broadcast %78 : vector<8x1xf32> to vector<8x128xf32>
    %87 = arith.subf %74, %86 : vector<8x128xf32>
    %cst_37 = arith.constant 9.99999974E-6 : f32
    %88 = vector.broadcast %cst_37 : f32 to vector<8x1xf32>
    %89 = arith.addf %85, %88 : vector<8x1xf32>
    %90 = math.rsqrt %89 : vector<8x1xf32>
    %91 = vector.broadcast %90 : vector<8x1xf32> to vector<8x128xf32>
    %92 = arith.mulf %87, %91 : vector<8x128xf32>
    %c0_38 = arith.constant 0 : index
    %c0_39 = arith.constant 0 : index
    %c0_40 = arith.constant 0 : index
    %93 = vector.load %arg8[%c0_38, %c0_39, %c0_40] : memref<2x1x128xf32, #tpu.memory_space<vmem>>, vector<1x1x128xf32>
    %94 = vector.shape_cast %93 : vector<1x1x128xf32> to vector<1x128xf32>
    %95 = vector.broadcast %94 : vector<1x128xf32> to vector<8x128xf32>
    %96 = arith.mulf %92, %95 : vector<8x128xf32>
    %c0_41 = arith.constant 0 : index
    %c0_42 = arith.constant 0 : index
    %c0_43 = arith.constant 0 : index
    %97 = vector.load %arg9[%c0_41, %c0_42, %c0_43] : memref<2x1x128xf32, #tpu.memory_space<vmem>>, vector<1x1x128xf32>
    %98 = vector.shape_cast %97 : vector<1x1x128xf32> to vector<1x128xf32>
    %99 = vector.broadcast %98 : vector<1x128xf32> to vector<8x128xf32>
    %100 = arith.addf %96, %99 : vector<8x128xf32>
    %c0_44 = arith.constant 0 : index
    %c0_45 = arith.constant 0 : index
    %c0_46 = arith.constant 0 : index
    %101 = vector.load %arg10[%c0_44, %c0_45, %c0_46] : memref<2x128x128xf32, #tpu.memory_space<vmem>>, vector<1x128x128xf32>
    %102 = vector.shape_cast %101 : vector<1x128x128xf32> to vector<128x128xf32>
    %cst_47 = arith.constant dense<0.000000e+00> : vector<8x128xf32>
    %103 = tpu.matmul %100, %102, %cst_47 {dimension_numbers = #tpu.dot_dimension_numbers<[1], [0], [0], [1], [0, 0, 1, 1], [], []>} : vector<8x128xf32>, vector<128x128xf32>, vector<8x128xf32> -> vector<8x128xf32>
    %c0_48 = arith.constant 0 : index
    %c0_49 = arith.constant 0 : index
    %c0_50 = arith.constant 0 : index
    %104 = vector.load %arg11[%c0_48, %c0_49, %c0_50] : memref<2x1x128xf32, #tpu.memory_space<vmem>>, vector<1x1x128xf32>
    %105 = vector.shape_cast %104 : vector<1x1x128xf32> to vector<1x128xf32>
    %106 = vector.broadcast %105 : vector<1x128xf32> to vector<8x128xf32>
    %107 = arith.addf %103, %106 : vector<8x128xf32>
    %cst_51 = arith.constant 0.000000e+00 : f32
    %108 = vector.broadcast %cst_51 : f32 to vector<8x128xf32>
    %109 = arith.maximumf %107, %108 : vector<8x128xf32>
    %c0_52 = arith.constant 0 : index
    %c0_53 = arith.constant 0 : index
    %c0_54 = arith.constant 0 : index
    %110 = vector.load %arg12[%c0_52, %c0_53, %c0_54] : memref<2x128x128xf32, #tpu.memory_space<vmem>>, vector<1x128x128xf32>
    %111 = vector.shape_cast %110 : vector<1x128x128xf32> to vector<128x128xf32>
    %cst_55 = arith.constant dense<0.000000e+00> : vector<8x128xf32>
    %112 = tpu.matmul %109, %111, %cst_55 {dimension_numbers = #tpu.dot_dimension_numbers<[1], [0], [0], [1], [0, 0, 1, 1], [], []>} : vector<8x128xf32>, vector<128x128xf32>, vector<8x128xf32> -> vector<8x128xf32>
    %c0_56 = arith.constant 0 : index
    %c0_57 = arith.constant 0 : index
    %c0_58 = arith.constant 0 : index
    %113 = vector.load %arg13[%c0_56, %c0_57, %c0_58] : memref<2x1x128xf32, #tpu.memory_space<vmem>>, vector<1x1x128xf32>
    %114 = vector.shape_cast %113 : vector<1x1x128xf32> to vector<1x128xf32>
    %115 = vector.broadcast %114 : vector<1x128xf32> to vector<8x128xf32>
    %116 = arith.addf %112, %115 : vector<8x128xf32>
    %117 = arith.addf %100, %116 : vector<8x128xf32>
    %cst_59 = arith.constant dense<0.000000e+00> : vector<8xf32>
    %118 = vector.multi_reduction <add>, %117, %cst_59 [1] : vector<8x128xf32> to vector<8xf32>
    %119 = vector.shape_cast %118 : vector<8xf32> to vector<8x1xf32>
    %cst_60 = arith.constant 0.0303030312 : f32
    %120 = vector.broadcast %cst_60 : f32 to vector<8x1xf32>
    %121 = arith.mulf %119, %120 : vector<8x1xf32>
    %122 = arith.mulf %117, %117 : vector<8x128xf32>
    %cst_61 = arith.constant dense<0.000000e+00> : vector<8xf32>
    %123 = vector.multi_reduction <add>, %122, %cst_61 [1] : vector<8x128xf32> to vector<8xf32>
    %124 = vector.shape_cast %123 : vector<8xf32> to vector<8x1xf32>
    %cst_62 = arith.constant 0.0303030312 : f32
    %125 = vector.broadcast %cst_62 : f32 to vector<8x1xf32>
    %126 = arith.mulf %124, %125 : vector<8x1xf32>
    %127 = arith.mulf %121, %121 : vector<8x1xf32>
    %128 = arith.subf %126, %127 : vector<8x1xf32>
    %129 = vector.broadcast %121 : vector<8x1xf32> to vector<8x128xf32>
    %130 = arith.subf %117, %129 : vector<8x128xf32>
    %cst_63 = arith.constant 9.99999974E-6 : f32
    %131 = vector.broadcast %cst_63 : f32 to vector<8x1xf32>
    %132 = arith.addf %128, %131 : vector<8x1xf32>
    %133 = math.rsqrt %132 : vector<8x1xf32>
    %134 = vector.broadcast %133 : vector<8x1xf32> to vector<8x128xf32>
    %135 = arith.mulf %130, %134 : vector<8x128xf32>
    %c0_64 = arith.constant 0 : index
    %c0_65 = arith.constant 0 : index
    %c0_66 = arith.constant 0 : index
    %136 = vector.load %arg14[%c0_64, %c0_65, %c0_66] : memref<2x1x128xf32, #tpu.memory_space<vmem>>, vector<1x1x128xf32>
    %137 = vector.shape_cast %136 : vector<1x1x128xf32> to vector<1x128xf32>
    %138 = vector.broadcast %137 : vector<1x128xf32> to vector<8x128xf32>
    %139 = arith.mulf %135, %138 : vector<8x128xf32>
    %c0_67 = arith.constant 0 : index
    %c0_68 = arith.constant 0 : index
    %c0_69 = arith.constant 0 : index
    %140 = vector.load %arg15[%c0_67, %c0_68, %c0_69] : memref<2x1x128xf32, #tpu.memory_space<vmem>>, vector<1x1x128xf32>
    %141 = vector.shape_cast %140 : vector<1x1x128xf32> to vector<1x128xf32>
    %142 = vector.broadcast %141 : vector<1x128xf32> to vector<8x128xf32>
    %143 = arith.addf %139, %142 : vector<8x128xf32>
    %c1 = arith.constant 1 : index
    %c0_70 = arith.constant 0 : index
    %c0_71 = arith.constant 0 : index
    %144 = vector.load %arg4[%c1, %c0_70, %c0_71] : memref<2x128x384xf32, #tpu.memory_space<vmem>>, vector<1x128x384xf32>
    %145 = vector.shape_cast %144 : vector<1x128x384xf32> to vector<128x384xf32>
    %cst_72 = arith.constant dense<0.000000e+00> : vector<8x384xf32>
    %146 = tpu.matmul %143, %145, %cst_72 {dimension_numbers = #tpu.dot_dimension_numbers<[1], [0], [0], [1], [0, 0, 1, 1], [], []>} : vector<8x128xf32>, vector<128x384xf32>, vector<8x384xf32> -> vector<8x384xf32>
    %c1_73 = arith.constant 1 : index
    %c0_74 = arith.constant 0 : index
    %c0_75 = arith.constant 0 : index
    %147 = vector.load %arg5[%c1_73, %c0_74, %c0_75] : memref<2x1x384xf32, #tpu.memory_space<vmem>>, vector<1x1x384xf32>
    %148 = vector.shape_cast %147 : vector<1x1x384xf32> to vector<1x384xf32>
    %149 = vector.broadcast %148 : vector<1x384xf32> to vector<8x384xf32>
    %150 = arith.addf %146, %149 : vector<8x384xf32>
    %151 = vector.extract_strided_slice %150 {offsets = [0, 0], sizes = [8, 32], strides = [1, 1]} : vector<8x384xf32> to vector<8x32xf32>
    %152 = vector.extract_strided_slice %150 {offsets = [0, 128], sizes = [8, 32], strides = [1, 1]} : vector<8x384xf32> to vector<8x32xf32>
    %153 = vector.extract_strided_slice %150 {offsets = [0, 256], sizes = [8, 32], strides = [1, 1]} : vector<8x384xf32> to vector<8x32xf32>
    %cst_76 = arith.constant dense<0.000000e+00> : vector<8x8xf32>
    %154 = tpu.matmul %151, %152, %cst_76 {dimension_numbers = #tpu.dot_dimension_numbers<[1], [1], [0], [0], [0, 0, 1, 0], [], []>} : vector<8x32xf32>, vector<8x32xf32>, vector<8x8xf32> -> vector<8x8xf32>
    %155 = vector.broadcast %7 : vector<1x8xf32> to vector<8x8xf32>
    %156 = arith.addf %154, %155 : vector<8x8xf32>
    %cst_77 = arith.constant dense<0xFF800000> : vector<8xf32>
    %157 = vector.multi_reduction <maximumf>, %156, %cst_77 [1] : vector<8x8xf32> to vector<8xf32>
    %158 = vector.shape_cast %157 : vector<8xf32> to vector<8x1xf32>
    %159 = vector.broadcast %158 : vector<8x1xf32> to vector<8x8xf32>
    %160 = arith.subf %156, %159 : vector<8x8xf32>
    %161 = math.exp %160 : vector<8x8xf32>
    %cst_78 = arith.constant dense<0.000000e+00> : vector<8xf32>
    %162 = vector.multi_reduction <add>, %161, %cst_78 [1] : vector<8x8xf32> to vector<8xf32>
    %163 = vector.shape_cast %162 : vector<8xf32> to vector<8x1xf32>
    %164 = tpu.reciprocal %163 {approx = true} : vector<8x1xf32> -> vector<8x1xf32>
    %165 = vector.broadcast %164 : vector<8x1xf32> to vector<8x8xf32>
    %166 = arith.mulf %161, %165 : vector<8x8xf32>
    %cst_79 = arith.constant dense<0.000000e+00> : vector<8x32xf32>
    %167 = tpu.matmul %166, %153, %cst_79 {dimension_numbers = #tpu.dot_dimension_numbers<[1], [0], [0], [1], [0, 0, 1, 1], [], []>} : vector<8x8xf32>, vector<8x32xf32>, vector<8x32xf32> -> vector<8x32xf32>
    %168 = vector.extract_strided_slice %150 {offsets = [0, 32], sizes = [8, 32], strides = [1, 1]} : vector<8x384xf32> to vector<8x32xf32>
    %169 = vector.extract_strided_slice %150 {offsets = [0, 160], sizes = [8, 32], strides = [1, 1]} : vector<8x384xf32> to vector<8x32xf32>
    %170 = vector.extract_strided_slice %150 {offsets = [0, 288], sizes = [8, 32], strides = [1, 1]} : vector<8x384xf32> to vector<8x32xf32>
    %cst_80 = arith.constant dense<0.000000e+00> : vector<8x8xf32>
    %171 = tpu.matmul %168, %169, %cst_80 {dimension_numbers = #tpu.dot_dimension_numbers<[1], [1], [0], [0], [0, 0, 1, 0], [], []>} : vector<8x32xf32>, vector<8x32xf32>, vector<8x8xf32> -> vector<8x8xf32>
    %172 = vector.broadcast %7 : vector<1x8xf32> to vector<8x8xf32>
    %173 = arith.addf %171, %172 : vector<8x8xf32>
    %cst_81 = arith.constant dense<0xFF800000> : vector<8xf32>
    %174 = vector.multi_reduction <maximumf>, %173, %cst_81 [1] : vector<8x8xf32> to vector<8xf32>
    %175 = vector.shape_cast %174 : vector<8xf32> to vector<8x1xf32>
    %176 = vector.broadcast %175 : vector<8x1xf32> to vector<8x8xf32>
    %177 = arith.subf %173, %176 : vector<8x8xf32>
    %178 = math.exp %177 : vector<8x8xf32>
    %cst_82 = arith.constant dense<0.000000e+00> : vector<8xf32>
    %179 = vector.multi_reduction <add>, %178, %cst_82 [1] : vector<8x8xf32> to vector<8xf32>
    %180 = vector.shape_cast %179 : vector<8xf32> to vector<8x1xf32>
    %181 = tpu.reciprocal %180 {approx = true} : vector<8x1xf32> -> vector<8x1xf32>
    %182 = vector.broadcast %181 : vector<8x1xf32> to vector<8x8xf32>
    %183 = arith.mulf %178, %182 : vector<8x8xf32>
    %cst_83 = arith.constant dense<0.000000e+00> : vector<8x32xf32>
    %184 = tpu.matmul %183, %170, %cst_83 {dimension_numbers = #tpu.dot_dimension_numbers<[1], [0], [0], [1], [0, 0, 1, 1], [], []>} : vector<8x8xf32>, vector<8x32xf32>, vector<8x32xf32> -> vector<8x32xf32>
    %185 = vector.extract_strided_slice %150 {offsets = [0, 64], sizes = [8, 32], strides = [1, 1]} : vector<8x384xf32> to vector<8x32xf32>
    %186 = vector.extract_strided_slice %150 {offsets = [0, 192], sizes = [8, 32], strides = [1, 1]} : vector<8x384xf32> to vector<8x32xf32>
    %187 = vector.extract_strided_slice %150 {offsets = [0, 320], sizes = [8, 32], strides = [1, 1]} : vector<8x384xf32> to vector<8x32xf32>
    %cst_84 = arith.constant dense<0.000000e+00> : vector<8x8xf32>
    %188 = tpu.matmul %185, %186, %cst_84 {dimension_numbers = #tpu.dot_dimension_numbers<[1], [1], [0], [0], [0, 0, 1, 0], [], []>} : vector<8x32xf32>, vector<8x32xf32>, vector<8x8xf32> -> vector<8x8xf32>
    %189 = vector.broadcast %7 : vector<1x8xf32> to vector<8x8xf32>
    %190 = arith.addf %188, %189 : vector<8x8xf32>
    %cst_85 = arith.constant dense<0xFF800000> : vector<8xf32>
    %191 = vector.multi_reduction <maximumf>, %190, %cst_85 [1] : vector<8x8xf32> to vector<8xf32>
    %192 = vector.shape_cast %191 : vector<8xf32> to vector<8x1xf32>
    %193 = vector.broadcast %192 : vector<8x1xf32> to vector<8x8xf32>
    %194 = arith.subf %190, %193 : vector<8x8xf32>
    %195 = math.exp %194 : vector<8x8xf32>
    %cst_86 = arith.constant dense<0.000000e+00> : vector<8xf32>
    %196 = vector.multi_reduction <add>, %195, %cst_86 [1] : vector<8x8xf32> to vector<8xf32>
    %197 = vector.shape_cast %196 : vector<8xf32> to vector<8x1xf32>
    %198 = tpu.reciprocal %197 {approx = true} : vector<8x1xf32> -> vector<8x1xf32>
    %199 = vector.broadcast %198 : vector<8x1xf32> to vector<8x8xf32>
    %200 = arith.mulf %195, %199 : vector<8x8xf32>
    %cst_87 = arith.constant dense<0.000000e+00> : vector<8x32xf32>
    %201 = tpu.matmul %200, %187, %cst_87 {dimension_numbers = #tpu.dot_dimension_numbers<[1], [0], [0], [1], [0, 0, 1, 1], [], []>} : vector<8x8xf32>, vector<8x32xf32>, vector<8x32xf32> -> vector<8x32xf32>
    %202 = tpu.concatenate %167, %184, %201 in 1 : vector<8x32xf32>, vector<8x32xf32>, vector<8x32xf32> -> vector<8x96xf32>
    %c1_88 = arith.constant 1 : index
    %c0_89 = arith.constant 0 : index
    %c0_90 = arith.constant 0 : index
    %203 = vector.load %arg6[%c1_88, %c0_89, %c0_90] : memref<2x96x128xf32, #tpu.memory_space<vmem>>, vector<1x96x128xf32>
    %204 = vector.shape_cast %203 : vector<1x96x128xf32> to vector<96x128xf32>
    %cst_91 = arith.constant dense<0.000000e+00> : vector<8x128xf32>
    %205 = tpu.matmul %202, %204, %cst_91 {dimension_numbers = #tpu.dot_dimension_numbers<[1], [0], [0], [1], [0, 0, 1, 1], [], []>} : vector<8x96xf32>, vector<96x128xf32>, vector<8x128xf32> -> vector<8x128xf32>
    %c1_92 = arith.constant 1 : index
    %c0_93 = arith.constant 0 : index
    %c0_94 = arith.constant 0 : index
    %206 = vector.load %arg7[%c1_92, %c0_93, %c0_94] : memref<2x1x128xf32, #tpu.memory_space<vmem>>, vector<1x1x128xf32>
    %207 = vector.shape_cast %206 : vector<1x1x128xf32> to vector<1x128xf32>
    %208 = vector.broadcast %207 : vector<1x128xf32> to vector<8x128xf32>
    %209 = arith.addf %205, %208 : vector<8x128xf32>
    %210 = arith.addf %143, %209 : vector<8x128xf32>
    %cst_95 = arith.constant dense<0.000000e+00> : vector<8xf32>
    %211 = vector.multi_reduction <add>, %210, %cst_95 [1] : vector<8x128xf32> to vector<8xf32>
    %212 = vector.shape_cast %211 : vector<8xf32> to vector<8x1xf32>
    %cst_96 = arith.constant 0.0303030312 : f32
    %213 = vector.broadcast %cst_96 : f32 to vector<8x1xf32>
    %214 = arith.mulf %212, %213 : vector<8x1xf32>
    %215 = arith.mulf %210, %210 : vector<8x128xf32>
    %cst_97 = arith.constant dense<0.000000e+00> : vector<8xf32>
    %216 = vector.multi_reduction <add>, %215, %cst_97 [1] : vector<8x128xf32> to vector<8xf32>
    %217 = vector.shape_cast %216 : vector<8xf32> to vector<8x1xf32>
    %cst_98 = arith.constant 0.0303030312 : f32
    %218 = vector.broadcast %cst_98 : f32 to vector<8x1xf32>
    %219 = arith.mulf %217, %218 : vector<8x1xf32>
    %220 = arith.mulf %214, %214 : vector<8x1xf32>
    %221 = arith.subf %219, %220 : vector<8x1xf32>
    %222 = vector.broadcast %214 : vector<8x1xf32> to vector<8x128xf32>
    %223 = arith.subf %210, %222 : vector<8x128xf32>
    %cst_99 = arith.constant 9.99999974E-6 : f32
    %224 = vector.broadcast %cst_99 : f32 to vector<8x1xf32>
    %225 = arith.addf %221, %224 : vector<8x1xf32>
    %226 = math.rsqrt %225 : vector<8x1xf32>
    %227 = vector.broadcast %226 : vector<8x1xf32> to vector<8x128xf32>
    %228 = arith.mulf %223, %227 : vector<8x128xf32>
    %c1_100 = arith.constant 1 : index
    %c0_101 = arith.constant 0 : index
    %c0_102 = arith.constant 0 : index
    %229 = vector.load %arg8[%c1_100, %c0_101, %c0_102] : memref<2x1x128xf32, #tpu.memory_space<vmem>>, vector<1x1x128xf32>
    %230 = vector.shape_cast %229 : vector<1x1x128xf32> to vector<1x128xf32>
    %231 = vector.broadcast %230 : vector<1x128xf32> to vector<8x128xf32>
    %232 = arith.mulf %228, %231 : vector<8x128xf32>
    %c1_103 = arith.constant 1 : index
    %c0_104 = arith.constant 0 : index
    %c0_105 = arith.constant 0 : index
    %233 = vector.load %arg9[%c1_103, %c0_104, %c0_105] : memref<2x1x128xf32, #tpu.memory_space<vmem>>, vector<1x1x128xf32>
    %234 = vector.shape_cast %233 : vector<1x1x128xf32> to vector<1x128xf32>
    %235 = vector.broadcast %234 : vector<1x128xf32> to vector<8x128xf32>
    %236 = arith.addf %232, %235 : vector<8x128xf32>
    %c1_106 = arith.constant 1 : index
    %c0_107 = arith.constant 0 : index
    %c0_108 = arith.constant 0 : index
    %237 = vector.load %arg10[%c1_106, %c0_107, %c0_108] : memref<2x128x128xf32, #tpu.memory_space<vmem>>, vector<1x128x128xf32>
    %238 = vector.shape_cast %237 : vector<1x128x128xf32> to vector<128x128xf32>
    %cst_109 = arith.constant dense<0.000000e+00> : vector<8x128xf32>
    %239 = tpu.matmul %236, %238, %cst_109 {dimension_numbers = #tpu.dot_dimension_numbers<[1], [0], [0], [1], [0, 0, 1, 1], [], []>} : vector<8x128xf32>, vector<128x128xf32>, vector<8x128xf32> -> vector<8x128xf32>
    %c1_110 = arith.constant 1 : index
    %c0_111 = arith.constant 0 : index
    %c0_112 = arith.constant 0 : index
    %240 = vector.load %arg11[%c1_110, %c0_111, %c0_112] : memref<2x1x128xf32, #tpu.memory_space<vmem>>, vector<1x1x128xf32>
    %241 = vector.shape_cast %240 : vector<1x1x128xf32> to vector<1x128xf32>
    %242 = vector.broadcast %241 : vector<1x128xf32> to vector<8x128xf32>
    %243 = arith.addf %239, %242 : vector<8x128xf32>
    %cst_113 = arith.constant 0.000000e+00 : f32
    %244 = vector.broadcast %cst_113 : f32 to vector<8x128xf32>
    %245 = arith.maximumf %243, %244 : vector<8x128xf32>
    %c1_114 = arith.constant 1 : index
    %c0_115 = arith.constant 0 : index
    %c0_116 = arith.constant 0 : index
    %246 = vector.load %arg12[%c1_114, %c0_115, %c0_116] : memref<2x128x128xf32, #tpu.memory_space<vmem>>, vector<1x128x128xf32>
    %247 = vector.shape_cast %246 : vector<1x128x128xf32> to vector<128x128xf32>
    %cst_117 = arith.constant dense<0.000000e+00> : vector<8x128xf32>
    %248 = tpu.matmul %245, %247, %cst_117 {dimension_numbers = #tpu.dot_dimension_numbers<[1], [0], [0], [1], [0, 0, 1, 1], [], []>} : vector<8x128xf32>, vector<128x128xf32>, vector<8x128xf32> -> vector<8x128xf32>
    %c1_118 = arith.constant 1 : index
    %c0_119 = arith.constant 0 : index
    %c0_120 = arith.constant 0 : index
    %249 = vector.load %arg13[%c1_118, %c0_119, %c0_120] : memref<2x1x128xf32, #tpu.memory_space<vmem>>, vector<1x1x128xf32>
    %250 = vector.shape_cast %249 : vector<1x1x128xf32> to vector<1x128xf32>
    %251 = vector.broadcast %250 : vector<1x128xf32> to vector<8x128xf32>
    %252 = arith.addf %248, %251 : vector<8x128xf32>
    %253 = arith.addf %236, %252 : vector<8x128xf32>
    %cst_121 = arith.constant dense<0.000000e+00> : vector<8xf32>
    %254 = vector.multi_reduction <add>, %253, %cst_121 [1] : vector<8x128xf32> to vector<8xf32>
    %255 = vector.shape_cast %254 : vector<8xf32> to vector<8x1xf32>
    %cst_122 = arith.constant 0.0303030312 : f32
    %256 = vector.broadcast %cst_122 : f32 to vector<8x1xf32>
    %257 = arith.mulf %255, %256 : vector<8x1xf32>
    %258 = arith.mulf %253, %253 : vector<8x128xf32>
    %cst_123 = arith.constant dense<0.000000e+00> : vector<8xf32>
    %259 = vector.multi_reduction <add>, %258, %cst_123 [1] : vector<8x128xf32> to vector<8xf32>
    %260 = vector.shape_cast %259 : vector<8xf32> to vector<8x1xf32>
    %cst_124 = arith.constant 0.0303030312 : f32
    %261 = vector.broadcast %cst_124 : f32 to vector<8x1xf32>
    %262 = arith.mulf %260, %261 : vector<8x1xf32>
    %263 = arith.mulf %257, %257 : vector<8x1xf32>
    %264 = arith.subf %262, %263 : vector<8x1xf32>
    %265 = vector.broadcast %257 : vector<8x1xf32> to vector<8x128xf32>
    %266 = arith.subf %253, %265 : vector<8x128xf32>
    %cst_125 = arith.constant 9.99999974E-6 : f32
    %267 = vector.broadcast %cst_125 : f32 to vector<8x1xf32>
    %268 = arith.addf %264, %267 : vector<8x1xf32>
    %269 = math.rsqrt %268 : vector<8x1xf32>
    %270 = vector.broadcast %269 : vector<8x1xf32> to vector<8x128xf32>
    %271 = arith.mulf %266, %270 : vector<8x128xf32>
    %c1_126 = arith.constant 1 : index
    %c0_127 = arith.constant 0 : index
    %c0_128 = arith.constant 0 : index
    %272 = vector.load %arg14[%c1_126, %c0_127, %c0_128] : memref<2x1x128xf32, #tpu.memory_space<vmem>>, vector<1x1x128xf32>
    %273 = vector.shape_cast %272 : vector<1x1x128xf32> to vector<1x128xf32>
    %274 = vector.broadcast %273 : vector<1x128xf32> to vector<8x128xf32>
    %275 = arith.mulf %271, %274 : vector<8x128xf32>
    %c1_129 = arith.constant 1 : index
    %c0_130 = arith.constant 0 : index
    %c0_131 = arith.constant 0 : index
    %276 = vector.load %arg15[%c1_129, %c0_130, %c0_131] : memref<2x1x128xf32, #tpu.memory_space<vmem>>, vector<1x1x128xf32>
    %277 = vector.shape_cast %276 : vector<1x1x128xf32> to vector<1x128xf32>
    %278 = vector.broadcast %277 : vector<1x128xf32> to vector<8x128xf32>
    %279 = arith.addf %275, %278 : vector<8x128xf32>
    %c0_132 = arith.constant 0 : index
    %c0_133 = arith.constant 0 : index
    %c0_134 = arith.constant 0 : index
    %280 = vector.load %arg16[%c0_132, %c0_133, %c0_134] : memref<1x8x128xf32, #tpu.memory_space<vmem>>, vector<1x8x128xf32>
    %281 = vector.shape_cast %280 : vector<1x8x128xf32> to vector<8x128xf32>
    %282 = vector.shape_cast %279 : vector<8x128xf32> to vector<1x8x128xf32>
    tpu.vector_store %arg16[%c0_132, %c0_133, %c0_134], %282 {strides = array<i32>} : memref<1x8x128xf32, #tpu.memory_space<vmem>>, vector<1x8x128xf32>,
    return
  }
  func.func @transform_0(%arg0: i32) -> (i32, i32, i32) {
    %c0_i32 = arith.constant 0 : i32
    %c0_i32_0 = arith.constant 0 : i32
    %c0_i32_1 = arith.constant 0 : i32
    return %arg0, %c0_i32, %c0_i32_0 : i32, i32, i32
  }
  func.func @transform_1(%arg0: i32) -> (i32, i32, i32) {
    %c0_i32 = arith.constant 0 : i32
    %c0_i32_0 = arith.constant 0 : i32
    %c0_i32_1 = arith.constant 0 : i32
    return %arg0, %c0_i32, %c0_i32_0 : i32, i32, i32
  }
  func.func @transform_2(%arg0: i32) -> (i32, i32) {
    %c0_i32 = arith.constant 0 : i32
    %c0_i32_0 = arith.constant 0 : i32
    %c0_i32_1 = arith.constant 0 : i32
    return %c0_i32, %c0_i32_0 : i32, i32
  }
  func.func @transform_3(%arg0: i32) -> (i32, i32, i32) {
    %c0_i32 = arith.constant 0 : i32
    %c0_i32_0 = arith.constant 0 : i32
    %c0_i32_1 = arith.constant 0 : i32
    %c0_i32_2 = arith.constant 0 : i32
    return %c0_i32, %c0_i32_0, %c0_i32_1 : i32, i32, i32
  }
  func.func @transform_4(%arg0: i32) -> (i32, i32, i32) {
    %c0_i32 = arith.constant 0 : i32
    %c0_i32_0 = arith.constant 0 : i32
    %c0_i32_1 = arith.constant 0 : i32
    %c0_i32_2 = arith.constant 0 : i32
    return %c0_i32, %c0_i32_0, %c0_i32_1 : i32, i32, i32
  }
  func.func @transform_5(%arg0: i32) -> (i32, i32, i32) {
    %c0_i32 = arith.constant 0 : i32
    %c0_i32_0 = arith.constant 0 : i32
    %c0_i32_1 = arith.constant 0 : i32
    %c0_i32_2 = arith.constant 0 : i32
    return %c0_i32, %c0_i32_0, %c0_i32_1 : i32, i32, i32
  }
  func.func @transform_6(%arg0: i32) -> (i32, i32, i32) {
    %c0_i32 = arith.constant 0 : i32
    %c0_i32_0 = arith.constant 0 : i32
    %c0_i32_1 = arith.constant 0 : i32
    %c0_i32_2 = arith.constant 0 : i32
    return %c0_i32, %c0_i32_0, %c0_i32_1 : i32, i32, i32
  }
  func.func @transform_7(%arg0: i32) -> (i32, i32, i32) {
    %c0_i32 = arith.constant 0 : i32
    %c0_i32_0 = arith.constant 0 : i32
    %c0_i32_1 = arith.constant 0 : i32
    %c0_i32_2 = arith.constant 0 : i32
    return %c0_i32, %c0_i32_0, %c0_i32_1 : i32, i32, i32
  }
  func.func @transform_8(%arg0: i32) -> (i32, i32, i32) {
    %c0_i32 = arith.constant 0 : i32
    %c0_i32_0 = arith.constant 0 : i32
    %c0_i32_1 = arith.constant 0 : i32
    %c0_i32_2 = arith.constant 0 : i32
    return %c0_i32, %c0_i32_0, %c0_i32_1 : i32, i32, i32
  }
  func.func @transform_9(%arg0: i32) -> (i32, i32, i32) {
    %c0_i32 = arith.constant 0 : i32
    %c0_i32_0 = arith.constant 0 : i32
    %c0_i32_1 = arith.constant 0 : i32
    %c0_i32_2 = arith.constant 0 : i32
    return %c0_i32, %c0_i32_0, %c0_i32_1 : i32, i32, i32
  }
  func.func @transform_10(%arg0: i32) -> (i32, i32, i32) {
    %c0_i32 = arith.constant 0 : i32
    %c0_i32_0 = arith.constant 0 : i32
    %c0_i32_1 = arith.constant 0 : i32
    %c0_i32_2 = arith.constant 0 : i32
    return %c0_i32, %c0_i32_0, %c0_i32_1 : i32, i32, i32
  }
  func.func @transform_11(%arg0: i32) -> (i32, i32, i32) {
    %c0_i32 = arith.constant 0 : i32
    %c0_i32_0 = arith.constant 0 : i32
    %c0_i32_1 = arith.constant 0 : i32
    %c0_i32_2 = arith.constant 0 : i32
    return %c0_i32, %c0_i32_0, %c0_i32_1 : i32, i32, i32
  }
  func.func @transform_12(%arg0: i32) -> (i32, i32, i32) {
    %c0_i32 = arith.constant 0 : i32
    %c0_i32_0 = arith.constant 0 : i32
    %c0_i32_1 = arith.constant 0 : i32
    %c0_i32_2 = arith.constant 0 : i32
    return %c0_i32, %c0_i32_0, %c0_i32_1 : i32, i32, i32
  }
  func.func @transform_13(%arg0: i32) -> (i32, i32, i32) {
    %c0_i32 = arith.constant 0 : i32
    %c0_i32_0 = arith.constant 0 : i32
    %c0_i32_1 = arith.constant 0 : i32
    %c0_i32_2 = arith.constant 0 : i32
    return %c0_i32, %c0_i32_0, %c0_i32_1 : i32, i32, i32
  }
  func.func @transform_14(%arg0: i32) -> (i32, i32, i32) {
    %c0_i32 = arith.constant 0 : i32
    %c0_i32_0 = arith.constant 0 : i32
    %c0_i32_1 = arith.constant 0 : i32
    %c0_i32_2 = arith.constant 0 : i32
    return %c0_i32, %c0_i32_0, %c0_i32_1 : i32, i32, i32
  }
  func.func @transform_15(%arg0: i32) -> (i32, i32, i32) {
    %c0_i32 = arith.constant 0 : i32
    %c0_i32_0 = arith.constant 0 : i32
    %c0_i32_1 = arith.constant 0 : i32
    return %arg0, %c0_i32, %c0_i32_0 : i32, i32, i32
  }
}

</mosaic_0001>

<llo_original>
// kernel: behaviour_encoder.1
$region0: #{behaviour_encoder.1}
  #allocation0 [shape = 'u32[]', space=smem, size = 0x4, offset = 0x4, fixed_abs, tag = 'smem constant byte address 0x4 - core index']
  #allocation1 [shape = 'u32[144,128]{1,0:T(1,128)}', space=vmem, size = 0x12000, scoped, tag = 'internal scratch']
  %s0 = inlined_call_operand.vmem [shape: f32[2,8,128], index: 0, kind: input, shape index: {}]
  %s1 = inlined_call_operand.vmem [shape: f32[2,1,8], index: 1, kind: input, shape index: {}]
  %s2 = inlined_call_operand.vmem [shape: f32[8,128], index: 2, kind: input, shape index: {}]
  %s3 = inlined_call_operand.hbm [shape: f32[2,128,384], index: 3, kind: input, shape index: {}]
  %s4 = inlined_call_operand.vmem [shape: f32[2,1,384], index: 4, kind: input, shape index: {}]
  %s5 = inlined_call_operand.hbm [shape: f32[2,96,128], index: 5, kind: input, shape index: {}]
  %s6 = inlined_call_operand.vmem [shape: f32[2,1,128], index: 6, kind: input, shape index: {}]
  %s7 = inlined_call_operand.vmem [shape: f32[2,1,128], index: 7, kind: input, shape index: {}]
  %s8 = inlined_call_operand.vmem [shape: f32[2,1,128], index: 8, kind: input, shape index: {}]
  %s9 = inlined_call_operand.hbm [shape: f32[2,128,128], index: 9, kind: input, shape index: {}]
  %s10 = inlined_call_operand.vmem [shape: f32[2,1,128], index: 10, kind: input, shape index: {}]
  %s11 = inlined_call_operand.hbm [shape: f32[2,128,128], index: 11, kind: input, shape index: {}]
  %s12 = inlined_call_operand.vmem [shape: f32[2,1,128], index: 12, kind: input, shape index: {}]
  %s13 = inlined_call_operand.vmem [shape: f32[2,1,128], index: 13, kind: input, shape index: {}]
  %s14 = inlined_call_operand.vmem [shape: f32[2,1,128], index: 14, kind: input, shape index: {}]
  %s15 = inlined_call_operand.hbm [shape: f32[2,8,128], index: 15, kind: output, shape index: {}]
  %s16 = sld [smem:[#allocation0]]
  $region109: #{behaviour_encoder.1} parent=0
    _
  %s18 = ssub.s32 1, %s16
  %s19 = scalar_select 0, %s18, %s16
  $region1: #{behaviour_encoder.1} parent=0
    #allocation2 [shape = 'u8[393216]{0}', space=vmem, size = 0x60000, scoped, tag = 'input window, operand 3, single buffered']
    #allocation3 [shape = 's32[2]{0}', space=sflag, size = 0x8, scoped, tag = 'scoped memory for behaviour_encoder.1']
    #allocation4 [shape = 's32[2]{0}', space=sflag, size = 0x8, scoped, tag = 'scoped memory for behaviour_encoder.1']
    #allocation5 [shape = 'u8[98304]{0}', space=vmem, size = 0x18000, scoped, tag = 'input window, operand 5, single buffered']
    #allocation6 [shape = 's32[1]{0}', space=sflag, size = 0x4, scoped, tag = 'scoped memory for behaviour_encoder.1']
    #allocation7 [shape = 'u8[131072]{0}', space=vmem, size = 0x20000, scoped, tag = 'input window, operand 9, single buffered']
    #allocation8 [shape = 'u8[131072]{0}', space=vmem, size = 0x20000, scoped, tag = 'input window, operand 11, single buffered']
    #allocation9 [shape = 's32[1]{0}', space=sflag, size = 0x4, scoped, tag = 'scoped memory for behaviour_encoder.1']
    #allocation10 [shape = 'u8[8192]{0}', space=vmem, size = 0x2000, scoped, tag = 'output window, operand 0']
    %20 = vsyncpa [#allocation3], 0
    %21 = vsyncpa [#allocation6], 0
    %22 = vsyncpa [#allocation9], 0
    %23 = vsyncpa [#allocation4], 0
    %s24 = scalar_lea.sflag [#allocation4], 1
    %25 = vsyncpa %s24, 0
    loop: start=0, step=1, limit=4
    $region2: #{behaviour_encoder.1} parent=1 // loop_pre_header
      _
    $region3: #{behaviour_encoder.1} parent=1 // loop_header
      %s27 = sphi 0, %s31
      %p28 = scmp.ge.s32.totalorder %s27, 4
      %s37 = sphi 0, %s39
      %s40 = sphi 0, %s37
      %s41 = sphi 0, %s40
      %s57 = sphi 0, %s41
      %s63 = sphi 0, %s65
      %s66 = sphi 0, %s63
      %s67 = sphi 0, %s66
      %s83 = sphi 0, %s67
      %s87 = sphi 0, %s87
      %s89 = sphi 0, %s87
      %s90 = sphi 0, %s89
      %s104 = sphi 0, %s90
      %s108 = sphi 0, %s108
      %s110 = sphi 0, %s108
      %s111 = sphi 0, %s110
      %s125 = sphi 0, %s111
      %s129 = sphi 0, %s129
      %s131 = sphi 0, %s129
      %s132 = sphi 0, %s131
      %s146 = sphi 0, %s132
      %s150 = sphi 0, %s150
      %s152 = sphi 0, %s150
      %s153 = sphi 0, %s152
      %s167 = sphi 0, %s153
      %s171 = sphi 0, %s171
      %s173 = sphi 0, %s171
      %s174 = sphi 0, %s173
      %s188 = sphi 0, %s174
      %s192 = sphi 0, %s192
      %s194 = sphi 0, %s192
      %s195 = sphi 0, %s194
      %s209 = sphi 0, %s195
      %s213 = sphi 0, %s213
      %s215 = sphi 0, %s213
      %s216 = sphi 0, %s215
      %s230 = sphi 0, %s216
      %s234 = sphi 0, %s234
      %s236 = sphi 0, %s234
      %s237 = sphi 0, %s236
      %s251 = sphi 0, %s237
      %s255 = sphi 0, %s255
      %s257 = sphi 0, %s255
      %s258 = sphi 0, %s257
      %s272 = sphi 0, %s258
      %s276 = sphi 0, %s276
      %s278 = sphi 0, %s276
      %s279 = sphi 0, %s278
      %s293 = sphi 0, %s279
      %s297 = sphi 0, %s297
      %s299 = sphi 0, %s297
      %s300 = sphi 0, %s299
      %s314 = sphi 0, %s300
      %s318 = sphi 0, %s318
      %s320 = sphi 0, %s318
      %s321 = sphi 0, %s320
      %s335 = sphi 0, %s321
      %s339 = sphi 0, %s339
      %s341 = sphi 0, %s339
      %s342 = sphi 0, %s341
      %s356 = sphi 0, %s342
      %s362 = sphi 0, %s364
      %s365 = sphi 0, %s362
      %s366 = sphi 0, %s365
      %s382 = sphi 0, %s366
    $region4: #{behaviour_encoder.1} parent=1 // loop_header_branch
      %30 = sbr.rel (%p28) target = $region8
    $region5: #{behaviour_encoder.1} parent=1 // loop_body
      %s32 = ssub.s32 %s27, 1
      %s33 = ssub.s32 %s27, 2
      %s34 = sadd.s32 %s27, 1
      %s35 = ssub.s32 %s27, %s34
      %p36 = scmp.eq.s32.totalorder %s35, 0
      %s38 = sadd.s32 %s37, 1
      %s39 = scalar_select %p36, %s37, %s38
      %p42 = pneg %p36
      %p43 = scmp.eq.s32.totalorder %s27, 1
      %p44 = por %p42, %p43
      %p45 = scmp.ne.s32.totalorder %s37, %s40
      %p46 = scmp.eq.s32.totalorder %s27, 0
      %p47 = por %p45, %p46
      %p48 = scmp.ne.s32.totalorder %s37, %s40
      %p49 = scmp.eq.s32.totalorder %s32, 1
      %p50 = por %p48, %p49
      %p51 = scmp.ne.s32.totalorder %s40, %s41
      %p52 = scmp.eq.s32.totalorder %s32, 0
      %p53 = por %p51, %p52
      %p54 = scmp.ne.s32.totalorder %s40, %s41
      %p55 = scmp.eq.s32.totalorder %s33, 1
      %p56 = por %p54, %p55
      %p58 = scmp.ne.s32.totalorder %s41, %s57
      %p59 = scmp.eq.s32.totalorder %s33, 0
      %p60 = por %p58, %p59
      %s61 = ssub.s32 %s27, %s34
      %p62 = scmp.eq.s32.totalorder %s61, 0
      %s64 = sadd.s32 %s63, 1
      %s65 = scalar_select %p62, %s63, %s64
      %p68 = pneg %p62
      %p69 = scmp.eq.s32.totalorder %s27, 1
      %p70 = por %p68, %p69
      %p71 = scmp.ne.s32.totalorder %s63, %s66
      %p72 = scmp.eq.s32.totalorder %s27, 0
      %p73 = por %p71, %p72
      %p74 = scmp.ne.s32.totalorder %s63, %s66
      %p75 = scmp.eq.s32.totalorder %s32, 1
      %p76 = por %p74, %p75
      %p77 = scmp.ne.s32.totalorder %s66, %s67
      %p78 = scmp.eq.s32.totalorder %s32, 0
      %p79 = por %p77, %p78
      %p80 = scmp.ne.s32.totalorder %s66, %s67
      %p81 = scmp.eq.s32.totalorder %s33, 1
      %p82 = por %p80, %p81
      %p84 = scmp.ne.s32.totalorder %s67, %s83
      %p85 = scmp.eq.s32.totalorder %s33, 0
      %p86 = por %p84, %p85
      %s88 = sadd.s32 %s87, 1
      %p91 = scmp.eq.s32.totalorder %s27, 1
      %p92 = scmp.ne.s32.totalorder %s87, %s89
      %p93 = scmp.eq.s32.totalorder %s27, 0
      %p94 = por %p92, %p93
      %p95 = scmp.ne.s32.totalorder %s87, %s89
      %p96 = scmp.eq.s32.totalorder %s32, 1
      %p97 = por %p95, %p96
      %p98 = scmp.ne.s32.totalorder %s89, %s90
      %p99 = scmp.eq.s32.totalorder %s32, 0
      %p100 = por %p98, %p99
      %p101 = scmp.ne.s32.totalorder %s89, %s90
      %p102 = scmp.eq.s32.totalorder %s33, 1
      %p103 = por %p101, %p102
      %p105 = scmp.ne.s32.totalorder %s90, %s104
      %p106 = scmp.eq.s32.totalorder %s33, 0
      %p107 = por %p105, %p106
      %s109 = sadd.s32 %s108, 1
      %p112 = scmp.eq.s32.totalorder %s27, 1
      %p113 = scmp.ne.s32.totalorder %s108, %s110
      %p114 = scmp.eq.s32.totalorder %s27, 0
      %p115 = por %p113, %p114
      %p116 = scmp.ne.s32.totalorder %s108, %s110
      %p117 = scmp.eq.s32.totalorder %s32, 1
      %p118 = por %p116, %p117
      %p119 = scmp.ne.s32.totalorder %s110, %s111
      %p120 = scmp.eq.s32.totalorder %s32, 0
      %p121 = por %p119, %p120
      %p122 = scmp.ne.s32.totalorder %s110, %s111
      %p123 = scmp.eq.s32.totalorder %s33, 1
      %p124 = por %p122, %p123
      %p126 = scmp.ne.s32.totalorder %s111, %s125
      %p127 = scmp.eq.s32.totalorder %s33, 0
      %p128 = por %p126, %p127
      %s130 = sadd.s32 %s129, 1
      %p133 = scmp.eq.s32.totalorder %s27, 1
      %p134 = scmp.ne.s32.totalorder %s129, %s131
      %p135 = scmp.eq.s32.totalorder %s27, 0
      %p136 = por %p134, %p135
      %p137 = scmp.ne.s32.totalorder %s129, %s131
      %p138 = scmp.eq.s32.totalorder %s32, 1
      %p139 = por %p137, %p138
      %p140 = scmp.ne.s32.totalorder %s131, %s132
      %p141 = scmp.eq.s32.totalorder %s32, 0
      %p142 = por %p140, %p141
      %p143 = scmp.ne.s32.totalorder %s131, %s132
      %p144 = scmp.eq.s32.totalorder %s33, 1
      %p145 = por %p143, %p144
      %p147 = scmp.ne.s32.totalorder %s132, %s146
      %p148 = scmp.eq.s32.totalorder %s33, 0
      %p149 = por %p147, %p148
      %s151 = sadd.s32 %s150, 1
      %p154 = scmp.eq.s32.totalorder %s27, 1
      %p155 = scmp.ne.s32.totalorder %s150, %s152
      %p156 = scmp.eq.s32.totalorder %s27, 0
      %p157 = por %p155, %p156
      %p158 = scmp.ne.s32.totalorder %s150, %s152
      %p159 = scmp.eq.s32.totalorder %s32, 1
      %p160 = por %p158, %p159
      %p161 = scmp.ne.s32.totalorder %s152, %s153
      %p162 = scmp.eq.s32.totalorder %s32, 0
      %p163 = por %p161, %p162
      %p164 = scmp.ne.s32.totalorder %s152, %s153
      %p165 = scmp.eq.s32.totalorder %s33, 1
      %p166 = por %p164, %p165
      %p168 = scmp.ne.s32.totalorder %s153, %s167
      %p169 = scmp.eq.s32.totalorder %s33, 0
      %p170 = por %p168, %p169
      %s172 = sadd.s32 %s171, 1
      %p175 = scmp.eq.s32.totalorder %s27, 1
      %p176 = scmp.ne.s32.totalorder %s171, %s173
      %p177 = scmp.eq.s32.totalorder %s27, 0
      %p178 = por %p176, %p177
      %p179 = scmp.ne.s32.totalorder %s171, %s173
      %p180 = scmp.eq.s32.totalorder %s32, 1
      %p181 = por %p179, %p180
      %p182 = scmp.ne.s32.totalorder %s173, %s174
      %p183 = scmp.eq.s32.totalorder %s32, 0
      %p184 = por %p182, %p183
      %p185 = scmp.ne.s32.totalorder %s173, %s174
      %p186 = scmp.eq.s32.totalorder %s33, 1
      %p187 = por %p185, %p186
      %p189 = scmp.ne.s32.totalorder %s174, %s188
      %p190 = scmp.eq.s32.totalorder %s33, 0
      %p191 = por %p189, %p190
      %s193 = sadd.s32 %s192, 1
      %p196 = scmp.eq.s32.totalorder %s27, 1
      %p197 = scmp.ne.s32.totalorder %s192, %s194
      %p198 = scmp.eq.s32.totalorder %s27, 0
      %p199 = por %p197, %p198
      %p200 = scmp.ne.s32.totalorder %s192, %s194
      %p201 = scmp.eq.s32.totalorder %s32, 1
      %p202 = por %p200, %p201
      %p203 = scmp.ne.s32.totalorder %s194, %s195
      %p204 = scmp.eq.s32.totalorder %s32, 0
      %p205 = por %p203, %p204
      %p206 = scmp.ne.s32.totalorder %s194, %s195
      %p207 = scmp.eq.s32.totalorder %s33, 1
      %p208 = por %p206, %p207
      %p210 = scmp.ne.s32.totalorder %s195, %s209
      %p211 = scmp.eq.s32.totalorder %s33, 0
      %p212 = por %p210, %p211
      %s214 = sadd.s32 %s213, 1
      %p217 = scmp.eq.s32.totalorder %s27, 1
      %p218 = scmp.ne.s32.totalorder %s213, %s215
      %p219 = scmp.eq.s32.totalorder %s27, 0
      %p220 = por %p218, %p219
      %p221 = scmp.ne.s32.totalorder %s213, %s215
      %p222 = scmp.eq.s32.totalorder %s32, 1
      %p223 = por %p221, %p222
      %p224 = scmp.ne.s32.totalorder %s215, %s216
      %p225 = scmp.eq.s32.totalorder %s32, 0
      %p226 = por %p224, %p225
      %p227 = scmp.ne.s32.totalorder %s215, %s216
      %p228 = scmp.eq.s32.totalorder %s33, 1
      %p229 = por %p227, %p228
      %p231 = scmp.ne.s32.totalorder %s216, %s230
      %p232 = scmp.eq.s32.totalorder %s33, 0
      %p233 = por %p231, %p232
      %s235 = sadd.s32 %s234, 1
      %p238 = scmp.eq.s32.totalorder %s27, 1
      %p239 = scmp.ne.s32.totalorder %s234, %s236
      %p240 = scmp.eq.s32.totalorder %s27, 0
      %p241 = por %p239, %p240
      %p242 = scmp.ne.s32.totalorder %s234, %s236
      %p243 = scmp.eq.s32.totalorder %s32, 1
      %p244 = por %p242, %p243
      %p245 = scmp.ne.s32.totalorder %s236, %s237
      %p246 = scmp.eq.s32.totalorder %s32, 0
      %p247 = por %p245, %p246
      %p248 = scmp.ne.s32.totalorder %s236, %s237
      %p249 = scmp.eq.s32.totalorder %s33, 1
      %p250 = por %p248, %p249
      %p252 = scmp.ne.s32.totalorder %s237, %s251
      %p253 = scmp.eq.s32.totalorder %s33, 0
      %p254 = por %p252, %p253
      %s256 = sadd.s32 %s255, 1
      %p259 = scmp.eq.s32.totalorder %s27, 1
      %p260 = scmp.ne.s32.totalorder %s255, %s257
      %p261 = scmp.eq.s32.totalorder %s27, 0
      %p262 = por %p260, %p261
      %p263 = scmp.ne.s32.totalorder %s255, %s257
      %p264 = scmp.eq.s32.totalorder %s32, 1
      %p265 = por %p263, %p264
      %p266 = scmp.ne.s32.totalorder %s257, %s258
      %p267 = scmp.eq.s32.totalorder %s32, 0
      %p268 = por %p266, %p267
      %p269 = scmp.ne.s32.totalorder %s257, %s258
      %p270 = scmp.eq.s32.totalorder %s33, 1
      %p271 = por %p269, %p270
      %p273 = scmp.ne.s32.totalorder %s258, %s272
      %p274 = scmp.eq.s32.totalorder %s33, 0
      %p275 = por %p273, %p274
      %s277 = sadd.s32 %s276, 1
      %p280 = scmp.eq.s32.totalorder %s27, 1
      %p281 = scmp.ne.s32.totalorder %s276, %s278
      %p282 = scmp.eq.s32.totalorder %s27, 0
      %p283 = por %p281, %p282
      %p284 = scmp.ne.s32.totalorder %s276, %s278
      %p285 = scmp.eq.s32.totalorder %s32, 1
      %p286 = por %p284, %p285
      %p287 = scmp.ne.s32.totalorder %s278, %s279
      %p288 = scmp.eq.s32.totalorder %s32, 0
      %p289 = por %p287, %p288
      %p290 = scmp.ne.s32.totalorder %s278, %s279
      %p291 = scmp.eq.s32.totalorder %s33, 1
      %p292 = por %p290, %p291
      %p294 = scmp.ne.s32.totalorder %s279, %s293
      %p295 = scmp.eq.s32.totalorder %s33, 0
      %p296 = por %p294, %p295
      %s298 = sadd.s32 %s297, 1
      %p301 = scmp.eq.s32.totalorder %s27, 1
      %p302 = scmp.ne.s32.totalorder %s297, %s299
      %p303 = scmp.eq.s32.totalorder %s27, 0
      %p304 = por %p302, %p303
      %p305 = scmp.ne.s32.totalorder %s297, %s299
      %p306 = scmp.eq.s32.totalorder %s32, 1
      %p307 = por %p305, %p306
      %p308 = scmp.ne.s32.totalorder %s299, %s300
      %p309 = scmp.eq.s32.totalorder %s32, 0
      %p310 = por %p308, %p309
      %p311 = scmp.ne.s32.totalorder %s299, %s300
      %p312 = scmp.eq.s32.totalorder %s33, 1
      %p313 = por %p311, %p312
      %p315 = scmp.ne.s32.totalorder %s300, %s314
      %p316 = scmp.eq.s32.totalorder %s33, 0
      %p317 = por %p315, %p316
      %s319 = sadd.s32 %s318, 1
      %p322 = scmp.eq.s32.totalorder %s27, 1
      %p323 = scmp.ne.s32.totalorder %s318, %s320
      %p324 = scmp.eq.s32.totalorder %s27, 0
      %p325 = por %p323, %p324
      %p326 = scmp.ne.s32.totalorder %s318, %s320
      %p327 = scmp.eq.s32.totalorder %s32, 1
      %p328 = por %p326, %p327
      %p329 = scmp.ne.s32.totalorder %s320, %s321
      %p330 = scmp.eq.s32.totalorder %s32, 0
      %p331 = por %p329, %p330
      %p332 = scmp.ne.s32.totalorder %s320, %s321
      %p333 = scmp.eq.s32.totalorder %s33, 1
      %p334 = por %p332, %p333
      %p336 = scmp.ne.s32.totalorder %s321, %s335
      %p337 = scmp.eq.s32.totalorder %s33, 0
      %p338 = por %p336, %p337
      %s340 = sadd.s32 %s339, 1
      %p343 = scmp.eq.s32.totalorder %s27, 1
      %p344 = scmp.ne.s32.totalorder %s339, %s341
      %p345 = scmp.eq.s32.totalorder %s27, 0
      %p346 = por %p344, %p345
      %p347 = scmp.ne.s32.totalorder %s339, %s341
      %p348 = scmp.eq.s32.totalorder %s32, 1
      %p349 = por %p347, %p348
      %p350 = scmp.ne.s32.totalorder %s341, %s342
      %p351 = scmp.eq.s32.totalorder %s32, 0
      %p352 = por %p350, %p351
      %p353 = scmp.ne.s32.totalorder %s341, %s342
      %p354 = scmp.eq.s32.totalorder %s33, 1
      %p355 = por %p353, %p354
      %p357 = scmp.ne.s32.totalorder %s342, %s356
      %p358 = scmp.eq.s32.totalorder %s33, 0
      %p359 = por %p357, %p358
      %s360 = ssub.s32 %s27, %s34
      %p361 = scmp.eq.s32.totalorder %s360, 0
      %s363 = sadd.s32 %s362, 1
      %s364 = scalar_select %p361, %s362, %s363
      %p367 = pneg %p361
      %p368 = scmp.eq.s32.totalorder %s27, 1
      %p369 = por %p367, %p368
      %p370 = scmp.ne.s32.totalorder %s362, %s365
      %p371 = scmp.eq.s32.totalorder %s27, 0
      %p372 = por %p370, %p371
      %p373 = scmp.ne.s32.totalorder %s362, %s365
      %p374 = scmp.eq.s32.totalorder %s32, 1
      %p375 = por %p373, %p374
      %p376 = scmp.ne.s32.totalorder %s365, %s366
      %p377 = scmp.eq.s32.totalorder %s32, 0
      %p378 = por %p376, %p377
      %p379 = scmp.ne.s32.totalorder %s365, %s366
      %p380 = scmp.eq.s32.totalorder %s33, 1
      %p381 = por %p379, %p380
      %p383 = scmp.ne.s32.totalorder %s366, %s382
      %p384 = scmp.eq.s32.totalorder %s33, 0
      %p385 = por %p383, %p384
      %p386 = scmp.le.s32.totalorder 1, %s27
      %p387 = scmp.lt.s32.totalorder %s27, 3
      %p388 = pnand %p386, %p387
      %p389 = pneg %p388
      // Predicated region
      $region9: #{behaviour_encoder.1} parent=5 // pred_check
        _
      $region10: #{behaviour_encoder.1} parent=5 // pred_check_branch
        %391 = sbr.rel (%p388) target = $region12
      $region11: #{behaviour_encoder.1} parent=5 // pred_region
        %s392 = ssub.s32 %s27, 1
        // Predicated region
        $region13: #{behaviour_encoder.1} parent=11 // pred_check
          %p393 = pneg %p100
        $region14: #{behaviour_encoder.1} parent=11 // pred_check_branch
          %395 = sbr.rel (%p393) target = $region16
        $region15: #{behaviour_encoder.1} parent=11 // pred_region
          _
        $region16: #{behaviour_encoder.1} parent=11 // pred_fallthru
          _
        // Predicated region
        $region17: #{behaviour_encoder.1} parent=11 // pred_check
          %p396 = pneg %p121
        $region18: #{behaviour_encoder.1} parent=11 // pred_check_branch
          %398 = sbr.rel (%p396) target = $region20
        $region19: #{behaviour_encoder.1} parent=11 // pred_region
          %s400 = ssub.s32 12288, 12288
          %401 = vsyncadd [#allocation3], %s400
          %s402 = sshll.u32 [#allocation2], 4
          %s403 = int_to_ptr.vmem [resolvable:$true] %s402
          %408 = dma.hbm_to_vmem [thread:$0]  %s3, 12288, %s403, [#allocation3], 384, 384, 24
        $region20: #{behaviour_encoder.1} parent=11 // pred_fallthru
          _
        // Predicated region
        $region21: #{behaviour_encoder.1} parent=11 // pred_check
          %p409 = pneg %p142
        $region22: #{behaviour_encoder.1} parent=11 // pred_check_branch
          %411 = sbr.rel (%p409) target = $region24
        $region23: #{behaviour_encoder.1} parent=11 // pred_region
          _
        $region24: #{behaviour_encoder.1} parent=11 // pred_fallthru
          _
        // Predicated region
        $region25: #{behaviour_encoder.1} parent=11 // pred_check
          %p412 = pneg %p163
        $region26: #{behaviour_encoder.1} parent=11 // pred_check_branch
          %414 = sbr.rel (%p412) target = $region28
        $region27: #{behaviour_encoder.1} parent=11 // pred_region
          %s416 = ssub.s32 3072, 3072
          %417 = vsyncadd [#allocation6], %s416
          %s418 = sshll.u32 [#allocation5], 4
          %s419 = int_to_ptr.vmem [resolvable:$true] %s418
          %424 = dma.hbm_to_vmem [thread:$0]  %s5, 3072, %s419, [#allocation6], 128, 128, 8
        $region28: #{behaviour_encoder.1} parent=11 // pred_fallthru
          _
        // Predicated region
        $region29: #{behaviour_encoder.1} parent=11 // pred_check
          %p425 = pneg %p184
        $region30: #{behaviour_encoder.1} parent=11 // pred_check_branch
          %427 = sbr.rel (%p425) target = $region32
        $region31: #{behaviour_encoder.1} parent=11 // pred_region
          _
        $region32: #{behaviour_encoder.1} parent=11 // pred_fallthru
          _
        // Predicated region
        $region33: #{behaviour_encoder.1} parent=11 // pred_check
          %p428 = pneg %p205
        $region34: #{behaviour_encoder.1} parent=11 // pred_check_branch
          %430 = sbr.rel (%p428) target = $region36
        $region35: #{behaviour_encoder.1} parent=11 // pred_region
          _
        $region36: #{behaviour_encoder.1} parent=11 // pred_fallthru
          _
        // Predicated region
        $region37: #{behaviour_encoder.1} parent=11 // pred_check
          %p431 = pneg %p226
        $region38: #{behaviour_encoder.1} parent=11 // pred_check_branch
          %433 = sbr.rel (%p431) target = $region40
        $region39: #{behaviour_encoder.1} parent=11 // pred_region
          _
        $region40: #{behaviour_encoder.1} parent=11 // pred_fallthru
          _
        // Predicated region
        $region41: #{behaviour_encoder.1} parent=11 // pred_check
          %p434 = pneg %p247
        $region42: #{behaviour_encoder.1} parent=11 // pred_check_branch
          %436 = sbr.rel (%p434) target = $region44
        $region43: #{behaviour_encoder.1} parent=11 // pred_region
          %s438 = ssub.s32 4096, 4096
          %439 = vsyncadd [#allocation6], %s438
          %s440 = sshll.u32 [#allocation7], 4
          %s441 = int_to_ptr.vmem [resolvable:$true] %s440
          %446 = dma.hbm_to_vmem [thread:$0]  %s9, 4096, %s441, [#allocation6], 128, 128, 8
        $region44: #{behaviour_encoder.1} parent=11 // pred_fallthru
          _
        // Predicated region
        $region45: #{behaviour_encoder.1} parent=11 // pred_check
          %p447 = pneg %p268
        $region46: #{behaviour_encoder.1} parent=11 // pred_check_branch
          %449 = sbr.rel (%p447) target = $region48
        $region47: #{behaviour_encoder.1} parent=11 // pred_region
          _
        $region48: #{behaviour_encoder.1} parent=11 // pred_fallthru
          _
        // Predicated region
        $region49: #{behaviour_encoder.1} parent=11 // pred_check
          %p450 = pneg %p289
        $region50: #{behaviour_encoder.1} parent=11 // pred_check_branch
          %452 = sbr.rel (%p450) target = $region52
        $region51: #{behaviour_encoder.1} parent=11 // pred_region
          %s454 = ssub.s32 4096, 4096
          %455 = vsyncadd [#allocation9], %s454
          %s456 = sshll.u32 [#allocation8], 4
          %s457 = int_to_ptr.vmem [resolvable:$true] %s456
          %462 = dma.hbm_to_vmem [thread:$0]  %s11, 4096, %s457, [#allocation9], 128, 128, 8
        $region52: #{behaviour_encoder.1} parent=11 // pred_fallthru
          _
        // Predicated region
        $region53: #{behaviour_encoder.1} parent=11 // pred_check
          %p463 = pneg %p310
        $region54: #{behaviour_encoder.1} parent=11 // pred_check_branch
          %465 = sbr.rel (%p463) target = $region56
        $region55: #{behaviour_encoder.1} parent=11 // pred_region
          _
        $region56: #{behaviour_encoder.1} parent=11 // pred_fallthru
          _
        // Predicated region
        $region57: #{behaviour_encoder.1} parent=11 // pred_check
          %p466 = pneg %p331
        $region58: #{behaviour_encoder.1} parent=11 // pred_check_branch
          %468 = sbr.rel (%p466) target = $region60
        $region59: #{behaviour_encoder.1} parent=11 // pred_region
          _
        $region60: #{behaviour_encoder.1} parent=11 // pred_fallthru
          _
        // Predicated region
        $region61: #{behaviour_encoder.1} parent=11 // pred_check
          %p469 = pneg %p352
        $region62: #{behaviour_encoder.1} parent=11 // pred_check_branch
          %471 = sbr.rel (%p469) target = $region64
        $region63: #{behaviour_encoder.1} parent=11 // pred_region
          _
        $region64: #{behaviour_encoder.1} parent=11 // pred_fallthru
          _
      $region12: #{behaviour_encoder.1} parent=5 // pred_fallthru
        _
      %p472 = scmp.lt.s32.totalorder %s27, 2
      // Predicated region
      $region65: #{behaviour_encoder.1} parent=5 // pred_check
        %p473 = pneg %p472
      $region66: #{behaviour_encoder.1} parent=5 // pred_check_branch
        %475 = sbr.rel (%p473) target = $region68
      $region67: #{behaviour_encoder.1} parent=5 // pred_region
        // Predicated region
        $region69: #{behaviour_encoder.1} parent=67 // pred_check
          %p476 = pneg %p47
        $region70: #{behaviour_encoder.1} parent=67 // pred_check_branch
          %478 = sbr.rel (%p476) target = $region72
        $region71: #{behaviour_encoder.1} parent=67 // pred_region
          %p479 = scmp.lt.s32.totalorder %s27, 1
          %s480 = scalar_select %p479, %s27, 1
          %s481 = smul.addr %s480, 8
          %s482 = scalar_lea.vmem %s0, %s481
        $region72: #{behaviour_encoder.1} parent=67 // pred_fallthru
          _
        // Predicated region
        $region73: #{behaviour_encoder.1} parent=67 // pred_check
          %p483 = pneg %p73
        $region74: #{behaviour_encoder.1} parent=67 // pred_check_branch
          %485 = sbr.rel (%p483) target = $region76
        $region75: #{behaviour_encoder.1} parent=67 // pred_region
          %p486 = scmp.lt.s32.totalorder %s27, 1
          %s487 = scalar_select %p486, %s27, 1
          %s488 = scalar_lea.vmem %s1, %s487
        $region76: #{behaviour_encoder.1} parent=67 // pred_fallthru
          _
      $region68: #{behaviour_encoder.1} parent=5 // pred_fallthru
        _
      %p489 = scmp.le.s32.totalorder 1, %s27
      %p490 = scmp.lt.s32.totalorder %s27, 3
      %p491 = pnand %p489, %p490
      %p492 = pneg %p491
      // Predicated region
      $region77: #{behaviour_encoder.1} parent=5 // pred_check
        _
      $region78: #{behaviour_encoder.1} parent=5 // pred_check_branch
        %494 = sbr.rel (%p491) target = $region80
      $region79: #{behaviour_encoder.1} parent=5 // pred_region
        %s495 = ssub.s32 %s27, 1
        // Predicated region
        $region81: #{behaviour_encoder.1} parent=79 // pred_check
          %p496 = pneg %p121
        $region82: #{behaviour_encoder.1} parent=79 // pred_check_branch
          %498 = sbr.rel (%p496) target = $region84
        $region83: #{behaviour_encoder.1} parent=79 // pred_region
          %499 = dma.done [#allocation3], 12288
        $region84: #{behaviour_encoder.1} parent=79 // pred_fallthru
          _
        // Predicated region
        $region85: #{behaviour_encoder.1} parent=79 // pred_check
          %p500 = pneg %p163
        $region86: #{behaviour_encoder.1} parent=79 // pred_check_branch
          %502 = sbr.rel (%p500) target = $region88
        $region87: #{behaviour_encoder.1} parent=79 // pred_region
          %503 = dma.done [#allocation6], 3072
        $region88: #{behaviour_encoder.1} parent=79 // pred_fallthru
          _
        // Predicated region
        $region89: #{behaviour_encoder.1} parent=79 // pred_check
          %p504 = pneg %p247
        $region90: #{behaviour_encoder.1} parent=79 // pred_check_branch
          %506 = sbr.rel (%p504) target = $region92
        $region91: #{behaviour_encoder.1} parent=79 // pred_region
          %507 = dma.done [#allocation6], 4096
        $region92: #{behaviour_encoder.1} parent=79 // pred_fallthru
          _
        // Predicated region
        $region93: #{behaviour_encoder.1} parent=79 // pred_check
          %p508 = pneg %p289
        $region94: #{behaviour_encoder.1} parent=79 // pred_check_branch
          %510 = sbr.rel (%p508) target = $region96
        $region95: #{behaviour_encoder.1} parent=79 // pred_region
          %511 = dma.done [#allocation9], 4096
        $region96: #{behaviour_encoder.1} parent=79 // pred_fallthru
          _
        %p512 = scmp.lt.s32.totalorder %s32, 1
        %s513 = scalar_select %p512, %s32, 1
        %s514 = smul.addr %s513, 8
        %s515 = scalar_lea.vmem %s0, %s514
        %p516 = pneg %p53
        %p517 = pneg %p50
        %p518 = scmp.lt.s32.totalorder %s32, 1
        %s519 = scalar_select %p518, %s32, 1
        %s520 = scalar_lea.vmem %s1, %s519
        %p521 = pneg %p79
        %p522 = pneg %p76
        %p523 = pneg %p100
        %p524 = pneg %p97
        %p525 = pneg %p121
        %p526 = pneg %p118
        %p527 = pneg %p142
        %p528 = pneg %p139
        %p529 = pneg %p163
        %p530 = pneg %p160
        %p531 = pneg %p184
        %p532 = pneg %p181
        %p533 = pneg %p205
        %p534 = pneg %p202
        %p535 = pneg %p226
        %p536 = pneg %p223
        %p537 = pneg %p247
        %p538 = pneg %p244
        %p539 = pneg %p268
        %p540 = pneg %p265
        %p541 = pneg %p289
        %p542 = pneg %p286
        %p543 = pneg %p310
        %p544 = pneg %p307
        %p545 = pneg %p331
        %p546 = pneg %p328
        %p547 = pneg %p352
        %p548 = pneg %p349
        %p549 = pneg %p378
        %p550 = pneg %p375
        %s551 = sand.u32 %s365, 1
        %s552 = scalar_lea.sflag [#allocation4], %s551
        %s553 = sand.u32 %s365, 1
        %s554 = smul.addr %s553, 8
        %s555 = scalar_lea.vmem [#allocation10], %s554
        %p556 = scmp.lt.s32.totalorder %s32, 1
        %s557 = scalar_select %p556, %s32, 1
        %s558 = smul.addr %s557, 8
        %s559 = scalar_lea.vmem %s0, %s558
        %p560 = scmp.lt.s32.totalorder %s32, 1
        %s561 = scalar_select %p560, %s32, 1
        %s562 = scalar_lea.vmem %s1, %s561
        %v563 = vld [vmem:[%s559] sm:$0xff]
        %v564 = vmul.f32 %v563, 5.7445626
        %v565 = vld [vmem:[%s2] sm:$0xff]
        %v566 = vadd.f32 %v564, %v565
        %v567 = vld [vmem:[%s562] sm:$0x1]
        %v568 = vld [vmem:[#allocation2] sm:$0xff]
        %v569 = vld [vmem:[#allocation2 + $0x8] sm:$0xff]
        %v570 = vld [vmem:[#allocation2 + $0x10] sm:$0xff]
        %v571 = vld [vmem:[#allocation2 + $0x18] sm:$0xff]
        %v572 = vld [vmem:[#allocation2 + $0x20] sm:$0xff]
        %v573 = vld [vmem:[#allocation2 + $0x28] sm:$0xff]
        %v574 = vld [vmem:[#allocation2 + $0x30] sm:$0xff]
        %v575 = vld [vmem:[#allocation2 + $0x38] sm:$0xff]
        %v576 = vld [vmem:[#allocation2 + $0x40] sm:$0xff]
        %v577 = vld [vmem:[#allocation2 + $0x48] sm:$0xff]
        %v578 = vld [vmem:[#allocation2 + $0x50] sm:$0xff]
        %v579 = vld [vmem:[#allocation2 + $0x58] sm:$0xff]
        %v580 = vld [vmem:[#allocation2 + $0x60] sm:$0xff]
        %v581 = vld [vmem:[#allocation2 + $0x68] sm:$0xff]
        %v582 = vld [vmem:[#allocation2 + $0x70] sm:$0xff]
        %v583 = vld [vmem:[#allocation2 + $0x78] sm:$0xff]
        %v584 = vld [vmem:[#allocation2 + $0x80] sm:$0xff]
        %v585 = vld [vmem:[#allocation2 + $0x88] sm:$0xff]
        %v586 = vld [vmem:[#allocation2 + $0x90] sm:$0xff]
        %v587 = vld [vmem:[#allocation2 + $0x98] sm:$0xff]
        %v588 = vld [vmem:[#allocation2 + $0xa0] sm:$0xff]
        %v589 = vld [vmem:[#allocation2 + $0xa8] sm:$0xff]
        %v590 = vld [vmem:[#allocation2 + $0xb0] sm:$0xff]
        %v591 = vld [vmem:[#allocation2 + $0xb8] sm:$0xff]
        %v592 = vld [vmem:[#allocation2 + $0xc0] sm:$0xff]
        %v593 = vld [vmem:[#allocation2 + $0xc8] sm:$0xff]
        %v594 = vld [vmem:[#allocation2 + $0xd0] sm:$0xff]
        %v595 = vld [vmem:[#allocation2 + $0xd8] sm:$0xff]
        %v596 = vld [vmem:[#allocation2 + $0xe0] sm:$0xff]
        %v597 = vld [vmem:[#allocation2 + $0xe8] sm:$0xff]
        %v598 = vld [vmem:[#allocation2 + $0xf0] sm:$0xff]
        %v599 = vld [vmem:[#allocation2 + $0xf8] sm:$0xff]
        %v600 = vld [vmem:[#allocation2 + $0x100] sm:$0xff]
        %v601 = vld [vmem:[#allocation2 + $0x108] sm:$0xff]
        %v602 = vld [vmem:[#allocation2 + $0x110] sm:$0xff]
        %v603 = vld [vmem:[#allocation2 + $0x118] sm:$0xff]
        %v604 = vld [vmem:[#allocation2 + $0x120] sm:$0xff]
        %v605 = vld [vmem:[#allocation2 + $0x128] sm:$0xff]
        %v606 = vld [vmem:[#allocation2 + $0x130] sm:$0xff]
        %v607 = vld [vmem:[#allocation2 + $0x138] sm:$0xff]
        %v608 = vld [vmem:[#allocation2 + $0x140] sm:$0xff]
        %v609 = vld [vmem:[#allocation2 + $0x148] sm:$0xff]
        %v610 = vld [vmem:[#allocation2 + $0x150] sm:$0xff]
        %v611 = vld [vmem:[#allocation2 + $0x158] sm:$0xff]
        %v612 = vld [vmem:[#allocation2 + $0x160] sm:$0xff]
        %v613 = vld [vmem:[#allocation2 + $0x168] sm:$0xff]
        %v614 = vld [vmem:[#allocation2 + $0x170] sm:$0xff]
        %v615 = vld [vmem:[#allocation2 + $0x178] sm:$0xff]
        %v616 = vld [vmem:[%s4] sm:$0x7]
        %v618 = vlaneseq
        %v619 = vshrl.u32 %v618, 7
        %v620 = vsub.s32 0, %v619
        %v621 = vrot.slane %v616, %v620
        %v622 = vlaneseq
        %v623 = vshrl.u32 %v622, 7
        %v624 = vsub.s32 1, %v623
        %v625 = vrot.slane %v616, %v624
        %v626 = vlaneseq
        %v627 = vshrl.u32 %v626, 7
        %v628 = vsub.s32 2, %v627
        %v629 = vrot.slane %v616, %v628
        %633 = vmatprep.subr.mxu0 %v569
        %634 = vmatpush1.msra.mxu0 %v568
        %635 = vmatprep.subr.mxu0 %v572
        %636 = vmatpush1.msra.mxu0 %v571
        %637 = vmatprep.subr.mxu0 %v575
        %638 = vmatpush1.msra.mxu0 %v574
        %639 = vmatprep.subr.mxu0 %v578
        %640 = vmatpush1.msra.mxu0 %v577
        %641 = vmatprep.subr.mxu0 %v581
        %642 = vmatpush1.msra.mxu0 %v580
        %643 = vmatprep.subr.mxu0 %v584
        %644 = vmatpush1.msra.mxu0 %v583
        %645 = vmatprep.subr.mxu0 %v587
        %646 = vmatpush1.msra.mxu0 %v586
        %647 = vmatprep.subr.mxu0 %v590
        %648 = vmatpush1.msra.mxu0 %v589
        %649 = vmatprep.subr.mxu0 %v593
        %650 = vmatpush1.msra.mxu0 %v592
        %651 = vmatprep.subr.mxu0 %v596
        %652 = vmatpush1.msra.mxu0 %v595
        %653 = vmatprep.subr.mxu0 %v599
        %654 = vmatpush1.msra.mxu0 %v598
        %655 = vmatprep.subr.mxu0 %v602
        %656 = vmatpush1.msra.mxu0 %v601
        %657 = vmatprep.subr.mxu0 %v605
        %658 = vmatpush1.msra.mxu0 %v604
        %659 = vmatprep.subr.mxu0 %v608
        %660 = vmatpush1.msra.mxu0 %v607
        %661 = vmatprep.subr.mxu0 %v611
        %662 = vmatpush1.msra.mxu0 %v610
        %663 = vmatprep.subr.mxu0 %v614
        %664 = vmatpush1.msra.mxu0 %v613
        %665 = vmatprep.subr.mxu0 0.0
        %666 = vmatpush1.msra.mxu0 0.0
        %667 = vmatprep.subr.mxu0 0.0
        %668 = vmatpush1.msra.mxu0 0.0
        %669 = vmatprep.subr.mxu0 0.0
        %670 = vmatpush1.msra.mxu0 0.0
        %671 = vmatprep.subr.mxu0 0.0
        %672 = vmatpush1.msra.mxu0 0.0
        %673 = vmatprep.subr.mxu0 0.0
        %674 = vmatpush1.msra.mxu0 0.0
        %675 = vmatprep.subr.mxu0 0.0
        %676 = vmatpush1.msra.mxu0 0.0
        %677 = vmatprep.subr.mxu0 0.0
        %678 = vmatpush1.msra.mxu0 0.0
        %679 = vmatprep.subr.mxu0 0.0
        %680 = vmatpush1.msra.mxu0 0.0
        %681 = vmatprep.subr.mxu0 0.0
        %682 = vmatpush1.msra.mxu0 0.0
        %683 = vmatprep.subr.mxu0 0.0
        %684 = vmatpush1.msra.mxu0 0.0
        %685 = vmatprep.subr.mxu0 0.0
        %686 = vmatpush1.msra.mxu0 0.0
        %687 = vmatprep.subr.mxu0 0.0
        %688 = vmatpush1.msra.mxu0 0.0
        %689 = vmatprep.subr.mxu0 0.0
        %690 = vmatpush1.msra.mxu0 0.0
        %691 = vmatprep.subr.mxu0 0.0
        %692 = vmatpush1.msra.mxu0 0.0
        %693 = vmatprep.subr.mxu0 0.0
        %694 = vmatpush1.msra.mxu0 0.0
        %695 = vmatprep.subr.mxu0 0.0
        %696 = vmatpush1.msra.mxu0 0.0
        %697 = vmatprep.mubr.f32.mxu0 0.0
        %698 = vmatmul.mubr.f32.gmra.mrb[0].mxu0 %v566
        %v699 = vpop.f32.mrb[0].mxu0
        %v700 = vadd.f32 %v621, %v699
        %v701 = vpop.f32.mrb[0].mxu0
        %v702 = vadd.f32 %v625, %v701
        %703 = vdwg.mxu0
        %704 = vmatprep.subr.mxu0 0.0
        %705 = vmatpush1.msra.mxu0 %v570
        %706 = vmatprep.subr.mxu0 0.0
        %707 = vmatpush1.msra.mxu0 %v573
        %708 = vmatprep.subr.mxu0 0.0
        %709 = vmatpush1.msra.mxu0 %v576
        %710 = vmatprep.subr.mxu0 0.0
        %711 = vmatpush1.msra.mxu0 %v579
        %712 = vmatprep.subr.mxu0 0.0
        %713 = vmatpush1.msra.mxu0 %v582
        %714 = vmatprep.subr.mxu0 0.0
        %715 = vmatpush1.msra.mxu0 %v585
        %716 = vmatprep.subr.mxu0 0.0
        %717 = vmatpush1.msra.mxu0 %v588
        %718 = vmatprep.subr.mxu0 0.0
        %719 = vmatpush1.msra.mxu0 %v591
        %720 = vmatprep.subr.mxu0 0.0
        %721 = vmatpush1.msra.mxu0 %v594
        %722 = vmatprep.subr.mxu0 0.0
        %723 = vmatpush1.msra.mxu0 %v597
        %724 = vmatprep.subr.mxu0 0.0
        %725 = vmatpush1.msra.mxu0 %v600
        %726 = vmatprep.subr.mxu0 0.0
        %727 = vmatpush1.msra.mxu0 %v603
        %728 = vmatprep.subr.mxu0 0.0
        %729 = vmatpush1.msra.mxu0 %v606
        %730 = vmatprep.subr.mxu0 0.0
        %731 = vmatpush1.msra.mxu0 %v609
        %732 = vmatprep.subr.mxu0 0.0
        %733 = vmatpush1.msra.mxu0 %v612
        %734 = vmatprep.subr.mxu0 0.0
        %735 = vmatpush1.msra.mxu0 %v615
        %736 = vmatprep.subr.mxu0 0.0
        %737 = vmatpush1.msra.mxu0 0.0
        %738 = vmatprep.subr.mxu0 0.0
        %739 = vmatpush1.msra.mxu0 0.0
        %740 = vmatprep.subr.mxu0 0.0
        %741 = vmatpush1.msra.mxu0 0.0
        %742 = vmatprep.subr.mxu0 0.0
        %743 = vmatpush1.msra.mxu0 0.0
        %744 = vmatprep.subr.mxu0 0.0
        %745 = vmatpush1.msra.mxu0 0.0
        %746 = vmatprep.subr.mxu0 0.0
        %747 = vmatpush1.msra.mxu0 0.0
        %748 = vmatprep.subr.mxu0 0.0
        %749 = vmatpush1.msra.mxu0 0.0
        %750 = vmatprep.subr.mxu0 0.0
        %751 = vmatpush1.msra.mxu0 0.0
        %752 = vmatprep.subr.mxu0 0.0
        %753 = vmatpush1.msra.mxu0 0.0
        %754 = vmatprep.subr.mxu0 0.0
        %755 = vmatpush1.msra.mxu0 0.0
        %756 = vmatprep.subr.mxu0 0.0
        %757 = vmatpush1.msra.mxu0 0.0
        %758 = vmatprep.subr.mxu0 0.0
        %759 = vmatpush1.msra.mxu0 0.0
        %760 = vmatprep.subr.mxu0 0.0
        %761 = vmatpush1.msra.mxu0 0.0
        %762 = vmatprep.subr.mxu0 0.0
        %763 = vmatpush1.msra.mxu0 0.0
        %764 = vmatprep.subr.mxu0 0.0
        %765 = vmatpush1.msra.mxu0 0.0
        %766 = vmatprep.subr.mxu0 0.0
        %767 = vmatpush1.msra.mxu0 0.0
        %768 = vmatprep.mubr.f32.mxu0 0.0
        %769 = vmatmul.mubr.f32.gmra.mrb[0].mxu0 %v566
        %v770 = vpop.f32.mrb[0].mxu0
        %v771 = vadd.f32 %v629, %v770
        %v772 = vpop.f32.mrb[0].mxu0
        %773 = vdwg.mxu0
        %v775 = vlaneseq
        %v776 = vshrl.u32 %v775, 7
        %v777 = vsub.s32 0, %v776
        %v778 = vrot.slane %v567, %v777
        %vm780 = vcmask 261120
        %v782 = vsel %vm780, %v700, 0
        %v785 = vsel %vm780, %v702, 0
        %787 = vmatprep.subr.mxu0 0.0
        %788 = vmatpush1.xpose.msra.mxu0 %v785
        %789 = vmatprep.subr.mxu0 0.0
        %790 = vmatpush1.xpose.msra.mxu0 0.0
        %791 = vmatprep.subr.mxu0 0.0
        %792 = vmatpush1.xpose.msra.mxu0 0.0
        %793 = vmatprep.subr.mxu0 0.0
        %794 = vmatpush1.xpose.msra.mxu0 0.0
        %795 = vmatprep.subr.mxu0 0.0
        %796 = vmatpush1.xpose.msra.mxu0 0.0
        %797 = vmatprep.subr.mxu0 0.0
        %798 = vmatpush1.xpose.msra.mxu0 0.0
        %799 = vmatprep.subr.mxu0 0.0
        %800 = vmatpush1.xpose.msra.mxu0 0.0
        %801 = vmatprep.subr.mxu0 0.0
        %802 = vmatpush1.xpose.msra.mxu0 0.0
        %803 = vmatprep.subr.mxu0 0.0
        %804 = vmatpush1.xpose.msra.mxu0 0.0
        %805 = vmatprep.subr.mxu0 0.0
        %806 = vmatpush1.xpose.msra.mxu0 0.0
        %807 = vmatprep.subr.mxu0 0.0
        %808 = vmatpush1.xpose.msra.mxu0 0.0
        %809 = vmatprep.subr.mxu0 0.0
        %810 = vmatpush1.xpose.msra.mxu0 0.0
        %811 = vmatprep.subr.mxu0 0.0
        %812 = vmatpush1.xpose.msra.mxu0 0.0
        %813 = vmatprep.subr.mxu0 0.0
        %814 = vmatpush1.xpose.msra.mxu0 0.0
        %815 = vmatprep.subr.mxu0 0.0
        %816 = vmatpush1.xpose.msra.mxu0 0.0
        %817 = vmatprep.subr.mxu0 0.0
        %818 = vmatpush1.xpose.msra.mxu0 0.0
        %819 = vmatprep.subr.mxu0 0.0
        %820 = vmatpush1.xpose.msra.mxu0 0.0
        %821 = vmatprep.subr.mxu0 0.0
        %822 = vmatpush1.xpose.msra.mxu0 0.0
        %823 = vmatprep.subr.mxu0 0.0
        %824 = vmatpush1.xpose.msra.mxu0 0.0
        %825 = vmatprep.subr.mxu0 0.0
        %826 = vmatpush1.xpose.msra.mxu0 0.0
        %827 = vmatprep.subr.mxu0 0.0
        %828 = vmatpush1.xpose.msra.mxu0 0.0
        %829 = vmatprep.subr.mxu0 0.0
        %830 = vmatpush1.xpose.msra.mxu0 0.0
        %831 = vmatprep.subr.mxu0 0.0
        %832 = vmatpush1.xpose.msra.mxu0 0.0
        %833 = vmatprep.subr.mxu0 0.0
        %834 = vmatpush1.xpose.msra.mxu0 0.0
        %835 = vmatprep.subr.mxu0 0.0
        %836 = vmatpush1.xpose.msra.mxu0 0.0
        %837 = vmatprep.subr.mxu0 0.0
        %838 = vmatpush1.xpose.msra.mxu0 0.0
        %839 = vmatprep.subr.mxu0 0.0
        %840 = vmatpush1.xpose.msra.mxu0 0.0
        %841 = vmatprep.subr.mxu0 0.0
        %842 = vmatpush1.xpose.msra.mxu0 0.0
        %843 = vmatprep.subr.mxu0 0.0
        %844 = vmatpush1.xpose.msra.mxu0 0.0
        %845 = vmatprep.subr.mxu0 0.0
        %846 = vmatpush1.xpose.msra.mxu0 0.0
        %847 = vmatprep.subr.mxu0 0.0
        %848 = vmatpush1.xpose.msra.mxu0 0.0
        %849 = vmatprep.subr.mxu0 0.0
        %850 = vmatpush1.xpose.msra.mxu0 0.0
        %851 = vmatprep.mubr.f32.mxu0 0.0
        %852 = vmatmul.mubr.f32.gmra.mrb[0].mxu0 %v782
        %v853 = vpop.f32.mrb[0].mxu0
        %v854 = vadd.f32 %v778, %v853
        %v855 = vpop.f32.mrb[0].mxu0
        %856 = vdwg.mxu0
        %vm857 = vcmask 64512
        %v858 = vsel %vm857, %v854, -inf
        %859 = vmax.xlane.f32.xlu0 %v858
        %v860 = vpop.xlane.xlu0 %859
        %v861 = vsub.f32 %v854, %v860
        %v862 = vmul.f32 %v861, 1.442695
        %v863 = vpow.pop %v862
        %v864 = vsel %vm857, %v863, 0.0
        %865 = vadd.xlane.f32.xlu0 %v864
        %v866 = vpop.xlane.xlu0 %865
        %v867 = vrcp.pop %v866
        %v868 = vmul.f32 %v863, %v867
        %v870 = vsel %vm857, %v868, 0
        %872 = vmatprep.subr.mxu0 0.0
        %873 = vmatpush1.msra.mxu0 %v771
        %874 = vmatprep.subr.mxu0 0.0
        %875 = vmatpush1.msra.mxu0 0.0
        %876 = vmatprep.subr.mxu0 0.0
        %877 = vmatpush1.msra.mxu0 0.0
        %878 = vmatprep.subr.mxu0 0.0
        %879 = vmatpush1.msra.mxu0 0.0
        %880 = vmatprep.subr.mxu0 0.0
        %881 = vmatpush1.msra.mxu0 0.0
        %882 = vmatprep.subr.mxu0 0.0
        %883 = vmatpush1.msra.mxu0 0.0
        %884 = vmatprep.subr.mxu0 0.0
        %885 = vmatpush1.msra.mxu0 0.0
        %886 = vmatprep.subr.mxu0 0.0
        %887 = vmatpush1.msra.mxu0 0.0
        %888 = vmatprep.subr.mxu0 0.0
        %889 = vmatpush1.msra.mxu0 0.0
        %890 = vmatprep.subr.mxu0 0.0
        %891 = vmatpush1.msra.mxu0 0.0
        %892 = vmatprep.subr.mxu0 0.0
        %893 = vmatpush1.msra.mxu0 0.0
        %894 = vmatprep.subr.mxu0 0.0
        %895 = vmatpush1.msra.mxu0 0.0
        %896 = vmatprep.subr.mxu0 0.0
        %897 = vmatpush1.msra.mxu0 0.0
        %898 = vmatprep.subr.mxu0 0.0
        %899 = vmatpush1.msra.mxu0 0.0
        %900 = vmatprep.subr.mxu0 0.0
        %901 = vmatpush1.msra.mxu0 0.0
        %902 = vmatprep.subr.mxu0 0.0
        %903 = vmatpush1.msra.mxu0 0.0
        %904 = vmatprep.subr.mxu0 0.0
        %905 = vmatpush1.msra.mxu0 0.0
        %906 = vmatprep.subr.mxu0 0.0
        %907 = vmatpush1.msra.mxu0 0.0
        %908 = vmatprep.subr.mxu0 0.0
        %909 = vmatpush1.msra.mxu0 0.0
        %910 = vmatprep.subr.mxu0 0.0
        %911 = vmatpush1.msra.mxu0 0.0
        %912 = vmatprep.subr.mxu0 0.0
        %913 = vmatpush1.msra.mxu0 0.0
        %914 = vmatprep.subr.mxu0 0.0
        %915 = vmatpush1.msra.mxu0 0.0
        %916 = vmatprep.subr.mxu0 0.0
        %917 = vmatpush1.msra.mxu0 0.0
        %918 = vmatprep.subr.mxu0 0.0
        %919 = vmatpush1.msra.mxu0 0.0
        %920 = vmatprep.subr.mxu0 0.0
        %921 = vmatpush1.msra.mxu0 0.0
        %922 = vmatprep.subr.mxu0 0.0
        %923 = vmatpush1.msra.mxu0 0.0
        %924 = vmatprep.subr.mxu0 0.0
        %925 = vmatpush1.msra.mxu0 0.0
        %926 = vmatprep.subr.mxu0 0.0
        %927 = vmatpush1.msra.mxu0 0.0
        %928 = vmatprep.subr.mxu0 0.0
        %929 = vmatpush1.msra.mxu0 0.0
        %930 = vmatprep.subr.mxu0 0.0
        %931 = vmatpush1.msra.mxu0 0.0
        %932 = vmatprep.subr.mxu0 0.0
        %933 = vmatpush1.msra.mxu0 0.0
        %934 = vmatprep.subr.mxu0 0.0
        %935 = vmatpush1.msra.mxu0 0.0
        %936 = vmatprep.mubr.f32.mxu0 0.0
        %937 = vmatmul.mubr.f32.gmra.mrb[0].mxu0 %v870
        %v938 = vpop.f32.mrb[0].mxu0
        %v939 = vadd.f32 0.0, %v938
        %v940 = vpop.f32.mrb[0].mxu0
        %941 = vdwg.mxu0
        %942 = vrot.lane.b32.xlu0 %v700, 96
        %v943 = vpop.permute.xlu0 %942
        %944 = vrot.lane.b32.xlu0 %v702, 96
        %v945 = vpop.permute.xlu0 %944
        %v946 = vsel %vm780, %v943, 0
        %v948 = vsel %vm780, %v945, 0
        %950 = vmatprep.subr.mxu0 0.0
        %951 = vmatpush1.xpose.msra.mxu0 %v948
        %952 = vmatprep.subr.mxu0 0.0
        %953 = vmatpush1.xpose.msra.mxu0 0.0
        %954 = vmatprep.subr.mxu0 0.0
        %955 = vmatpush1.xpose.msra.mxu0 0.0
        %956 = vmatprep.subr.mxu0 0.0
        %957 = vmatpush1.xpose.msra.mxu0 0.0
        %958 = vmatprep.subr.mxu0 0.0
        %959 = vmatpush1.xpose.msra.mxu0 0.0
        %960 = vmatprep.subr.mxu0 0.0
        %961 = vmatpush1.xpose.msra.mxu0 0.0
        %962 = vmatprep.subr.mxu0 0.0
        %963 = vmatpush1.xpose.msra.mxu0 0.0
        %964 = vmatprep.subr.mxu0 0.0
        %965 = vmatpush1.xpose.msra.mxu0 0.0
        %966 = vmatprep.subr.mxu0 0.0
        %967 = vmatpush1.xpose.msra.mxu0 0.0
        %968 = vmatprep.subr.mxu0 0.0
        %969 = vmatpush1.xpose.msra.mxu0 0.0
        %970 = vmatprep.subr.mxu0 0.0
        %971 = vmatpush1.xpose.msra.mxu0 0.0
        %972 = vmatprep.subr.mxu0 0.0
        %973 = vmatpush1.xpose.msra.mxu0 0.0
        %974 = vmatprep.subr.mxu0 0.0
        %975 = vmatpush1.xpose.msra.mxu0 0.0
        %976 = vmatprep.subr.mxu0 0.0
        %977 = vmatpush1.xpose.msra.mxu0 0.0
        %978 = vmatprep.subr.mxu0 0.0
        %979 = vmatpush1.xpose.msra.mxu0 0.0
        %980 = vmatprep.subr.mxu0 0.0
        %981 = vmatpush1.xpose.msra.mxu0 0.0
        %982 = vmatprep.subr.mxu0 0.0
        %983 = vmatpush1.xpose.msra.mxu0 0.0
        %984 = vmatprep.subr.mxu0 0.0
        %985 = vmatpush1.xpose.msra.mxu0 0.0
        %986 = vmatprep.subr.mxu0 0.0
        %987 = vmatpush1.xpose.msra.mxu0 0.0
        %988 = vmatprep.subr.mxu0 0.0
        %989 = vmatpush1.xpose.msra.mxu0 0.0
        %990 = vmatprep.subr.mxu0 0.0
        %991 = vmatpush1.xpose.msra.mxu0 0.0
        %992 = vmatprep.subr.mxu0 0.0
        %993 = vmatpush1.xpose.msra.mxu0 0.0
        %994 = vmatprep.subr.mxu0 0.0
        %995 = vmatpush1.xpose.msra.mxu0 0.0
        %996 = vmatprep.subr.mxu0 0.0
        %997 = vmatpush1.xpose.msra.mxu0 0.0
        %998 = vmatprep.subr.mxu0 0.0
        %999 = vmatpush1.xpose.msra.mxu0 0.0
        %1000 = vmatprep.subr.mxu0 0.0
        %1001 = vmatpush1.xpose.msra.mxu0 0.0
        %1002 = vmatprep.subr.mxu0 0.0
        %1003 = vmatpush1.xpose.msra.mxu0 0.0
        %1004 = vmatprep.subr.mxu0 0.0
        %1005 = vmatpush1.xpose.msra.mxu0 0.0
        %1006 = vmatprep.subr.mxu0 0.0
        %1007 = vmatpush1.xpose.msra.mxu0 0.0
        %1008 = vmatprep.subr.mxu0 0.0
        %1009 = vmatpush1.xpose.msra.mxu0 0.0
        %1010 = vmatprep.subr.mxu0 0.0
        %1011 = vmatpush1.xpose.msra.mxu0 0.0
        %1012 = vmatprep.subr.mxu0 0.0
        %1013 = vmatpush1.xpose.msra.mxu0 0.0
        %1014 = vmatprep.mubr.f32.mxu0 0.0
        %1015 = vmatmul.mubr.f32.gmra.mrb[0].mxu0 %v946
        %v1016 = vpop.f32.mrb[0].mxu0
        %v1017 = vadd.f32 %v778, %v1016
        %v1018 = vpop.f32.mrb[0].mxu0
        %1019 = vdwg.mxu0
        %v1020 = vsel %vm857, %v1017, -inf
        %1021 = vmax.xlane.f32.xlu0 %v1020
        %v1022 = vpop.xlane.xlu0 %1021
        %v1023 = vsub.f32 %v1017, %v1022
        %v1024 = vmul.f32 %v1023, 1.442695
        %v1025 = vpow.pop %v1024
        %v1026 = vsel %vm857, %v1025, 0.0
        %1027 = vadd.xlane.f32.xlu0 %v1026
        %v1028 = vpop.xlane.xlu0 %1027
        %v1029 = vrcp.pop %v1028
        %v1030 = vmul.f32 %v1025, %v1029
        %1032 = vrot.lane.b32.xlu0 %v771, 96
        %v1033 = vpop.permute.xlu0 %1032
        %v1036 = vsel %vm857, %v1030, 0
        %1038 = vmatprep.subr.mxu0 0.0
        %1039 = vmatpush1.msra.mxu0 %v1033
        %1040 = vmatprep.subr.mxu0 0.0
        %1041 = vmatpush1.msra.mxu0 0.0
        %1042 = vmatprep.subr.mxu0 0.0
        %1043 = vmatpush1.msra.mxu0 0.0
        %1044 = vmatprep.subr.mxu0 0.0
        %1045 = vmatpush1.msra.mxu0 0.0
        %1046 = vmatprep.subr.mxu0 0.0
        %1047 = vmatpush1.msra.mxu0 0.0
        %1048 = vmatprep.subr.mxu0 0.0
        %1049 = vmatpush1.msra.mxu0 0.0
        %1050 = vmatprep.subr.mxu0 0.0
        %1051 = vmatpush1.msra.mxu0 0.0
        %1052 = vmatprep.subr.mxu0 0.0
        %1053 = vmatpush1.msra.mxu0 0.0
        %1054 = vmatprep.subr.mxu0 0.0
        %1055 = vmatpush1.msra.mxu0 0.0
        %1056 = vmatprep.subr.mxu0 0.0
        %1057 = vmatpush1.msra.mxu0 0.0
        %1058 = vmatprep.subr.mxu0 0.0
        %1059 = vmatpush1.msra.mxu0 0.0
        %1060 = vmatprep.subr.mxu0 0.0
        %1061 = vmatpush1.msra.mxu0 0.0
        %1062 = vmatprep.subr.mxu0 0.0
        %1063 = vmatpush1.msra.mxu0 0.0
        %1064 = vmatprep.subr.mxu0 0.0
        %1065 = vmatpush1.msra.mxu0 0.0
        %1066 = vmatprep.subr.mxu0 0.0
        %1067 = vmatpush1.msra.mxu0 0.0
        %1068 = vmatprep.subr.mxu0 0.0
        %1069 = vmatpush1.msra.mxu0 0.0
        %1070 = vmatprep.subr.mxu0 0.0
        %1071 = vmatpush1.msra.mxu0 0.0
        %1072 = vmatprep.subr.mxu0 0.0
        %1073 = vmatpush1.msra.mxu0 0.0
        %1074 = vmatprep.subr.mxu0 0.0
        %1075 = vmatpush1.msra.mxu0 0.0
        %1076 = vmatprep.subr.mxu0 0.0
        %1077 = vmatpush1.msra.mxu0 0.0
        %1078 = vmatprep.subr.mxu0 0.0
        %1079 = vmatpush1.msra.mxu0 0.0
        %1080 = vmatprep.subr.mxu0 0.0
        %1081 = vmatpush1.msra.mxu0 0.0
        %1082 = vmatprep.subr.mxu0 0.0
        %1083 = vmatpush1.msra.mxu0 0.0
        %1084 = vmatprep.subr.mxu0 0.0
        %1085 = vmatpush1.msra.mxu0 0.0
        %1086 = vmatprep.subr.mxu0 0.0
        %1087 = vmatpush1.msra.mxu0 0.0
        %1088 = vmatprep.subr.mxu0 0.0
        %1089 = vmatpush1.msra.mxu0 0.0
        %1090 = vmatprep.subr.mxu0 0.0
        %1091 = vmatpush1.msra.mxu0 0.0
        %1092 = vmatprep.subr.mxu0 0.0
        %1093 = vmatpush1.msra.mxu0 0.0
        %1094 = vmatprep.subr.mxu0 0.0
        %1095 = vmatpush1.msra.mxu0 0.0
        %1096 = vmatprep.subr.mxu0 0.0
        %1097 = vmatpush1.msra.mxu0 0.0
        %1098 = vmatprep.subr.mxu0 0.0
        %1099 = vmatpush1.msra.mxu0 0.0
        %1100 = vmatprep.subr.mxu0 0.0
        %1101 = vmatpush1.msra.mxu0 0.0
        %1102 = vmatprep.mubr.f32.mxu0 0.0
        %1103 = vmatmul.mubr.f32.gmra.mrb[0].mxu0 %v1036
        %v1104 = vpop.f32.mrb[0].mxu0
        %v1105 = vadd.f32 0.0, %v1104
        %v1106 = vpop.f32.mrb[0].mxu0
        %1107 = vdwg.mxu0
        %1108 = vrot.lane.b32.xlu0 %v700, 64
        %v1109 = vpop.permute.xlu0 %1108
        %1110 = vrot.lane.b32.xlu0 %v702, 64
        %v1111 = vpop.permute.xlu0 %1110
        %v1112 = vsel %vm780, %v1109, 0
        %v1114 = vsel %vm780, %v1111, 0
        %1116 = vmatprep.subr.mxu0 0.0
        %1117 = vmatpush1.xpose.msra.mxu0 %v1114
        %1118 = vmatprep.subr.mxu0 0.0
        %1119 = vmatpush1.xpose.msra.mxu0 0.0
        %1120 = vmatprep.subr.mxu0 0.0
        %1121 = vmatpush1.xpose.msra.mxu0 0.0
        %1122 = vmatprep.subr.mxu0 0.0
        %1123 = vmatpush1.xpose.msra.mxu0 0.0
        %1124 = vmatprep.subr.mxu0 0.0
        %1125 = vmatpush1.xpose.msra.mxu0 0.0
        %1126 = vmatprep.subr.mxu0 0.0
        %1127 = vmatpush1.xpose.msra.mxu0 0.0
        %1128 = vmatprep.subr.mxu0 0.0
        %1129 = vmatpush1.xpose.msra.mxu0 0.0
        %1130 = vmatprep.subr.mxu0 0.0
        %1131 = vmatpush1.xpose.msra.mxu0 0.0
        %1132 = vmatprep.subr.mxu0 0.0
        %1133 = vmatpush1.xpose.msra.mxu0 0.0
        %1134 = vmatprep.subr.mxu0 0.0
        %1135 = vmatpush1.xpose.msra.mxu0 0.0
        %1136 = vmatprep.subr.mxu0 0.0
        %1137 = vmatpush1.xpose.msra.mxu0 0.0
        %1138 = vmatprep.subr.mxu0 0.0
        %1139 = vmatpush1.xpose.msra.mxu0 0.0
        %1140 = vmatprep.subr.mxu0 0.0
        %1141 = vmatpush1.xpose.msra.mxu0 0.0
        %1142 = vmatprep.subr.mxu0 0.0
        %1143 = vmatpush1.xpose.msra.mxu0 0.0
        %1144 = vmatprep.subr.mxu0 0.0
        %1145 = vmatpush1.xpose.msra.mxu0 0.0
        %1146 = vmatprep.subr.mxu0 0.0
        %1147 = vmatpush1.xpose.msra.mxu0 0.0
        %1148 = vmatprep.subr.mxu0 0.0
        %1149 = vmatpush1.xpose.msra.mxu0 0.0
        %1150 = vmatprep.subr.mxu0 0.0
        %1151 = vmatpush1.xpose.msra.mxu0 0.0
        %1152 = vmatprep.subr.mxu0 0.0
        %1153 = vmatpush1.xpose.msra.mxu0 0.0
        %1154 = vmatprep.subr.mxu0 0.0
        %1155 = vmatpush1.xpose.msra.mxu0 0.0
        %1156 = vmatprep.subr.mxu0 0.0
        %1157 = vmatpush1.xpose.msra.mxu0 0.0
        %1158 = vmatprep.subr.mxu0 0.0
        %1159 = vmatpush1.xpose.msra.mxu0 0.0
        %1160 = vmatprep.subr.mxu0 0.0
        %1161 = vmatpush1.xpose.msra.mxu0 0.0
        %1162 = vmatprep.subr.mxu0 0.0
        %1163 = vmatpush1.xpose.msra.mxu0 0.0
        %1164 = vmatprep.subr.mxu0 0.0
        %1165 = vmatpush1.xpose.msra.mxu0 0.0
        %1166 = vmatprep.subr.mxu0 0.0
        %1167 = vmatpush1.xpose.msra.mxu0 0.0
        %1168 = vmatprep.subr.mxu0 0.0
        %1169 = vmatpush1.xpose.msra.mxu0 0.0
        %1170 = vmatprep.subr.mxu0 0.0
        %1171 = vmatpush1.xpose.msra.mxu0 0.0
        %1172 = vmatprep.subr.mxu0 0.0
        %1173 = vmatpush1.xpose.msra.mxu0 0.0
        %1174 = vmatprep.subr.mxu0 0.0
        %1175 = vmatpush1.xpose.msra.mxu0 0.0
        %1176 = vmatprep.subr.mxu0 0.0
        %1177 = vmatpush1.xpose.msra.mxu0 0.0
        %1178 = vmatprep.subr.mxu0 0.0
        %1179 = vmatpush1.xpose.msra.mxu0 0.0
        %1180 = vmatprep.mubr.f32.mxu0 0.0
        %1181 = vmatmul.mubr.f32.gmra.mrb[0].mxu0 %v1112
        %v1182 = vpop.f32.mrb[0].mxu0
        %v1183 = vadd.f32 %v778, %v1182
        %v1184 = vpop.f32.mrb[0].mxu0
        %1185 = vdwg.mxu0
        %v1186 = vsel %vm857, %v1183, -inf
        %1187 = vmax.xlane.f32.xlu0 %v1186
        %v1188 = vpop.xlane.xlu0 %1187
        %v1189 = vsub.f32 %v1183, %v1188
        %v1190 = vmul.f32 %v1189, 1.442695
        %v1191 = vpow.pop %v1190
        %v1192 = vsel %vm857, %v1191, 0.0
        %1193 = vadd.xlane.f32.xlu0 %v1192
        %v1194 = vpop.xlane.xlu0 %1193
        %v1195 = vrcp.pop %v1194
        %v1196 = vmul.f32 %v1191, %v1195
        %1197 = vrot.lane.b32.xlu0 %v771, 64
        %v1198 = vpop.permute.xlu0 %1197
        %v1201 = vsel %vm857, %v1196, 0
        %1203 = vmatprep.subr.mxu0 0.0
        %1204 = vmatpush1.msra.mxu0 %v1198
        %1205 = vmatprep.subr.mxu0 0.0
        %1206 = vmatpush1.msra.mxu0 0.0
        %1207 = vmatprep.subr.mxu0 0.0
        %1208 = vmatpush1.msra.mxu0 0.0
        %1209 = vmatprep.subr.mxu0 0.0
        %1210 = vmatpush1.msra.mxu0 0.0
        %1211 = vmatprep.subr.mxu0 0.0
        %1212 = vmatpush1.msra.mxu0 0.0
        %1213 = vmatprep.subr.mxu0 0.0
        %1214 = vmatpush1.msra.mxu0 0.0
        %1215 = vmatprep.subr.mxu0 0.0
        %1216 = vmatpush1.msra.mxu0 0.0
        %1217 = vmatprep.subr.mxu0 0.0
        %1218 = vmatpush1.msra.mxu0 0.0
        %1219 = vmatprep.subr.mxu0 0.0
        %1220 = vmatpush1.msra.mxu0 0.0
        %1221 = vmatprep.subr.mxu0 0.0
        %1222 = vmatpush1.msra.mxu0 0.0
        %1223 = vmatprep.subr.mxu0 0.0
        %1224 = vmatpush1.msra.mxu0 0.0
        %1225 = vmatprep.subr.mxu0 0.0
        %1226 = vmatpush1.msra.mxu0 0.0
        %1227 = vmatprep.subr.mxu0 0.0
        %1228 = vmatpush1.msra.mxu0 0.0
        %1229 = vmatprep.subr.mxu0 0.0
        %1230 = vmatpush1.msra.mxu0 0.0
        %1231 = vmatprep.subr.mxu0 0.0
        %1232 = vmatpush1.msra.mxu0 0.0
        %1233 = vmatprep.subr.mxu0 0.0
        %1234 = vmatpush1.msra.mxu0 0.0
        %1235 = vmatprep.subr.mxu0 0.0
        %1236 = vmatpush1.msra.mxu0 0.0
        %1237 = vmatprep.subr.mxu0 0.0
        %1238 = vmatpush1.msra.mxu0 0.0
        %1239 = vmatprep.subr.mxu0 0.0
        %1240 = vmatpush1.msra.mxu0 0.0
        %1241 = vmatprep.subr.mxu0 0.0
        %1242 = vmatpush1.msra.mxu0 0.0
        %1243 = vmatprep.subr.mxu0 0.0
        %1244 = vmatpush1.msra.mxu0 0.0
        %1245 = vmatprep.subr.mxu0 0.0
        %1246 = vmatpush1.msra.mxu0 0.0
        %1247 = vmatprep.subr.mxu0 0.0
        %1248 = vmatpush1.msra.mxu0 0.0
        %1249 = vmatprep.subr.mxu0 0.0
        %1250 = vmatpush1.msra.mxu0 0.0
        %1251 = vmatprep.subr.mxu0 0.0
        %1252 = vmatpush1.msra.mxu0 0.0
        %1253 = vmatprep.subr.mxu0 0.0
        %1254 = vmatpush1.msra.mxu0 0.0
        %1255 = vmatprep.subr.mxu0 0.0
        %1256 = vmatpush1.msra.mxu0 0.0
        %1257 = vmatprep.subr.mxu0 0.0
        %1258 = vmatpush1.msra.mxu0 0.0
        %1259 = vmatprep.subr.mxu0 0.0
        %1260 = vmatpush1.msra.mxu0 0.0
        %1261 = vmatprep.subr.mxu0 0.0
        %1262 = vmatpush1.msra.mxu0 0.0
        %1263 = vmatprep.subr.mxu0 0.0
        %1264 = vmatpush1.msra.mxu0 0.0
        %1265 = vmatprep.subr.mxu0 0.0
        %1266 = vmatpush1.msra.mxu0 0.0
        %1267 = vmatprep.mubr.f32.mxu0 0.0
        %1268 = vmatmul.mubr.f32.gmra.mrb[0].mxu0 %v1201
        %v1269 = vpop.f32.mrb[0].mxu0
        %v1270 = vadd.f32 0.0, %v1269
        %v1271 = vpop.f32.mrb[0].mxu0
        %1272 = vdwg.mxu0
        %1274 = vrot.lane.b32.xlu0 %v1105, 32
        %v1275 = vpop.permute.xlu0 %1274
        %1278 = vrot.lane.b32.xlu0 %v1270, 64
        %v1279 = vpop.permute.xlu0 %1278
        %v1281 = vsel %vm780, %v939, %v1275
        %vm1282 = vcmask 523264
        %v1283 = vsel %vm1282, %v1281, %v1279
        %v1284 = vld [vmem:[#allocation5] sm:$0xff]
        %v1285 = vld [vmem:[#allocation5 + $0x8] sm:$0xff]
        %v1286 = vld [vmem:[#allocation5 + $0x10] sm:$0xff]
        %v1287 = vld [vmem:[#allocation5 + $0x18] sm:$0xff]
        %v1288 = vld [vmem:[#allocation5 + $0x20] sm:$0xff]
        %v1289 = vld [vmem:[#allocation5 + $0x28] sm:$0xff]
        %v1290 = vld [vmem:[#allocation5 + $0x30] sm:$0xff]
        %v1291 = vld [vmem:[#allocation5 + $0x38] sm:$0xff]
        %v1292 = vld [vmem:[#allocation5 + $0x40] sm:$0xff]
        %v1293 = vld [vmem:[#allocation5 + $0x48] sm:$0xff]
        %v1294 = vld [vmem:[#allocation5 + $0x50] sm:$0xff]
        %v1295 = vld [vmem:[#allocation5 + $0x58] sm:$0xff]
        %v1296 = vld [vmem:[%s6] sm:$0x1]
        %v1298 = vlaneseq
        %v1299 = vshrl.u32 %v1298, 7
        %v1300 = vsub.s32 0, %v1299
        %v1301 = vrot.slane %v1296, %v1300
        %vm1303 = vcmask 785408
        %v1305 = vsel %vm1303, %v1283, 0
        %1307 = vmatprep.subr.mxu0 0.0
        %1308 = vmatpush1.msra.mxu0 %v1284
        %1309 = vmatprep.subr.mxu0 0.0
        %1310 = vmatpush1.msra.mxu0 %v1285
        %1311 = vmatprep.subr.mxu0 0.0
        %1312 = vmatpush1.msra.mxu0 %v1286
        %1313 = vmatprep.subr.mxu0 0.0
        %1314 = vmatpush1.msra.mxu0 %v1287
        %1315 = vmatprep.subr.mxu0 0.0
        %1316 = vmatpush1.msra.mxu0 %v1288
        %1317 = vmatprep.subr.mxu0 0.0
        %1318 = vmatpush1.msra.mxu0 %v1289
        %1319 = vmatprep.subr.mxu0 0.0
        %1320 = vmatpush1.msra.mxu0 %v1290
        %1321 = vmatprep.subr.mxu0 0.0
        %1322 = vmatpush1.msra.mxu0 %v1291
        %1323 = vmatprep.subr.mxu0 0.0
        %1324 = vmatpush1.msra.mxu0 %v1292
        %1325 = vmatprep.subr.mxu0 0.0
        %1326 = vmatpush1.msra.mxu0 %v1293
        %1327 = vmatprep.subr.mxu0 0.0
        %1328 = vmatpush1.msra.mxu0 %v1294
        %1329 = vmatprep.subr.mxu0 0.0
        %1330 = vmatpush1.msra.mxu0 %v1295
        %1331 = vmatprep.subr.mxu0 0.0
        %1332 = vmatpush1.msra.mxu0 0.0
        %1333 = vmatprep.subr.mxu0 0.0
        %1334 = vmatpush1.msra.mxu0 0.0
        %1335 = vmatprep.subr.mxu0 0.0
        %1336 = vmatpush1.msra.mxu0 0.0
        %1337 = vmatprep.subr.mxu0 0.0
        %1338 = vmatpush1.msra.mxu0 0.0
        %1339 = vmatprep.subr.mxu0 0.0
        %1340 = vmatpush1.msra.mxu0 0.0
        %1341 = vmatprep.subr.mxu0 0.0
        %1342 = vmatpush1.msra.mxu0 0.0
        %1343 = vmatprep.subr.mxu0 0.0
        %1344 = vmatpush1.msra.mxu0 0.0
        %1345 = vmatprep.subr.mxu0 0.0
        %1346 = vmatpush1.msra.mxu0 0.0
        %1347 = vmatprep.subr.mxu0 0.0
        %1348 = vmatpush1.msra.mxu0 0.0
        %1349 = vmatprep.subr.mxu0 0.0
        %1350 = vmatpush1.msra.mxu0 0.0
        %1351 = vmatprep.subr.mxu0 0.0
        %1352 = vmatpush1.msra.mxu0 0.0
        %1353 = vmatprep.subr.mxu0 0.0
        %1354 = vmatpush1.msra.mxu0 0.0
        %1355 = vmatprep.subr.mxu0 0.0
        %1356 = vmatpush1.msra.mxu0 0.0
        %1357 = vmatprep.subr.mxu0 0.0
        %1358 = vmatpush1.msra.mxu0 0.0
        %1359 = vmatprep.subr.mxu0 0.0
        %1360 = vmatpush1.msra.mxu0 0.0
        %1361 = vmatprep.subr.mxu0 0.0
        %1362 = vmatpush1.msra.mxu0 0.0
        %1363 = vmatprep.subr.mxu0 0.0
        %1364 = vmatpush1.msra.mxu0 0.0
        %1365 = vmatprep.subr.mxu0 0.0
        %1366 = vmatpush1.msra.mxu0 0.0
        %1367 = vmatprep.subr.mxu0 0.0
        %1368 = vmatpush1.msra.mxu0 0.0
        %1369 = vmatprep.subr.mxu0 0.0
        %1370 = vmatpush1.msra.mxu0 0.0
        %1371 = vmatprep.mubr.f32.mxu0 0.0
        %1372 = vmatmul.mubr.f32.gmra.mrb[0].mxu0 %v1305
        %v1373 = vpop.f32.mrb[0].mxu0
        %v1374 = vadd.f32 %v1301, %v1373
        %v1375 = vpop.f32.mrb[0].mxu0
        %1376 = vdwg.mxu0
        %v1377 = vadd.f32 %v566, %v1374
        %1378 = vadd.xlane.f32.xlu0 %v1377
        %v1379 = vpop.xlane.xlu0 %1378
        %v1380 = vmul.f32 %v1379, 0.030303031
        %v1381 = vmul.f32 %v1377, %v1377
        %1382 = vadd.xlane.f32.xlu0 %v1381
        %v1383 = vpop.xlane.xlu0 %1382
        %v1384 = vmul.f32 %v1383, 0.030303031
        %v1385 = vmul.f32 %v1380, %v1380
        %v1386 = vsub.f32 %v1384, %v1385
        %v1387 = vsub.f32 %v1377, %v1380
        %v1388 = vadd.f32 %v1386, 1e-05
        %v1389 = vrsqrt.pop %v1388
        %v1390 = vmul.f32 %v1387, %v1389
        %v1391 = vld [vmem:[%s7] sm:$0x1]
        %v1393 = vlaneseq
        %v1394 = vshrl.u32 %v1393, 7
        %v1395 = vsub.s32 0, %v1394
        %v1396 = vrot.slane %v1391, %v1395
        %v1398 = vmul.f32 %v1390, %v1396
        %v1399 = vld [vmem:[%s8] sm:$0x1]
        %v1401 = vlaneseq
        %v1402 = vshrl.u32 %v1401, 7
        %v1403 = vsub.s32 0, %v1402
        %v1404 = vrot.slane %v1399, %v1403
        %v1406 = vadd.f32 %v1398, %v1404
        %v1407 = vld [vmem:[#allocation7] sm:$0xff]
        %v1408 = vld [vmem:[#allocation7 + $0x8] sm:$0xff]
        %v1409 = vld [vmem:[#allocation7 + $0x10] sm:$0xff]
        %v1410 = vld [vmem:[#allocation7 + $0x18] sm:$0xff]
        %v1411 = vld [vmem:[#allocation7 + $0x20] sm:$0xff]
        %v1412 = vld [vmem:[#allocation7 + $0x28] sm:$0xff]
        %v1413 = vld [vmem:[#allocation7 + $0x30] sm:$0xff]
        %v1414 = vld [vmem:[#allocation7 + $0x38] sm:$0xff]
        %v1415 = vld [vmem:[#allocation7 + $0x40] sm:$0xff]
        %v1416 = vld [vmem:[#allocation7 + $0x48] sm:$0xff]
        %v1417 = vld [vmem:[#allocation7 + $0x50] sm:$0xff]
        %v1418 = vld [vmem:[#allocation7 + $0x58] sm:$0xff]
        %v1419 = vld [vmem:[#allocation7 + $0x60] sm:$0xff]
        %v1420 = vld [vmem:[#allocation7 + $0x68] sm:$0xff]
        %v1421 = vld [vmem:[#allocation7 + $0x70] sm:$0xff]
        %v1422 = vld [vmem:[#allocation7 + $0x78] sm:$0xff]
        %v1423 = vld [vmem:[%s10] sm:$0x1]
        %v1425 = vlaneseq
        %v1426 = vshrl.u32 %v1425, 7
        %v1427 = vsub.s32 0, %v1426
        %v1428 = vrot.slane %v1423, %v1427
        %1430 = vmatprep.subr.mxu0 0.0
        %1431 = vmatpush1.msra.mxu0 %v1407
        %1432 = vmatprep.subr.mxu0 0.0
        %1433 = vmatpush1.msra.mxu0 %v1408
        %1434 = vmatprep.subr.mxu0 0.0
        %1435 = vmatpush1.msra.mxu0 %v1409
        %1436 = vmatprep.subr.mxu0 0.0
        %1437 = vmatpush1.msra.mxu0 %v1410
        %1438 = vmatprep.subr.mxu0 0.0
        %1439 = vmatpush1.msra.mxu0 %v1411
        %1440 = vmatprep.subr.mxu0 0.0
        %1441 = vmatpush1.msra.mxu0 %v1412
        %1442 = vmatprep.subr.mxu0 0.0
        %1443 = vmatpush1.msra.mxu0 %v1413
        %1444 = vmatprep.subr.mxu0 0.0
        %1445 = vmatpush1.msra.mxu0 %v1414
        %1446 = vmatprep.subr.mxu0 0.0
        %1447 = vmatpush1.msra.mxu0 %v1415
        %1448 = vmatprep.subr.mxu0 0.0
        %1449 = vmatpush1.msra.mxu0 %v1416
        %1450 = vmatprep.subr.mxu0 0.0
        %1451 = vmatpush1.msra.mxu0 %v1417
        %1452 = vmatprep.subr.mxu0 0.0
        %1453 = vmatpush1.msra.mxu0 %v1418
        %1454 = vmatprep.subr.mxu0 0.0
        %1455 = vmatpush1.msra.mxu0 %v1419
        %1456 = vmatprep.subr.mxu0 0.0
        %1457 = vmatpush1.msra.mxu0 %v1420
        %1458 = vmatprep.subr.mxu0 0.0
        %1459 = vmatpush1.msra.mxu0 %v1421
        %1460 = vmatprep.subr.mxu0 0.0
        %1461 = vmatpush1.msra.mxu0 %v1422
        %1462 = vmatprep.subr.mxu0 0.0
        %1463 = vmatpush1.msra.mxu0 0.0
        %1464 = vmatprep.subr.mxu0 0.0
        %1465 = vmatpush1.msra.mxu0 0.0
        %1466 = vmatprep.subr.mxu0 0.0
        %1467 = vmatpush1.msra.mxu0 0.0
        %1468 = vmatprep.subr.mxu0 0.0
        %1469 = vmatpush1.msra.mxu0 0.0
        %1470 = vmatprep.subr.mxu0 0.0
        %1471 = vmatpush1.msra.mxu0 0.0
        %1472 = vmatprep.subr.mxu0 0.0
        %1473 = vmatpush1.msra.mxu0 0.0
        %1474 = vmatprep.subr.mxu0 0.0
        %1475 = vmatpush1.msra.mxu0 0.0
        %1476 = vmatprep.subr.mxu0 0.0
        %1477 = vmatpush1.msra.mxu0 0.0
        %1478 = vmatprep.subr.mxu0 0.0
        %1479 = vmatpush1.msra.mxu0 0.0
        %1480 = vmatprep.subr.mxu0 0.0
        %1481 = vmatpush1.msra.mxu0 0.0
        %1482 = vmatprep.subr.mxu0 0.0
        %1483 = vmatpush1.msra.mxu0 0.0
        %1484 = vmatprep.subr.mxu0 0.0
        %1485 = vmatpush1.msra.mxu0 0.0
        %1486 = vmatprep.subr.mxu0 0.0
        %1487 = vmatpush1.msra.mxu0 0.0
        %1488 = vmatprep.subr.mxu0 0.0
        %1489 = vmatpush1.msra.mxu0 0.0
        %1490 = vmatprep.subr.mxu0 0.0
        %1491 = vmatpush1.msra.mxu0 0.0
        %1492 = vmatprep.subr.mxu0 0.0
        %1493 = vmatpush1.msra.mxu0 0.0
        %1494 = vmatprep.mubr.f32.mxu0 0.0
        %1495 = vmatmul.mubr.f32.gmra.mrb[0].mxu0 %v1406
        %v1496 = vpop.f32.mrb[0].mxu0
        %v1497 = vadd.f32 %v1428, %v1496
        %v1498 = vpop.f32.mrb[0].mxu0
        %1499 = vdwg.mxu0
        %v1500 = vmax.f32 %v1497, 0.0
        %v1501 = vld [vmem:[#allocation8] sm:$0xff]
        %v1502 = vld [vmem:[#allocation8 + $0x8] sm:$0xff]
        %v1503 = vld [vmem:[#allocation8 + $0x10] sm:$0xff]
        %v1504 = vld [vmem:[#allocation8 + $0x18] sm:$0xff]
        %v1505 = vld [vmem:[#allocation8 + $0x20] sm:$0xff]
        %v1506 = vld [vmem:[#allocation8 + $0x28] sm:$0xff]
        %v1507 = vld [vmem:[#allocation8 + $0x30] sm:$0xff]
        %v1508 = vld [vmem:[#allocation8 + $0x38] sm:$0xff]
        %v1509 = vld [vmem:[#allocation8 + $0x40] sm:$0xff]
        %v1510 = vld [vmem:[#allocation8 + $0x48] sm:$0xff]
        %v1511 = vld [vmem:[#allocation8 + $0x50] sm:$0xff]
        %v1512 = vld [vmem:[#allocation8 + $0x58] sm:$0xff]
        %v1513 = vld [vmem:[#allocation8 + $0x60] sm:$0xff]
        %v1514 = vld [vmem:[#allocation8 + $0x68] sm:$0xff]
        %v1515 = vld [vmem:[#allocation8 + $0x70] sm:$0xff]
        %v1516 = vld [vmem:[#allocation8 + $0x78] sm:$0xff]
        %v1517 = vld [vmem:[%s12] sm:$0x1]
        %v1519 = vlaneseq
        %v1520 = vshrl.u32 %v1519, 7
        %v1521 = vsub.s32 0, %v1520
        %v1522 = vrot.slane %v1517, %v1521
        %1524 = vmatprep.subr.mxu0 0.0
        %1525 = vmatpush1.msra.mxu0 %v1501
        %1526 = vmatprep.subr.mxu0 0.0
        %1527 = vmatpush1.msra.mxu0 %v1502
        %1528 = vmatprep.subr.mxu0 0.0
        %1529 = vmatpush1.msra.mxu0 %v1503
        %1530 = vmatprep.subr.mxu0 0.0
        %1531 = vmatpush1.msra.mxu0 %v1504
        %1532 = vmatprep.subr.mxu0 0.0
        %1533 = vmatpush1.msra.mxu0 %v1505
        %1534 = vmatprep.subr.mxu0 0.0
        %1535 = vmatpush1.msra.mxu0 %v1506
        %1536 = vmatprep.subr.mxu0 0.0
        %1537 = vmatpush1.msra.mxu0 %v1507
        %1538 = vmatprep.subr.mxu0 0.0
        %1539 = vmatpush1.msra.mxu0 %v1508
        %1540 = vmatprep.subr.mxu0 0.0
        %1541 = vmatpush1.msra.mxu0 %v1509
        %1542 = vmatprep.subr.mxu0 0.0
        %1543 = vmatpush1.msra.mxu0 %v1510
        %1544 = vmatprep.subr.mxu0 0.0
        %1545 = vmatpush1.msra.mxu0 %v1511
        %1546 = vmatprep.subr.mxu0 0.0
        %1547 = vmatpush1.msra.mxu0 %v1512
        %1548 = vmatprep.subr.mxu0 0.0
        %1549 = vmatpush1.msra.mxu0 %v1513
        %1550 = vmatprep.subr.mxu0 0.0
        %1551 = vmatpush1.msra.mxu0 %v1514
        %1552 = vmatprep.subr.mxu0 0.0
        %1553 = vmatpush1.msra.mxu0 %v1515
        %1554 = vmatprep.subr.mxu0 0.0
        %1555 = vmatpush1.msra.mxu0 %v1516
        %1556 = vmatprep.subr.mxu0 0.0
        %1557 = vmatpush1.msra.mxu0 0.0
        %1558 = vmatprep.subr.mxu0 0.0
        %1559 = vmatpush1.msra.mxu0 0.0
        %1560 = vmatprep.subr.mxu0 0.0
        %1561 = vmatpush1.msra.mxu0 0.0
        %1562 = vmatprep.subr.mxu0 0.0
        %1563 = vmatpush1.msra.mxu0 0.0
        %1564 = vmatprep.subr.mxu0 0.0
        %1565 = vmatpush1.msra.mxu0 0.0
        %1566 = vmatprep.subr.mxu0 0.0
        %1567 = vmatpush1.msra.mxu0 0.0
        %1568 = vmatprep.subr.mxu0 0.0
        %1569 = vmatpush1.msra.mxu0 0.0
        %1570 = vmatprep.subr.mxu0 0.0
        %1571 = vmatpush1.msra.mxu0 0.0
        %1572 = vmatprep.subr.mxu0 0.0
        %1573 = vmatpush1.msra.mxu0 0.0
        %1574 = vmatprep.subr.mxu0 0.0
        %1575 = vmatpush1.msra.mxu0 0.0
        %1576 = vmatprep.subr.mxu0 0.0
        %1577 = vmatpush1.msra.mxu0 0.0
        %1578 = vmatprep.subr.mxu0 0.0
        %1579 = vmatpush1.msra.mxu0 0.0
        %1580 = vmatprep.subr.mxu0 0.0
        %1581 = vmatpush1.msra.mxu0 0.0
        %1582 = vmatprep.subr.mxu0 0.0
        %1583 = vmatpush1.msra.mxu0 0.0
        %1584 = vmatprep.subr.mxu0 0.0
        %1585 = vmatpush1.msra.mxu0 0.0
        %1586 = vmatprep.subr.mxu0 0.0
        %1587 = vmatpush1.msra.mxu0 0.0
        %1588 = vmatprep.mubr.f32.mxu0 0.0
        %1589 = vmatmul.mubr.f32.gmra.mrb[0].mxu0 %v1500
        %v1590 = vpop.f32.mrb[0].mxu0
        %v1591 = vadd.f32 %v1522, %v1590
        %v1592 = vpop.f32.mrb[0].mxu0
        %1593 = vdwg.mxu0
        %v1594 = vadd.f32 %v1406, %v1591
        %1595 = vadd.xlane.f32.xlu0 %v1594
        %v1596 = vpop.xlane.xlu0 %1595
        %v1597 = vmul.f32 %v1596, 0.030303031
        %v1598 = vmul.f32 %v1594, %v1594
        %1599 = vadd.xlane.f32.xlu0 %v1598
        %v1600 = vpop.xlane.xlu0 %1599
        %v1601 = vmul.f32 %v1600, 0.030303031
        %v1602 = vmul.f32 %v1597, %v1597
        %v1603 = vsub.f32 %v1601, %v1602
        %v1604 = vsub.f32 %v1594, %v1597
        %v1605 = vadd.f32 %v1603, 1e-05
        %v1606 = vrsqrt.pop %v1605
        %v1607 = vmul.f32 %v1604, %v1606
        %v1608 = vld [vmem:[%s13] sm:$0x1]
        %v1610 = vlaneseq
        %v1611 = vshrl.u32 %v1610, 7
        %v1612 = vsub.s32 0, %v1611
        %v1613 = vrot.slane %v1608, %v1612
        %v1615 = vmul.f32 %v1607, %v1613
        %v1616 = vld [vmem:[%s14] sm:$0x1]
        %v1618 = vlaneseq
        %v1619 = vshrl.u32 %v1618, 7
        %v1620 = vsub.s32 0, %v1619
        %v1621 = vrot.slane %v1616, %v1620
        %v1623 = vadd.f32 %v1615, %v1621
        %s1624 = scalar_lea.vmem [#allocation2], 384
        %v1625 = vld [vmem:[%s1624] sm:$0xff]
        %v1626 = vld [vmem:[%s1624 + $0x8] sm:$0xff]
        %v1627 = vld [vmem:[%s1624 + $0x10] sm:$0xff]
        %v1628 = vld [vmem:[%s1624 + $0x18] sm:$0xff]
        %v1629 = vld [vmem:[%s1624 + $0x20] sm:$0xff]
        %v1630 = vld [vmem:[%s1624 + $0x28] sm:$0xff]
        %v1631 = vld [vmem:[%s1624 + $0x30] sm:$0xff]
        %v1632 = vld [vmem:[%s1624 + $0x38] sm:$0xff]
        %v1633 = vld [vmem:[%s1624 + $0x40] sm:$0xff]
        %v1634 = vld [vmem:[%s1624 + $0x48] sm:$0xff]
        %v1635 = vld [vmem:[%s1624 + $0x50] sm:$0xff]
        %v1636 = vld [vmem:[%s1624 + $0x58] sm:$0xff]
        %v1637 = vld [vmem:[%s1624 + $0x60] sm:$0xff]
        %v1638 = vld [vmem:[%s1624 + $0x68] sm:$0xff]
        %v1639 = vld [vmem:[%s1624 + $0x70] sm:$0xff]
        %v1640 = vld [vmem:[%s1624 + $0x78] sm:$0xff]
        %v1641 = vld [vmem:[%s1624 + $0x80] sm:$0xff]
        %v1642 = vld [vmem:[%s1624 + $0x88] sm:$0xff]
        %v1643 = vld [vmem:[%s1624 + $0x90] sm:$0xff]
        %v1644 = vld [vmem:[%s1624 + $0x98] sm:$0xff]
        %v1645 = vld [vmem:[%s1624 + $0xa0] sm:$0xff]
        %v1646 = vld [vmem:[%s1624 + $0xa8] sm:$0xff]
        %v1647 = vld [vmem:[%s1624 + $0xb0] sm:$0xff]
        %v1648 = vld [vmem:[%s1624 + $0xb8] sm:$0xff]
        %v1649 = vld [vmem:[%s1624 + $0xc0] sm:$0xff]
        %v1650 = vld [vmem:[%s1624 + $0xc8] sm:$0xff]
        %v1651 = vld [vmem:[%s1624 + $0xd0] sm:$0xff]
        %v1652 = vld [vmem:[%s1624 + $0xd8] sm:$0xff]
        %v1653 = vld [vmem:[%s1624 + $0xe0] sm:$0xff]
        %v1654 = vld [vmem:[%s1624 + $0xe8] sm:$0xff]
        %v1655 = vld [vmem:[%s1624 + $0xf0] sm:$0xff]
        %v1656 = vld [vmem:[%s1624 + $0xf8] sm:$0xff]
        %v1657 = vld [vmem:[%s1624 + $0x100] sm:$0xff]
        %v1658 = vld [vmem:[%s1624 + $0x108] sm:$0xff]
        %v1659 = vld [vmem:[%s1624 + $0x110] sm:$0xff]
        %v1660 = vld [vmem:[%s1624 + $0x118] sm:$0xff]
        %v1661 = vld [vmem:[%s1624 + $0x120] sm:$0xff]
        %v1662 = vld [vmem:[%s1624 + $0x128] sm:$0xff]
        %v1663 = vld [vmem:[%s1624 + $0x130] sm:$0xff]
        %v1664 = vld [vmem:[%s1624 + $0x138] sm:$0xff]
        %v1665 = vld [vmem:[%s1624 + $0x140] sm:$0xff]
        %v1666 = vld [vmem:[%s1624 + $0x148] sm:$0xff]
        %v1667 = vld [vmem:[%s1624 + $0x150] sm:$0xff]
        %v1668 = vld [vmem:[%s1624 + $0x158] sm:$0xff]
        %v1669 = vld [vmem:[%s1624 + $0x160] sm:$0xff]
        %v1670 = vld [vmem:[%s1624 + $0x168] sm:$0xff]
        %v1671 = vld [vmem:[%s1624 + $0x170] sm:$0xff]
        %v1672 = vld [vmem:[%s1624 + $0x178] sm:$0xff]
        %s1673 = scalar_lea.vmem %s4, 3
        %v1674 = vld [vmem:[%s1673] sm:$0x7]
        %v1676 = vlaneseq
        %v1677 = vshrl.u32 %v1676, 7
        %v1678 = vsub.s32 0, %v1677
        %v1679 = vrot.slane %v1674, %v1678
        %v1680 = vlaneseq
        %v1681 = vshrl.u32 %v1680, 7
        %v1682 = vsub.s32 1, %v1681
        %v1683 = vrot.slane %v1674, %v1682
        %v1684 = vlaneseq
        %v1685 = vshrl.u32 %v1684, 7
        %v1686 = vsub.s32 2, %v1685
        %v1687 = vrot.slane %v1674, %v1686
        %1691 = vmatprep.subr.mxu0 %v1626
        %1692 = vmatpush1.msra.mxu0 %v1625
        %1693 = vmatprep.subr.mxu0 %v1629
        %1694 = vmatpush1.msra.mxu0 %v1628
        %1695 = vmatprep.subr.mxu0 %v1632
        %1696 = vmatpush1.msra.mxu0 %v1631
        %1697 = vmatprep.subr.mxu0 %v1635
        %1698 = vmatpush1.msra.mxu0 %v1634
        %1699 = vmatprep.subr.mxu0 %v1638
        %1700 = vmatpush1.msra.mxu0 %v1637
        %1701 = vmatprep.subr.mxu0 %v1641
        %1702 = vmatpush1.msra.mxu0 %v1640
        %1703 = vmatprep.subr.mxu0 %v1644
        %1704 = vmatpush1.msra.mxu0 %v1643
        %1705 = vmatprep.subr.mxu0 %v1647
        %1706 = vmatpush1.msra.mxu0 %v1646
        %1707 = vmatprep.subr.mxu0 %v1650
        %1708 = vmatpush1.msra.mxu0 %v1649
        %1709 = vmatprep.subr.mxu0 %v1653
        %1710 = vmatpush1.msra.mxu0 %v1652
        %1711 = vmatprep.subr.mxu0 %v1656
        %1712 = vmatpush1.msra.mxu0 %v1655
        %1713 = vmatprep.subr.mxu0 %v1659
        %1714 = vmatpush1.msra.mxu0 %v1658
        %1715 = vmatprep.subr.mxu0 %v1662
        %1716 = vmatpush1.msra.mxu0 %v1661
        %1717 = vmatprep.subr.mxu0 %v1665
        %1718 = vmatpush1.msra.mxu0 %v1664
        %1719 = vmatprep.subr.mxu0 %v1668
        %1720 = vmatpush1.msra.mxu0 %v1667
        %1721 = vmatprep.subr.mxu0 %v1671
        %1722 = vmatpush1.msra.mxu0 %v1670
        %1723 = vmatprep.subr.mxu0 0.0
        %1724 = vmatpush1.msra.mxu0 0.0
        %1725 = vmatprep.subr.mxu0 0.0
        %1726 = vmatpush1.msra.mxu0 0.0
        %1727 = vmatprep.subr.mxu0 0.0
        %1728 = vmatpush1.msra.mxu0 0.0
        %1729 = vmatprep.subr.mxu0 0.0
        %1730 = vmatpush1.msra.mxu0 0.0
        %1731 = vmatprep.subr.mxu0 0.0
        %1732 = vmatpush1.msra.mxu0 0.0
        %1733 = vmatprep.subr.mxu0 0.0
        %1734 = vmatpush1.msra.mxu0 0.0
        %1735 = vmatprep.subr.mxu0 0.0
        %1736 = vmatpush1.msra.mxu0 0.0
        %1737 = vmatprep.subr.mxu0 0.0
        %1738 = vmatpush1.msra.mxu0 0.0
        %1739 = vmatprep.subr.mxu0 0.0
        %1740 = vmatpush1.msra.mxu0 0.0
        %1741 = vmatprep.subr.mxu0 0.0
        %1742 = vmatpush1.msra.mxu0 0.0
        %1743 = vmatprep.subr.mxu0 0.0
        %1744 = vmatpush1.msra.mxu0 0.0
        %1745 = vmatprep.subr.mxu0 0.0
        %1746 = vmatpush1.msra.mxu0 0.0
        %1747 = vmatprep.subr.mxu0 0.0
        %1748 = vmatpush1.msra.mxu0 0.0
        %1749 = vmatprep.subr.mxu0 0.0
        %1750 = vmatpush1.msra.mxu0 0.0
        %1751 = vmatprep.subr.mxu0 0.0
        %1752 = vmatpush1.msra.mxu0 0.0
        %1753 = vmatprep.subr.mxu0 0.0
        %1754 = vmatpush1.msra.mxu0 0.0
        %1755 = vmatprep.mubr.f32.mxu0 0.0
        %1756 = vmatmul.mubr.f32.gmra.mrb[0].mxu0 %v1623
        %v1757 = vpop.f32.mrb[0].mxu0
        %v1758 = vadd.f32 %v1679, %v1757
        %v1759 = vpop.f32.mrb[0].mxu0
        %v1760 = vadd.f32 %v1683, %v1759
        %1761 = vdwg.mxu0
        %1762 = vmatprep.subr.mxu0 0.0
        %1763 = vmatpush1.msra.mxu0 %v1627
        %1764 = vmatprep.subr.mxu0 0.0
        %1765 = vmatpush1.msra.mxu0 %v1630
        %1766 = vmatprep.subr.mxu0 0.0
        %1767 = vmatpush1.msra.mxu0 %v1633
        %1768 = vmatprep.subr.mxu0 0.0
        %1769 = vmatpush1.msra.mxu0 %v1636
        %1770 = vmatprep.subr.mxu0 0.0
        %1771 = vmatpush1.msra.mxu0 %v1639
        %1772 = vmatprep.subr.mxu0 0.0
        %1773 = vmatpush1.msra.mxu0 %v1642
        %1774 = vmatprep.subr.mxu0 0.0
        %1775 = vmatpush1.msra.mxu0 %v1645
        %1776 = vmatprep.subr.mxu0 0.0
        %1777 = vmatpush1.msra.mxu0 %v1648
        %1778 = vmatprep.subr.mxu0 0.0
        %1779 = vmatpush1.msra.mxu0 %v1651
        %1780 = vmatprep.subr.mxu0 0.0
        %1781 = vmatpush1.msra.mxu0 %v1654
        %1782 = vmatprep.subr.mxu0 0.0
        %1783 = vmatpush1.msra.mxu0 %v1657
        %1784 = vmatprep.subr.mxu0 0.0
        %1785 = vmatpush1.msra.mxu0 %v1660
        %1786 = vmatprep.subr.mxu0 0.0
        %1787 = vmatpush1.msra.mxu0 %v1663
        %1788 = vmatprep.subr.mxu0 0.0
        %1789 = vmatpush1.msra.mxu0 %v1666
        %1790 = vmatprep.subr.mxu0 0.0
        %1791 = vmatpush1.msra.mxu0 %v1669
        %1792 = vmatprep.subr.mxu0 0.0
        %1793 = vmatpush1.msra.mxu0 %v1672
        %1794 = vmatprep.subr.mxu0 0.0
        %1795 = vmatpush1.msra.mxu0 0.0
        %1796 = vmatprep.subr.mxu0 0.0
        %1797 = vmatpush1.msra.mxu0 0.0
        %1798 = vmatprep.subr.mxu0 0.0
        %1799 = vmatpush1.msra.mxu0 0.0
        %1800 = vmatprep.subr.mxu0 0.0
        %1801 = vmatpush1.msra.mxu0 0.0
        %1802 = vmatprep.subr.mxu0 0.0
        %1803 = vmatpush1.msra.mxu0 0.0
        %1804 = vmatprep.subr.mxu0 0.0
        %1805 = vmatpush1.msra.mxu0 0.0
        %1806 = vmatprep.subr.mxu0 0.0
        %1807 = vmatpush1.msra.mxu0 0.0
        %1808 = vmatprep.subr.mxu0 0.0
        %1809 = vmatpush1.msra.mxu0 0.0
        %1810 = vmatprep.subr.mxu0 0.0
        %1811 = vmatpush1.msra.mxu0 0.0
        %1812 = vmatprep.subr.mxu0 0.0
        %1813 = vmatpush1.msra.mxu0 0.0
        %1814 = vmatprep.subr.mxu0 0.0
        %1815 = vmatpush1.msra.mxu0 0.0
        %1816 = vmatprep.subr.mxu0 0.0
        %1817 = vmatpush1.msra.mxu0 0.0
        %1818 = vmatprep.subr.mxu0 0.0
        %1819 = vmatpush1.msra.mxu0 0.0
        %1820 = vmatprep.subr.mxu0 0.0
        %1821 = vmatpush1.msra.mxu0 0.0
        %1822 = vmatprep.subr.mxu0 0.0
        %1823 = vmatpush1.msra.mxu0 0.0
        %1824 = vmatprep.subr.mxu0 0.0
        %1825 = vmatpush1.msra.mxu0 0.0
        %1826 = vmatprep.mubr.f32.mxu0 0.0
        %1827 = vmatmul.mubr.f32.gmra.mrb[0].mxu0 %v1623
        %v1828 = vpop.f32.mrb[0].mxu0
        %v1829 = vadd.f32 %v1687, %v1828
        %v1830 = vpop.f32.mrb[0].mxu0
        %1831 = vdwg.mxu0
        %v1833 = vsel %vm780, %v1758, 0
        %v1836 = vsel %vm780, %v1760, 0
        %1838 = vmatprep.subr.mxu0 0.0
        %1839 = vmatpush1.xpose.msra.mxu0 %v1836
        %1840 = vmatprep.subr.mxu0 0.0
        %1841 = vmatpush1.xpose.msra.mxu0 0.0
        %1842 = vmatprep.subr.mxu0 0.0
        %1843 = vmatpush1.xpose.msra.mxu0 0.0
        %1844 = vmatprep.subr.mxu0 0.0
        %1845 = vmatpush1.xpose.msra.mxu0 0.0
        %1846 = vmatprep.subr.mxu0 0.0
        %1847 = vmatpush1.xpose.msra.mxu0 0.0
        %1848 = vmatprep.subr.mxu0 0.0
        %1849 = vmatpush1.xpose.msra.mxu0 0.0
        %1850 = vmatprep.subr.mxu0 0.0
        %1851 = vmatpush1.xpose.msra.mxu0 0.0
        %1852 = vmatprep.subr.mxu0 0.0
        %1853 = vmatpush1.xpose.msra.mxu0 0.0
        %1854 = vmatprep.subr.mxu0 0.0
        %1855 = vmatpush1.xpose.msra.mxu0 0.0
        %1856 = vmatprep.subr.mxu0 0.0
        %1857 = vmatpush1.xpose.msra.mxu0 0.0
        %1858 = vmatprep.subr.mxu0 0.0
        %1859 = vmatpush1.xpose.msra.mxu0 0.0
        %1860 = vmatprep.subr.mxu0 0.0
        %1861 = vmatpush1.xpose.msra.mxu0 0.0
        %1862 = vmatprep.subr.mxu0 0.0
        %1863 = vmatpush1.xpose.msra.mxu0 0.0
        %1864 = vmatprep.subr.mxu0 0.0
        %1865 = vmatpush1.xpose.msra.mxu0 0.0
        %1866 = vmatprep.subr.mxu0 0.0
        %1867 = vmatpush1.xpose.msra.mxu0 0.0
        %1868 = vmatprep.subr.mxu0 0.0
        %1869 = vmatpush1.xpose.msra.mxu0 0.0
        %1870 = vmatprep.subr.mxu0 0.0
        %1871 = vmatpush1.xpose.msra.mxu0 0.0
        %1872 = vmatprep.subr.mxu0 0.0
        %1873 = vmatpush1.xpose.msra.mxu0 0.0
        %1874 = vmatprep.subr.mxu0 0.0
        %1875 = vmatpush1.xpose.msra.mxu0 0.0
        %1876 = vmatprep.subr.mxu0 0.0
        %1877 = vmatpush1.xpose.msra.mxu0 0.0
        %1878 = vmatprep.subr.mxu0 0.0
        %1879 = vmatpush1.xpose.msra.mxu0 0.0
        %1880 = vmatprep.subr.mxu0 0.0
        %1881 = vmatpush1.xpose.msra.mxu0 0.0
        %1882 = vmatprep.subr.mxu0 0.0
        %1883 = vmatpush1.xpose.msra.mxu0 0.0
        %1884 = vmatprep.subr.mxu0 0.0
        %1885 = vmatpush1.xpose.msra.mxu0 0.0
        %1886 = vmatprep.subr.mxu0 0.0
        %1887 = vmatpush1.xpose.msra.mxu0 0.0
        %1888 = vmatprep.subr.mxu0 0.0
        %1889 = vmatpush1.xpose.msra.mxu0 0.0
        %1890 = vmatprep.subr.mxu0 0.0
        %1891 = vmatpush1.xpose.msra.mxu0 0.0
        %1892 = vmatprep.subr.mxu0 0.0
        %1893 = vmatpush1.xpose.msra.mxu0 0.0
        %1894 = vmatprep.subr.mxu0 0.0
        %1895 = vmatpush1.xpose.msra.mxu0 0.0
        %1896 = vmatprep.subr.mxu0 0.0
        %1897 = vmatpush1.xpose.msra.mxu0 0.0
        %1898 = vmatprep.subr.mxu0 0.0
        %1899 = vmatpush1.xpose.msra.mxu0 0.0
        %1900 = vmatprep.subr.mxu0 0.0
        %1901 = vmatpush1.xpose.msra.mxu0 0.0
        %1902 = vmatprep.mubr.f32.mxu0 0.0
        %1903 = vmatmul.mubr.f32.gmra.mrb[0].mxu0 %v1833
        %v1904 = vpop.f32.mrb[0].mxu0
        %v1905 = vadd.f32 %v778, %v1904
        %v1906 = vpop.f32.mrb[0].mxu0
        %1907 = vdwg.mxu0
        %v1908 = vsel %vm857, %v1905, -inf
        %1909 = vmax.xlane.f32.xlu0 %v1908
        %v1910 = vpop.xlane.xlu0 %1909
        %v1911 = vsub.f32 %v1905, %v1910
        %v1912 = vmul.f32 %v1911, 1.442695
        %v1913 = vpow.pop %v1912
        %v1914 = vsel %vm857, %v1913, 0.0
        %1915 = vadd.xlane.f32.xlu0 %v1914
        %v1916 = vpop.xlane.xlu0 %1915
        %v1917 = vrcp.pop %v1916
        %v1918 = vmul.f32 %v1913, %v1917
        %v1920 = vsel %vm857, %v1918, 0
        %1922 = vmatprep.subr.mxu0 0.0
        %1923 = vmatpush1.msra.mxu0 %v1829
        %1924 = vmatprep.subr.mxu0 0.0
        %1925 = vmatpush1.msra.mxu0 0.0
        %1926 = vmatprep.subr.mxu0 0.0
        %1927 = vmatpush1.msra.mxu0 0.0
        %1928 = vmatprep.subr.mxu0 0.0
        %1929 = vmatpush1.msra.mxu0 0.0
        %1930 = vmatprep.subr.mxu0 0.0
        %1931 = vmatpush1.msra.mxu0 0.0
        %1932 = vmatprep.subr.mxu0 0.0
        %1933 = vmatpush1.msra.mxu0 0.0
        %1934 = vmatprep.subr.mxu0 0.0
        %1935 = vmatpush1.msra.mxu0 0.0
        %1936 = vmatprep.subr.mxu0 0.0
        %1937 = vmatpush1.msra.mxu0 0.0
        %1938 = vmatprep.subr.mxu0 0.0
        %1939 = vmatpush1.msra.mxu0 0.0
        %1940 = vmatprep.subr.mxu0 0.0
        %1941 = vmatpush1.msra.mxu0 0.0
        %1942 = vmatprep.subr.mxu0 0.0
        %1943 = vmatpush1.msra.mxu0 0.0
        %1944 = vmatprep.subr.mxu0 0.0
        %1945 = vmatpush1.msra.mxu0 0.0
        %1946 = vmatprep.subr.mxu0 0.0
        %1947 = vmatpush1.msra.mxu0 0.0
        %1948 = vmatprep.subr.mxu0 0.0
        %1949 = vmatpush1.msra.mxu0 0.0
        %1950 = vmatprep.subr.mxu0 0.0
        %1951 = vmatpush1.msra.mxu0 0.0
        %1952 = vmatprep.subr.mxu0 0.0
        %1953 = vmatpush1.msra.mxu0 0.0
        %1954 = vmatprep.subr.mxu0 0.0
        %1955 = vmatpush1.msra.mxu0 0.0
        %1956 = vmatprep.subr.mxu0 0.0
        %1957 = vmatpush1.msra.mxu0 0.0
        %1958 = vmatprep.subr.mxu0 0.0
        %1959 = vmatpush1.msra.mxu0 0.0
        %1960 = vmatprep.subr.mxu0 0.0
        %1961 = vmatpush1.msra.mxu0 0.0
        %1962 = vmatprep.subr.mxu0 0.0
        %1963 = vmatpush1.msra.mxu0 0.0
        %1964 = vmatprep.subr.mxu0 0.0
        %1965 = vmatpush1.msra.mxu0 0.0
        %1966 = vmatprep.subr.mxu0 0.0
        %1967 = vmatpush1.msra.mxu0 0.0
        %1968 = vmatprep.subr.mxu0 0.0
        %1969 = vmatpush1.msra.mxu0 0.0
        %1970 = vmatprep.subr.mxu0 0.0
        %1971 = vmatpush1.msra.mxu0 0.0
        %1972 = vmatprep.subr.mxu0 0.0
        %1973 = vmatpush1.msra.mxu0 0.0
        %1974 = vmatprep.subr.mxu0 0.0
        %1975 = vmatpush1.msra.mxu0 0.0
        %1976 = vmatprep.subr.mxu0 0.0
        %1977 = vmatpush1.msra.mxu0 0.0
        %1978 = vmatprep.subr.mxu0 0.0
        %1979 = vmatpush1.msra.mxu0 0.0
        %1980 = vmatprep.subr.mxu0 0.0
        %1981 = vmatpush1.msra.mxu0 0.0
        %1982 = vmatprep.subr.mxu0 0.0
        %1983 = vmatpush1.msra.mxu0 0.0
        %1984 = vmatprep.subr.mxu0 0.0
        %1985 = vmatpush1.msra.mxu0 0.0
        %1986 = vmatprep.mubr.f32.mxu0 0.0
        %1987 = vmatmul.mubr.f32.gmra.mrb[0].mxu0 %v1920
        %v1988 = vpop.f32.mrb[0].mxu0
        %v1989 = vadd.f32 0.0, %v1988
        %v1990 = vpop.f32.mrb[0].mxu0
        %1991 = vdwg.mxu0
        %1992 = vrot.lane.b32.xlu0 %v1758, 96
        %v1993 = vpop.permute.xlu0 %1992
        %1994 = vrot.lane.b32.xlu0 %v1760, 96
        %v1995 = vpop.permute.xlu0 %1994
        %v1996 = vsel %vm780, %v1993, 0
        %v1998 = vsel %vm780, %v1995, 0
        %2000 = vmatprep.subr.mxu0 0.0
        %2001 = vmatpush1.xpose.msra.mxu0 %v1998
        %2002 = vmatprep.subr.mxu0 0.0
        %2003 = vmatpush1.xpose.msra.mxu0 0.0
        %2004 = vmatprep.subr.mxu0 0.0
        %2005 = vmatpush1.xpose.msra.mxu0 0.0
        %2006 = vmatprep.subr.mxu0 0.0
        %2007 = vmatpush1.xpose.msra.mxu0 0.0
        %2008 = vmatprep.subr.mxu0 0.0
        %2009 = vmatpush1.xpose.msra.mxu0 0.0
        %2010 = vmatprep.subr.mxu0 0.0
        %2011 = vmatpush1.xpose.msra.mxu0 0.0
        %2012 = vmatprep.subr.mxu0 0.0
        %2013 = vmatpush1.xpose.msra.mxu0 0.0
        %2014 = vmatprep.subr.mxu0 0.0
        %2015 = vmatpush1.xpose.msra.mxu0 0.0
        %2016 = vmatprep.subr.mxu0 0.0
        %2017 = vmatpush1.xpose.msra.mxu0 0.0
        %2018 = vmatprep.subr.mxu0 0.0
        %2019 = vmatpush1.xpose.msra.mxu0 0.0
        %2020 = vmatprep.subr.mxu0 0.0
        %2021 = vmatpush1.xpose.msra.mxu0 0.0
        %2022 = vmatprep.subr.mxu0 0.0
        %2023 = vmatpush1.xpose.msra.mxu0 0.0
        %2024 = vmatprep.subr.mxu0 0.0
        %2025 = vmatpush1.xpose.msra.mxu0 0.0
        %2026 = vmatprep.subr.mxu0 0.0
        %2027 = vmatpush1.xpose.msra.mxu0 0.0
        %2028 = vmatprep.subr.mxu0 0.0
        %2029 = vmatpush1.xpose.msra.mxu0 0.0
        %2030 = vmatprep.subr.mxu0 0.0
        %2031 = vmatpush1.xpose.msra.mxu0 0.0
        %2032 = vmatprep.subr.mxu0 0.0
        %2033 = vmatpush1.xpose.msra.mxu0 0.0
        %2034 = vmatprep.subr.mxu0 0.0
        %2035 = vmatpush1.xpose.msra.mxu0 0.0
        %2036 = vmatprep.subr.mxu0 0.0
        %2037 = vmatpush1.xpose.msra.mxu0 0.0
        %2038 = vmatprep.subr.mxu0 0.0
        %2039 = vmatpush1.xpose.msra.mxu0 0.0
        %2040 = vmatprep.subr.mxu0 0.0
        %2041 = vmatpush1.xpose.msra.mxu0 0.0
        %2042 = vmatprep.subr.mxu0 0.0
        %2043 = vmatpush1.xpose.msra.mxu0 0.0
        %2044 = vmatprep.subr.mxu0 0.0
        %2045 = vmatpush1.xpose.msra.mxu0 0.0
        %2046 = vmatprep.subr.mxu0 0.0
        %2047 = vmatpush1.xpose.msra.mxu0 0.0
        %2048 = vmatprep.subr.mxu0 0.0
        %2049 = vmatpush1.xpose.msra.mxu0 0.0
        %2050 = vmatprep.subr.mxu0 0.0
        %2051 = vmatpush1.xpose.msra.mxu0 0.0
        %2052 = vmatprep.subr.mxu0 0.0
        %2053 = vmatpush1.xpose.msra.mxu0 0.0
        %2054 = vmatprep.subr.mxu0 0.0
        %2055 = vmatpush1.xpose.msra.mxu0 0.0
        %2056 = vmatprep.subr.mxu0 0.0
        %2057 = vmatpush1.xpose.msra.mxu0 0.0
        %2058 = vmatprep.subr.mxu0 0.0
        %2059 = vmatpush1.xpose.msra.mxu0 0.0
        %2060 = vmatprep.subr.mxu0 0.0
        %2061 = vmatpush1.xpose.msra.mxu0 0.0
        %2062 = vmatprep.subr.mxu0 0.0
        %2063 = vmatpush1.xpose.msra.mxu0 0.0
        %2064 = vmatprep.mubr.f32.mxu0 0.0
        %2065 = vmatmul.mubr.f32.gmra.mrb[0].mxu0 %v1996
        %v2066 = vpop.f32.mrb[0].mxu0
        %v2067 = vadd.f32 %v778, %v2066
        %v2068 = vpop.f32.mrb[0].mxu0
        %2069 = vdwg.mxu0
        %v2070 = vsel %vm857, %v2067, -inf
        %2071 = vmax.xlane.f32.xlu0 %v2070
        %v2072 = vpop.xlane.xlu0 %2071
        %v2073 = vsub.f32 %v2067, %v2072
        %v2074 = vmul.f32 %v2073, 1.442695
        %v2075 = vpow.pop %v2074
        %v2076 = vsel %vm857, %v2075, 0.0
        %2077 = vadd.xlane.f32.xlu0 %v2076
        %v2078 = vpop.xlane.xlu0 %2077
        %v2079 = vrcp.pop %v2078
        %v2080 = vmul.f32 %v2075, %v2079
        %2082 = vrot.lane.b32.xlu0 %v1829, 96
        %v2083 = vpop.permute.xlu0 %2082
        %v2086 = vsel %vm857, %v2080, 0
        %2088 = vmatprep.subr.mxu0 0.0
        %2089 = vmatpush1.msra.mxu0 %v2083
        %2090 = vmatprep.subr.mxu0 0.0
        %2091 = vmatpush1.msra.mxu0 0.0
        %2092 = vmatprep.subr.mxu0 0.0
        %2093 = vmatpush1.msra.mxu0 0.0
        %2094 = vmatprep.subr.mxu0 0.0
        %2095 = vmatpush1.msra.mxu0 0.0
        %2096 = vmatprep.subr.mxu0 0.0
        %2097 = vmatpush1.msra.mxu0 0.0
        %2098 = vmatprep.subr.mxu0 0.0
        %2099 = vmatpush1.msra.mxu0 0.0
        %2100 = vmatprep.subr.mxu0 0.0
        %2101 = vmatpush1.msra.mxu0 0.0
        %2102 = vmatprep.subr.mxu0 0.0
        %2103 = vmatpush1.msra.mxu0 0.0
        %2104 = vmatprep.subr.mxu0 0.0
        %2105 = vmatpush1.msra.mxu0 0.0
        %2106 = vmatprep.subr.mxu0 0.0
        %2107 = vmatpush1.msra.mxu0 0.0
        %2108 = vmatprep.subr.mxu0 0.0
        %2109 = vmatpush1.msra.mxu0 0.0
        %2110 = vmatprep.subr.mxu0 0.0
        %2111 = vmatpush1.msra.mxu0 0.0
        %2112 = vmatprep.subr.mxu0 0.0
        %2113 = vmatpush1.msra.mxu0 0.0
        %2114 = vmatprep.subr.mxu0 0.0
        %2115 = vmatpush1.msra.mxu0 0.0
        %2116 = vmatprep.subr.mxu0 0.0
        %2117 = vmatpush1.msra.mxu0 0.0
        %2118 = vmatprep.subr.mxu0 0.0
        %2119 = vmatpush1.msra.mxu0 0.0
        %2120 = vmatprep.subr.mxu0 0.0
        %2121 = vmatpush1.msra.mxu0 0.0
        %2122 = vmatprep.subr.mxu0 0.0
        %2123 = vmatpush1.msra.mxu0 0.0
        %2124 = vmatprep.subr.mxu0 0.0
        %2125 = vmatpush1.msra.mxu0 0.0
        %2126 = vmatprep.subr.mxu0 0.0
        %2127 = vmatpush1.msra.mxu0 0.0
        %2128 = vmatprep.subr.mxu0 0.0
        %2129 = vmatpush1.msra.mxu0 0.0
        %2130 = vmatprep.subr.mxu0 0.0
        %2131 = vmatpush1.msra.mxu0 0.0
        %2132 = vmatprep.subr.mxu0 0.0
        %2133 = vmatpush1.msra.mxu0 0.0
        %2134 = vmatprep.subr.mxu0 0.0
        %2135 = vmatpush1.msra.mxu0 0.0
        %2136 = vmatprep.subr.mxu0 0.0
        %2137 = vmatpush1.msra.mxu0 0.0
        %2138 = vmatprep.subr.mxu0 0.0
        %2139 = vmatpush1.msra.mxu0 0.0
        %2140 = vmatprep.subr.mxu0 0.0
        %2141 = vmatpush1.msra.mxu0 0.0
        %2142 = vmatprep.subr.mxu0 0.0
        %2143 = vmatpush1.msra.mxu0 0.0
        %2144 = vmatprep.subr.mxu0 0.0
        %2145 = vmatpush1.msra.mxu0 0.0
        %2146 = vmatprep.subr.mxu0 0.0
        %2147 = vmatpush1.msra.mxu0 0.0
        %2148 = vmatprep.subr.mxu0 0.0
        %2149 = vmatpush1.msra.mxu0 0.0
        %2150 = vmatprep.subr.mxu0 0.0
        %2151 = vmatpush1.msra.mxu0 0.0
        %2152 = vmatprep.mubr.f32.mxu0 0.0
        %2153 = vmatmul.mubr.f32.gmra.mrb[0].mxu0 %v2086
        %v2154 = vpop.f32.mrb[0].mxu0
        %v2155 = vadd.f32 0.0, %v2154
        %v2156 = vpop.f32.mrb[0].mxu0
        %2157 = vdwg.mxu0
        %2158 = vrot.lane.b32.xlu0 %v1758, 64
        %v2159 = vpop.permute.xlu0 %2158
        %2160 = vrot.lane.b32.xlu0 %v1760, 64
        %v2161 = vpop.permute.xlu0 %2160
        %v2162 = vsel %vm780, %v2159, 0
        %v2164 = vsel %vm780, %v2161, 0
        %2166 = vmatprep.subr.mxu0 0.0
        %2167 = vmatpush1.xpose.msra.mxu0 %v2164
        %2168 = vmatprep.subr.mxu0 0.0
        %2169 = vmatpush1.xpose.msra.mxu0 0.0
        %2170 = vmatprep.subr.mxu0 0.0
        %2171 = vmatpush1.xpose.msra.mxu0 0.0
        %2172 = vmatprep.subr.mxu0 0.0
        %2173 = vmatpush1.xpose.msra.mxu0 0.0
        %2174 = vmatprep.subr.mxu0 0.0
        %2175 = vmatpush1.xpose.msra.mxu0 0.0
        %2176 = vmatprep.subr.mxu0 0.0
        %2177 = vmatpush1.xpose.msra.mxu0 0.0
        %2178 = vmatprep.subr.mxu0 0.0
        %2179 = vmatpush1.xpose.msra.mxu0 0.0
        %2180 = vmatprep.subr.mxu0 0.0
        %2181 = vmatpush1.xpose.msra.mxu0 0.0
        %2182 = vmatprep.subr.mxu0 0.0
        %2183 = vmatpush1.xpose.msra.mxu0 0.0
        %2184 = vmatprep.subr.mxu0 0.0
        %2185 = vmatpush1.xpose.msra.mxu0 0.0
        %2186 = vmatprep.subr.mxu0 0.0
        %2187 = vmatpush1.xpose.msra.mxu0 0.0
        %2188 = vmatprep.subr.mxu0 0.0
        %2189 = vmatpush1.xpose.msra.mxu0 0.0
        %2190 = vmatprep.subr.mxu0 0.0
        %2191 = vmatpush1.xpose.msra.mxu0 0.0
        %2192 = vmatprep.subr.mxu0 0.0
        %2193 = vmatpush1.xpose.msra.mxu0 0.0
        %2194 = vmatprep.subr.mxu0 0.0
        %2195 = vmatpush1.xpose.msra.mxu0 0.0
        %2196 = vmatprep.subr.mxu0 0.0
        %2197 = vmatpush1.xpose.msra.mxu0 0.0
        %2198 = vmatprep.subr.mxu0 0.0
        %2199 = vmatpush1.xpose.msra.mxu0 0.0
        %2200 = vmatprep.subr.mxu0 0.0
        %2201 = vmatpush1.xpose.msra.mxu0 0.0
        %2202 = vmatprep.subr.mxu0 0.0
        %2203 = vmatpush1.xpose.msra.mxu0 0.0
        %2204 = vmatprep.subr.mxu0 0.0
        %2205 = vmatpush1.xpose.msra.mxu0 0.0
        %2206 = vmatprep.subr.mxu0 0.0
        %2207 = vmatpush1.xpose.msra.mxu0 0.0
        %2208 = vmatprep.subr.mxu0 0.0
        %2209 = vmatpush1.xpose.msra.mxu0 0.0
        %2210 = vmatprep.subr.mxu0 0.0
        %2211 = vmatpush1.xpose.msra.mxu0 0.0
        %2212 = vmatprep.subr.mxu0 0.0
        %2213 = vmatpush1.xpose.msra.mxu0 0.0
        %2214 = vmatprep.subr.mxu0 0.0
        %2215 = vmatpush1.xpose.msra.mxu0 0.0
        %2216 = vmatprep.subr.mxu0 0.0
        %2217 = vmatpush1.xpose.msra.mxu0 0.0
        %2218 = vmatprep.subr.mxu0 0.0
        %2219 = vmatpush1.xpose.msra.mxu0 0.0
        %2220 = vmatprep.subr.mxu0 0.0
        %2221 = vmatpush1.xpose.msra.mxu0 0.0
        %2222 = vmatprep.subr.mxu0 0.0
        %2223 = vmatpush1.xpose.msra.mxu0 0.0
        %2224 = vmatprep.subr.mxu0 0.0
        %2225 = vmatpush1.xpose.msra.mxu0 0.0
        %2226 = vmatprep.subr.mxu0 0.0
        %2227 = vmatpush1.xpose.msra.mxu0 0.0
        %2228 = vmatprep.subr.mxu0 0.0
        %2229 = vmatpush1.xpose.msra.mxu0 0.0
        %2230 = vmatprep.mubr.f32.mxu0 0.0
        %2231 = vmatmul.mubr.f32.gmra.mrb[0].mxu0 %v2162
        %v2232 = vpop.f32.mrb[0].mxu0
        %v2233 = vadd.f32 %v778, %v2232
        %v2234 = vpop.f32.mrb[0].mxu0
        %2235 = vdwg.mxu0
        %v2236 = vsel %vm857, %v2233, -inf
        %2237 = vmax.xlane.f32.xlu0 %v2236
        %v2238 = vpop.xlane.xlu0 %2237
        %v2239 = vsub.f32 %v2233, %v2238
        %v2240 = vmul.f32 %v2239, 1.442695
        %v2241 = vpow.pop %v2240
        %v2242 = vsel %vm857, %v2241, 0.0
        %2243 = vadd.xlane.f32.xlu0 %v2242
        %v2244 = vpop.xlane.xlu0 %2243
        %v2245 = vrcp.pop %v2244
        %v2246 = vmul.f32 %v2241, %v2245
        %2247 = vrot.lane.b32.xlu0 %v1829, 64
        %v2248 = vpop.permute.xlu0 %2247
        %v2251 = vsel %vm857, %v2246, 0
        %2253 = vmatprep.subr.mxu0 0.0
        %2254 = vmatpush1.msra.mxu0 %v2248
        %2255 = vmatprep.subr.mxu0 0.0
        %2256 = vmatpush1.msra.mxu0 0.0
        %2257 = vmatprep.subr.mxu0 0.0
        %2258 = vmatpush1.msra.mxu0 0.0
        %2259 = vmatprep.subr.mxu0 0.0
        %2260 = vmatpush1.msra.mxu0 0.0
        %2261 = vmatprep.subr.mxu0 0.0
        %2262 = vmatpush1.msra.mxu0 0.0
        %2263 = vmatprep.subr.mxu0 0.0
        %2264 = vmatpush1.msra.mxu0 0.0
        %2265 = vmatprep.subr.mxu0 0.0
        %2266 = vmatpush1.msra.mxu0 0.0
        %2267 = vmatprep.subr.mxu0 0.0
        %2268 = vmatpush1.msra.mxu0 0.0
        %2269 = vmatprep.subr.mxu0 0.0
        %2270 = vmatpush1.msra.mxu0 0.0
        %2271 = vmatprep.subr.mxu0 0.0
        %2272 = vmatpush1.msra.mxu0 0.0
        %2273 = vmatprep.subr.mxu0 0.0
        %2274 = vmatpush1.msra.mxu0 0.0
        %2275 = vmatprep.subr.mxu0 0.0
        %2276 = vmatpush1.msra.mxu0 0.0
        %2277 = vmatprep.subr.mxu0 0.0
        %2278 = vmatpush1.msra.mxu0 0.0
        %2279 = vmatprep.subr.mxu0 0.0
        %2280 = vmatpush1.msra.mxu0 0.0
        %2281 = vmatprep.subr.mxu0 0.0
        %2282 = vmatpush1.msra.mxu0 0.0
        %2283 = vmatprep.subr.mxu0 0.0
        %2284 = vmatpush1.msra.mxu0 0.0
        %2285 = vmatprep.subr.mxu0 0.0
        %2286 = vmatpush1.msra.mxu0 0.0
        %2287 = vmatprep.subr.mxu0 0.0
        %2288 = vmatpush1.msra.mxu0 0.0
        %2289 = vmatprep.subr.mxu0 0.0
        %2290 = vmatpush1.msra.mxu0 0.0
        %2291 = vmatprep.subr.mxu0 0.0
        %2292 = vmatpush1.msra.mxu0 0.0
        %2293 = vmatprep.subr.mxu0 0.0
        %2294 = vmatpush1.msra.mxu0 0.0
        %2295 = vmatprep.subr.mxu0 0.0
        %2296 = vmatpush1.msra.mxu0 0.0
        %2297 = vmatprep.subr.mxu0 0.0
        %2298 = vmatpush1.msra.mxu0 0.0
        %2299 = vmatprep.subr.mxu0 0.0
        %2300 = vmatpush1.msra.mxu0 0.0
        %2301 = vmatprep.subr.mxu0 0.0
        %2302 = vmatpush1.msra.mxu0 0.0
        %2303 = vmatprep.subr.mxu0 0.0
        %2304 = vmatpush1.msra.mxu0 0.0
        %2305 = vmatprep.subr.mxu0 0.0
        %2306 = vmatpush1.msra.mxu0 0.0
        %2307 = vmatprep.subr.mxu0 0.0
        %2308 = vmatpush1.msra.mxu0 0.0
        %2309 = vmatprep.subr.mxu0 0.0
        %2310 = vmatpush1.msra.mxu0 0.0
        %2311 = vmatprep.subr.mxu0 0.0
        %2312 = vmatpush1.msra.mxu0 0.0
        %2313 = vmatprep.subr.mxu0 0.0
        %2314 = vmatpush1.msra.mxu0 0.0
        %2315 = vmatprep.subr.mxu0 0.0
        %2316 = vmatpush1.msra.mxu0 0.0
        %2317 = vmatprep.mubr.f32.mxu0 0.0
        %2318 = vmatmul.mubr.f32.gmra.mrb[0].mxu0 %v2251
        %v2319 = vpop.f32.mrb[0].mxu0
        %v2320 = vadd.f32 0.0, %v2319
        %v2321 = vpop.f32.mrb[0].mxu0
        %2322 = vdwg.mxu0
        %2324 = vrot.lane.b32.xlu0 %v2155, 32
        %v2325 = vpop.permute.xlu0 %2324
        %2328 = vrot.lane.b32.xlu0 %v2320, 64
        %v2329 = vpop.permute.xlu0 %2328
        %v2331 = vsel %vm780, %v1989, %v2325
        %v2332 = vsel %vm1282, %v2331, %v2329
        %s2333 = scalar_lea.vmem [#allocation5], 96
        %v2334 = vld [vmem:[%s2333] sm:$0xff]
        %v2335 = vld [vmem:[%s2333 + $0x8] sm:$0xff]
        %v2336 = vld [vmem:[%s2333 + $0x10] sm:$0xff]
        %v2337 = vld [vmem:[%s2333 + $0x18] sm:$0xff]
        %v2338 = vld [vmem:[%s2333 + $0x20] sm:$0xff]
        %v2339 = vld [vmem:[%s2333 + $0x28] sm:$0xff]
        %v2340 = vld [vmem:[%s2333 + $0x30] sm:$0xff]
        %v2341 = vld [vmem:[%s2333 + $0x38] sm:$0xff]
        %v2342 = vld [vmem:[%s2333 + $0x40] sm:$0xff]
        %v2343 = vld [vmem:[%s2333 + $0x48] sm:$0xff]
        %v2344 = vld [vmem:[%s2333 + $0x50] sm:$0xff]
        %v2345 = vld [vmem:[%s2333 + $0x58] sm:$0xff]
        %s2346 = scalar_lea.vmem %s6, 1
        %v2347 = vld [vmem:[%s2346] sm:$0x1]
        %v2349 = vlaneseq
        %v2350 = vshrl.u32 %v2349, 7
        %v2351 = vsub.s32 0, %v2350
        %v2352 = vrot.slane %v2347, %v2351
        %v2355 = vsel %vm1303, %v2332, 0
        %2357 = vmatprep.subr.mxu0 0.0
        %2358 = vmatpush1.msra.mxu0 %v2334
        %2359 = vmatprep.subr.mxu0 0.0
        %2360 = vmatpush1.msra.mxu0 %v2335
        %2361 = vmatprep.subr.mxu0 0.0
        %2362 = vmatpush1.msra.mxu0 %v2336
        %2363 = vmatprep.subr.mxu0 0.0
        %2364 = vmatpush1.msra.mxu0 %v2337
        %2365 = vmatprep.subr.mxu0 0.0
        %2366 = vmatpush1.msra.mxu0 %v2338
        %2367 = vmatprep.subr.mxu0 0.0
        %2368 = vmatpush1.msra.mxu0 %v2339
        %2369 = vmatprep.subr.mxu0 0.0
        %2370 = vmatpush1.msra.mxu0 %v2340
        %2371 = vmatprep.subr.mxu0 0.0
        %2372 = vmatpush1.msra.mxu0 %v2341
        %2373 = vmatprep.subr.mxu0 0.0
        %2374 = vmatpush1.msra.mxu0 %v2342
        %2375 = vmatprep.subr.mxu0 0.0
        %2376 = vmatpush1.msra.mxu0 %v2343
        %2377 = vmatprep.subr.mxu0 0.0
        %2378 = vmatpush1.msra.mxu0 %v2344
        %2379 = vmatprep.subr.mxu0 0.0
        %2380 = vmatpush1.msra.mxu0 %v2345
        %2381 = vmatprep.subr.mxu0 0.0
        %2382 = vmatpush1.msra.mxu0 0.0
        %2383 = vmatprep.subr.mxu0 0.0
        %2384 = vmatpush1.msra.mxu0 0.0
        %2385 = vmatprep.subr.mxu0 0.0
        %2386 = vmatpush1.msra.mxu0 0.0
        %2387 = vmatprep.subr.mxu0 0.0
        %2388 = vmatpush1.msra.mxu0 0.0
        %2389 = vmatprep.subr.mxu0 0.0
        %2390 = vmatpush1.msra.mxu0 0.0
        %2391 = vmatprep.subr.mxu0 0.0
        %2392 = vmatpush1.msra.mxu0 0.0
        %2393 = vmatprep.subr.mxu0 0.0
        %2394 = vmatpush1.msra.mxu0 0.0
        %2395 = vmatprep.subr.mxu0 0.0
        %2396 = vmatpush1.msra.mxu0 0.0
        %2397 = vmatprep.subr.mxu0 0.0
        %2398 = vmatpush1.msra.mxu0 0.0
        %2399 = vmatprep.subr.mxu0 0.0
        %2400 = vmatpush1.msra.mxu0 0.0
        %2401 = vmatprep.subr.mxu0 0.0
        %2402 = vmatpush1.msra.mxu0 0.0
        %2403 = vmatprep.subr.mxu0 0.0
        %2404 = vmatpush1.msra.mxu0 0.0
        %2405 = vmatprep.subr.mxu0 0.0
        %2406 = vmatpush1.msra.mxu0 0.0
        %2407 = vmatprep.subr.mxu0 0.0
        %2408 = vmatpush1.msra.mxu0 0.0
        %2409 = vmatprep.subr.mxu0 0.0
        %2410 = vmatpush1.msra.mxu0 0.0
        %2411 = vmatprep.subr.mxu0 0.0
        %2412 = vmatpush1.msra.mxu0 0.0
        %2413 = vmatprep.subr.mxu0 0.0
        %2414 = vmatpush1.msra.mxu0 0.0
        %2415 = vmatprep.subr.mxu0 0.0
        %2416 = vmatpush1.msra.mxu0 0.0
        %2417 = vmatprep.subr.mxu0 0.0
        %2418 = vmatpush1.msra.mxu0 0.0
        %2419 = vmatprep.subr.mxu0 0.0
        %2420 = vmatpush1.msra.mxu0 0.0
        %2421 = vmatprep.mubr.f32.mxu0 0.0
        %2422 = vmatmul.mubr.f32.gmra.mrb[0].mxu0 %v2355
        %v2423 = vpop.f32.mrb[0].mxu0
        %v2424 = vadd.f32 %v2352, %v2423
        %v2425 = vpop.f32.mrb[0].mxu0
        %2426 = vdwg.mxu0
        %v2427 = vadd.f32 %v1623, %v2424
        %2428 = vadd.xlane.f32.xlu0 %v2427
        %v2429 = vpop.xlane.xlu0 %2428
        %v2430 = vmul.f32 %v2429, 0.030303031
        %v2431 = vmul.f32 %v2427, %v2427
        %2432 = vadd.xlane.f32.xlu0 %v2431
        %v2433 = vpop.xlane.xlu0 %2432
        %v2434 = vmul.f32 %v2433, 0.030303031
        %v2435 = vmul.f32 %v2430, %v2430
        %v2436 = vsub.f32 %v2434, %v2435
        %v2437 = vsub.f32 %v2427, %v2430
        %v2438 = vadd.f32 %v2436, 1e-05
        %v2439 = vrsqrt.pop %v2438
        %v2440 = vmul.f32 %v2437, %v2439
        %s2441 = scalar_lea.vmem %s7, 1
        %v2442 = vld [vmem:[%s2441] sm:$0x1]
        %v2444 = vlaneseq
        %v2445 = vshrl.u32 %v2444, 7
        %v2446 = vsub.s32 0, %v2445
        %v2447 = vrot.slane %v2442, %v2446
        %v2449 = vmul.f32 %v2440, %v2447
        %s2450 = scalar_lea.vmem %s8, 1
        %v2451 = vld [vmem:[%s2450] sm:$0x1]
        %v2453 = vlaneseq
        %v2454 = vshrl.u32 %v2453, 7
        %v2455 = vsub.s32 0, %v2454
        %v2456 = vrot.slane %v2451, %v2455
        %v2458 = vadd.f32 %v2449, %v2456
        %s2459 = scalar_lea.vmem [#allocation7], 128
        %v2460 = vld [vmem:[%s2459] sm:$0xff]
        %v2461 = vld [vmem:[%s2459 + $0x8] sm:$0xff]
        %v2462 = vld [vmem:[%s2459 + $0x10] sm:$0xff]
        %v2463 = vld [vmem:[%s2459 + $0x18] sm:$0xff]
        %v2464 = vld [vmem:[%s2459 + $0x20] sm:$0xff]
        %v2465 = vld [vmem:[%s2459 + $0x28] sm:$0xff]
        %v2466 = vld [vmem:[%s2459 + $0x30] sm:$0xff]
        %v2467 = vld [vmem:[%s2459 + $0x38] sm:$0xff]
        %v2468 = vld [vmem:[%s2459 + $0x40] sm:$0xff]
        %v2469 = vld [vmem:[%s2459 + $0x48] sm:$0xff]
        %v2470 = vld [vmem:[%s2459 + $0x50] sm:$0xff]
        %v2471 = vld [vmem:[%s2459 + $0x58] sm:$0xff]
        %v2472 = vld [vmem:[%s2459 + $0x60] sm:$0xff]
        %v2473 = vld [vmem:[%s2459 + $0x68] sm:$0xff]
        %v2474 = vld [vmem:[%s2459 + $0x70] sm:$0xff]
        %v2475 = vld [vmem:[%s2459 + $0x78] sm:$0xff]
        %s2476 = scalar_lea.vmem %s10, 1
        %v2477 = vld [vmem:[%s2476] sm:$0x1]
        %v2479 = vlaneseq
        %v2480 = vshrl.u32 %v2479, 7
        %v2481 = vsub.s32 0, %v2480
        %v2482 = vrot.slane %v2477, %v2481
        %2484 = vmatprep.subr.mxu0 0.0
        %2485 = vmatpush1.msra.mxu0 %v2460
        %2486 = vmatprep.subr.mxu0 0.0
        %2487 = vmatpush1.msra.mxu0 %v2461
        %2488 = vmatprep.subr.mxu0 0.0
        %2489 = vmatpush1.msra.mxu0 %v2462
        %2490 = vmatprep.subr.mxu0 0.0
        %2491 = vmatpush1.msra.mxu0 %v2463
        %2492 = vmatprep.subr.mxu0 0.0
        %2493 = vmatpush1.msra.mxu0 %v2464
        %2494 = vmatprep.subr.mxu0 0.0
        %2495 = vmatpush1.msra.mxu0 %v2465
        %2496 = vmatprep.subr.mxu0 0.0
        %2497 = vmatpush1.msra.mxu0 %v2466
        %2498 = vmatprep.subr.mxu0 0.0
        %2499 = vmatpush1.msra.mxu0 %v2467
        %2500 = vmatprep.subr.mxu0 0.0
        %2501 = vmatpush1.msra.mxu0 %v2468
        %2502 = vmatprep.subr.mxu0 0.0
        %2503 = vmatpush1.msra.mxu0 %v2469
        %2504 = vmatprep.subr.mxu0 0.0
        %2505 = vmatpush1.msra.mxu0 %v2470
        %2506 = vmatprep.subr.mxu0 0.0
        %2507 = vmatpush1.msra.mxu0 %v2471
        %2508 = vmatprep.subr.mxu0 0.0
        %2509 = vmatpush1.msra.mxu0 %v2472
        %2510 = vmatprep.subr.mxu0 0.0
        %2511 = vmatpush1.msra.mxu0 %v2473
        %2512 = vmatprep.subr.mxu0 0.0
        %2513 = vmatpush1.msra.mxu0 %v2474
        %2514 = vmatprep.subr.mxu0 0.0
        %2515 = vmatpush1.msra.mxu0 %v2475
        %2516 = vmatprep.subr.mxu0 0.0
        %2517 = vmatpush1.msra.mxu0 0.0
        %2518 = vmatprep.subr.mxu0 0.0
        %2519 = vmatpush1.msra.mxu0 0.0
        %2520 = vmatprep.subr.mxu0 0.0
        %2521 = vmatpush1.msra.mxu0 0.0
        %2522 = vmatprep.subr.mxu0 0.0
        %2523 = vmatpush1.msra.mxu0 0.0
        %2524 = vmatprep.subr.mxu0 0.0
        %2525 = vmatpush1.msra.mxu0 0.0
        %2526 = vmatprep.subr.mxu0 0.0
        %2527 = vmatpush1.msra.mxu0 0.0
        %2528 = vmatprep.subr.mxu0 0.0
        %2529 = vmatpush1.msra.mxu0 0.0
        %2530 = vmatprep.subr.mxu0 0.0
        %2531 = vmatpush1.msra.mxu0 0.0
        %2532 = vmatprep.subr.mxu0 0.0
        %2533 = vmatpush1.msra.mxu0 0.0
        %2534 = vmatprep.subr.mxu0 0.0
        %2535 = vmatpush1.msra.mxu0 0.0
        %2536 = vmatprep.subr.mxu0 0.0
        %2537 = vmatpush1.msra.mxu0 0.0
        %2538 = vmatprep.subr.mxu0 0.0
        %2539 = vmatpush1.msra.mxu0 0.0
        %2540 = vmatprep.subr.mxu0 0.0
        %2541 = vmatpush1.msra.mxu0 0.0
        %2542 = vmatprep.subr.mxu0 0.0
        %2543 = vmatpush1.msra.mxu0 0.0
        %2544 = vmatprep.subr.mxu0 0.0
        %2545 = vmatpush1.msra.mxu0 0.0
        %2546 = vmatprep.subr.mxu0 0.0
        %2547 = vmatpush1.msra.mxu0 0.0
        %2548 = vmatprep.mubr.f32.mxu0 0.0
        %2549 = vmatmul.mubr.f32.gmra.mrb[0].mxu0 %v2458
        %v2550 = vpop.f32.mrb[0].mxu0
        %v2551 = vadd.f32 %v2482, %v2550
        %v2552 = vpop.f32.mrb[0].mxu0
        %2553 = vdwg.mxu0
        %v2554 = vmax.f32 %v2551, 0.0
        %s2555 = scalar_lea.vmem [#allocation8], 128
        %v2556 = vld [vmem:[%s2555] sm:$0xff]
        %v2557 = vld [vmem:[%s2555 + $0x8] sm:$0xff]
        %v2558 = vld [vmem:[%s2555 + $0x10] sm:$0xff]
        %v2559 = vld [vmem:[%s2555 + $0x18] sm:$0xff]
        %v2560 = vld [vmem:[%s2555 + $0x20] sm:$0xff]
        %v2561 = vld [vmem:[%s2555 + $0x28] sm:$0xff]
        %v2562 = vld [vmem:[%s2555 + $0x30] sm:$0xff]
        %v2563 = vld [vmem:[%s2555 + $0x38] sm:$0xff]
        %v2564 = vld [vmem:[%s2555 + $0x40] sm:$0xff]
        %v2565 = vld [vmem:[%s2555 + $0x48] sm:$0xff]
        %v2566 = vld [vmem:[%s2555 + $0x50] sm:$0xff]
        %v2567 = vld [vmem:[%s2555 + $0x58] sm:$0xff]
        %v2568 = vld [vmem:[%s2555 + $0x60] sm:$0xff]
        %v2569 = vld [vmem:[%s2555 + $0x68] sm:$0xff]
        %v2570 = vld [vmem:[%s2555 + $0x70] sm:$0xff]
        %v2571 = vld [vmem:[%s2555 + $0x78] sm:$0xff]
        %s2572 = scalar_lea.vmem %s12, 1
        %v2573 = vld [vmem:[%s2572] sm:$0x1]
        %v2575 = vlaneseq
        %v2576 = vshrl.u32 %v2575, 7
        %v2577 = vsub.s32 0, %v2576
        %v2578 = vrot.slane %v2573, %v2577
        %2580 = vmatprep.subr.mxu0 0.0
        %2581 = vmatpush1.msra.mxu0 %v2556
        %2582 = vmatprep.subr.mxu0 0.0
        %2583 = vmatpush1.msra.mxu0 %v2557
        %2584 = vmatprep.subr.mxu0 0.0
        %2585 = vmatpush1.msra.mxu0 %v2558
        %2586 = vmatprep.subr.mxu0 0.0
        %2587 = vmatpush1.msra.mxu0 %v2559
        %2588 = vmatprep.subr.mxu0 0.0
        %2589 = vmatpush1.msra.mxu0 %v2560
        %2590 = vmatprep.subr.mxu0 0.0
        %2591 = vmatpush1.msra.mxu0 %v2561
        %2592 = vmatprep.subr.mxu0 0.0
        %2593 = vmatpush1.msra.mxu0 %v2562
        %2594 = vmatprep.subr.mxu0 0.0
        %2595 = vmatpush1.msra.mxu0 %v2563
        %2596 = vmatprep.subr.mxu0 0.0
        %2597 = vmatpush1.msra.mxu0 %v2564
        %2598 = vmatprep.subr.mxu0 0.0
        %2599 = vmatpush1.msra.mxu0 %v2565
        %2600 = vmatprep.subr.mxu0 0.0
        %2601 = vmatpush1.msra.mxu0 %v2566
        %2602 = vmatprep.subr.mxu0 0.0
        %2603 = vmatpush1.msra.mxu0 %v2567
        %2604 = vmatprep.subr.mxu0 0.0
        %2605 = vmatpush1.msra.mxu0 %v2568
        %2606 = vmatprep.subr.mxu0 0.0
        %2607 = vmatpush1.msra.mxu0 %v2569
        %2608 = vmatprep.subr.mxu0 0.0
        %2609 = vmatpush1.msra.mxu0 %v2570
        %2610 = vmatprep.subr.mxu0 0.0
        %2611 = vmatpush1.msra.mxu0 %v2571
        %2612 = vmatprep.subr.mxu0 0.0
        %2613 = vmatpush1.msra.mxu0 0.0
        %2614 = vmatprep.subr.mxu0 0.0
        %2615 = vmatpush1.msra.mxu0 0.0
        %2616 = vmatprep.subr.mxu0 0.0
        %2617 = vmatpush1.msra.mxu0 0.0
        %2618 = vmatprep.subr.mxu0 0.0
        %2619 = vmatpush1.msra.mxu0 0.0
        %2620 = vmatprep.subr.mxu0 0.0
        %2621 = vmatpush1.msra.mxu0 0.0
        %2622 = vmatprep.subr.mxu0 0.0
        %2623 = vmatpush1.msra.mxu0 0.0
        %2624 = vmatprep.subr.mxu0 0.0
        %2625 = vmatpush1.msra.mxu0 0.0
        %2626 = vmatprep.subr.mxu0 0.0
        %2627 = vmatpush1.msra.mxu0 0.0
        %2628 = vmatprep.subr.mxu0 0.0
        %2629 = vmatpush1.msra.mxu0 0.0
        %2630 = vmatprep.subr.mxu0 0.0
        %2631 = vmatpush1.msra.mxu0 0.0
        %2632 = vmatprep.subr.mxu0 0.0
        %2633 = vmatpush1.msra.mxu0 0.0
        %2634 = vmatprep.subr.mxu0 0.0
        %2635 = vmatpush1.msra.mxu0 0.0
        %2636 = vmatprep.subr.mxu0 0.0
        %2637 = vmatpush1.msra.mxu0 0.0
        %2638 = vmatprep.subr.mxu0 0.0
        %2639 = vmatpush1.msra.mxu0 0.0
        %2640 = vmatprep.subr.mxu0 0.0
        %2641 = vmatpush1.msra.mxu0 0.0
        %2642 = vmatprep.subr.mxu0 0.0
        %2643 = vmatpush1.msra.mxu0 0.0
        %2644 = vmatprep.mubr.f32.mxu0 0.0
        %2645 = vmatmul.mubr.f32.gmra.mrb[0].mxu0 %v2554
        %v2646 = vpop.f32.mrb[0].mxu0
        %v2647 = vadd.f32 %v2578, %v2646
        %v2648 = vpop.f32.mrb[0].mxu0
        %2649 = vdwg.mxu0
        %v2650 = vadd.f32 %v2458, %v2647
        %2651 = vadd.xlane.f32.xlu0 %v2650
        %v2652 = vpop.xlane.xlu0 %2651
        %v2653 = vmul.f32 %v2652, 0.030303031
        %v2654 = vmul.f32 %v2650, %v2650
        %2655 = vadd.xlane.f32.xlu0 %v2654
        %v2656 = vpop.xlane.xlu0 %2655
        %v2657 = vmul.f32 %v2656, 0.030303031
        %v2658 = vmul.f32 %v2653, %v2653
        %v2659 = vsub.f32 %v2657, %v2658
        %v2660 = vsub.f32 %v2650, %v2653
        %v2661 = vadd.f32 %v2659, 1e-05
        %v2662 = vrsqrt.pop %v2661
        %v2663 = vmul.f32 %v2660, %v2662
        %s2664 = scalar_lea.vmem %s13, 1
        %v2665 = vld [vmem:[%s2664] sm:$0x1]
        %v2667 = vlaneseq
        %v2668 = vshrl.u32 %v2667, 7
        %v2669 = vsub.s32 0, %v2668
        %v2670 = vrot.slane %v2665, %v2669
        %v2672 = vmul.f32 %v2663, %v2670
        %s2673 = scalar_lea.vmem %s14, 1
        %v2674 = vld [vmem:[%s2673] sm:$0x1]
        %v2676 = vlaneseq
        %v2677 = vshrl.u32 %v2676, 7
        %v2678 = vsub.s32 0, %v2677
        %v2679 = vrot.slane %v2674, %v2678
        %v2681 = vadd.f32 %v2672, %v2679
        %2682 = vst [vmem:[%s555] sm:$0xff] %v2681
        %s2683 = sand.u32 %s365, 1
        %s2684 = scalar_lea.sflag [#allocation4], %s2683
        %s2685 = sand.u32 %s365, 1
        %s2686 = smul.addr %s2685, 8
        %s2687 = scalar_lea.vmem [#allocation10], %s2686
        // Predicated region
        $region97: #{behaviour_encoder.1} parent=79 // pred_check
          %p2688 = pneg %p375
        $region98: #{behaviour_encoder.1} parent=79 // pred_check_branch
          %2690 = sbr.rel (%p2688) target = $region100
        $region99: #{behaviour_encoder.1} parent=79 // pred_region
          %s2692 = ssub.s32 128, 128
          %2693 = vsyncadd %s2684, %s2692
          %s2694 = smul.addr %s32, 128
          %s2695 = scalar_lea.hbm %s15, %s2694
          %s2697 = sshll.u32 %s2687, 4
          %s2698 = int_to_ptr.vmem [resolvable:$true] %s2697
          %2700 = dma.vmem_to_hbm [thread:$0]  %s2698, 128, %s2695, %s2684
        $region100: #{behaviour_encoder.1} parent=79 // pred_fallthru
          _
      $region80: #{behaviour_encoder.1} parent=5 // pred_fallthru
        _
      %p2701 = scmp.le.s32.totalorder 2, %s27
      // Predicated region
      $region101: #{behaviour_encoder.1} parent=5 // pred_check
        %p2702 = pneg %p2701
      $region102: #{behaviour_encoder.1} parent=5 // pred_check_branch
        %2704 = sbr.rel (%p2702) target = $region104
      $region103: #{behaviour_encoder.1} parent=5 // pred_region
        %s2705 = ssub.s32 %s27, 2
        // Predicated region
        $region105: #{behaviour_encoder.1} parent=103 // pred_check
          %p2706 = pneg %p381
        $region106: #{behaviour_encoder.1} parent=103 // pred_check_branch
          %2708 = sbr.rel (%p2706) target = $region108
        $region107: #{behaviour_encoder.1} parent=103 // pred_region
          %s2709 = sand.u32 %s366, 1
          %s2710 = scalar_lea.sflag [#allocation4], %s2709
          %s2711 = sand.u32 %s366, 1
          %s2712 = smul.addr %s2711, 8
          %s2713 = scalar_lea.vmem [#allocation10], %s2712
          %2714 = dma.done %s2710, 128
        $region108: #{behaviour_encoder.1} parent=103 // pred_fallthru
          _
      $region104: #{behaviour_encoder.1} parent=5 // pred_fallthru
        _
    $region6: #{behaviour_encoder.1} parent=1 // loop_footer
      %s31 = sadd.s32 1, %s27
    $region7: #{behaviour_encoder.1} parent=1 // loop_footer_branch
      %26 = sbr.rel target = $region3
    $region8: #{behaviour_encoder.1} parent=1 // loop_exit
      _
    %2715 = vsyncpa [#allocation3], 1
    %s2716 = scalar_lea.sflag [#allocation3], 1
    %2717 = vsyncpa %s2716, 1
    %2718 = vsyncpa [#allocation6], 1
    %2719 = vsyncpa [#allocation9], 1
    %2720 = vsyncpa [#allocation4], 1
    %s2721 = scalar_lea.sflag [#allocation4], 1
    %2722 = vsyncpa %s2721, 1

</llo_original>
